<compile_context>
chip_gen: v5e
topology: v5e:2x2
jax: 0.10.0
libtpu: 0.0.40
codegen_flags: <defaults>
</compile_context>

<pallas_src>
import numpy as np

import jax
import jax.numpy as jnp
from jax.experimental import pallas as pl
from jax.experimental.pallas import tpu as pltpu


# ----------------------------------------------------------------------------
# Fused kernel: entire QNet forward for one batch element per grid step.
# ----------------------------------------------------------------------------
def _qnet_kernel(p1_ref, wc1_ref, b1_ref,
                 m2_ref, b2_ref,
                 mr1_ref, br1_ref,
                 mr2_ref, br2_ref,
                 m3_ref, b3_ref,
                 w4_ref, b4_ref,
                 out_ref,
                 xp_ref):
    f32 = jnp.float32
    bf16 = jnp.bfloat16

    # Padded activation scratch: rows 0 and 5 stay zero (H zero-padding),
    # rows 1..4 hold the current (4 x width) activation.
    xp_ref[...] = jnp.zeros((6, 512), f32)

    # ---- conv1 (4x4, s2, p1, 4->32) fused with space-to-depth.
    # Produces X1[hb, wb*128 + hr*64 + wr*32 + c] into xp rows 1..4.
    for wb in range(4):
        p = p1_ref[0, :, wb * 256:(wb + 1) * 256]                # (4, 256) f32
        y = jnp.dot(p.astype(bf16), wc1_ref[...],
                    preferred_element_type=f32)                  # (4, 128)
        y = jnp.maximum(y + b1_ref[:, wb * 128:(wb + 1) * 128], 0.0)
        xp_ref[1:5, wb * 128:(wb + 1) * 128] = y

    def conv3tap(width, m_ref, b_ref, relu, residual=None):
        """3-H-tap conv: out = sum_u xp[u:u+4, :width] @ M_u  (+bias/res/relu)."""
        acc = jnp.zeros((4, b_ref.shape[-1]), f32)
        for u in range(3):
            lhs = xp_ref[u:u + 4, :width].astype(bf16)           # (4, width)
            acc = acc + jnp.dot(lhs, m_ref[u], preferred_element_type=f32)
        acc = acc + b_ref[...]
        if residual is not None:
            acc = acc + residual
        if relu:
            acc = jnp.maximum(acc, 0.0)
        return acc                                               # (4, Nout) f32

    # ---- conv2 (4x4, s2, p1, 32->64) on the space-to-depth layout.
    x2 = conv3tap(512, m2_ref, b2_ref, relu=True)                # (4, 256)

    # ---- ResBlock(64): conv3x3 + relu, conv3x3, + residual.
    xp_ref[1:5, :256] = x2
    x3 = conv3tap(256, mr1_ref, br1_ref, relu=True)              # (4, 256)
    xp_ref[1:5, :256] = x3
    x4 = conv3tap(256, mr2_ref, br2_ref, relu=False, residual=x2)

    # ---- conv3 (4x4, s1, p0, 64->128): contract the whole spatial extent.
    acc3 = b3_ref[...]                                           # (1, 128) f32
    for h in range(4):
        lhs = x4[h:h + 1, :].astype(bf16)                        # (1, 256)
        acc3 = acc3 + jnp.dot(lhs, m3_ref[h], preferred_element_type=f32)
    acc3 = jnp.maximum(acc3, 0.0)

    # ---- conv4 (1x1, 128->16), no activation (fused with conv3 epilogue).
    out = jnp.dot(acc3.astype(bf16), w4_ref[...],
                  preferred_element_type=f32) + b4_ref[...]      # (1, 16)
    out_ref[...] = out.reshape(1, 1, 16)


# ----------------------------------------------------------------------------
# Host-side layout plumbing (raw-input gather) and weight folding.
# ----------------------------------------------------------------------------
def build_p1(x_nchw):
    """Gather conv1 patches in the (hb | wb, hr, wr, i, j, cin) layout.

    P1[b, hb, wb*256 + (hr*2+wr)*64 + (i*4+j)*4 + cin]
      = xpad[b, 4*hb + 2*hr + i, 4*wb + 2*wr + j, cin]
    """
    x = jnp.transpose(x_nchw, (0, 2, 3, 1))                      # NHWC
    xp = jnp.pad(x, ((0, 0), (1, 1), (1, 1), (0, 0)))            # (B,18,18,4)
    hb = np.arange(4).reshape(4, 1, 1, 1, 1, 1)
    wb = np.arange(4).reshape(1, 4, 1, 1, 1, 1)
    hr = np.arange(2).reshape(1, 1, 2, 1, 1, 1)
    wr = np.arange(2).reshape(1, 1, 1, 2, 1, 1)
    ii = np.arange(4).reshape(1, 1, 1, 1, 4, 1)
    jj = np.arange(4).reshape(1, 1, 1, 1, 1, 4)
    H = 4 * hb + 2 * hr + ii                                     # broadcasts
    W = 4 * wb + 2 * wr + jj
    p1 = xp[:, H, W, :]                                          # (B,4,4,2,2,4,4,4)
    return p1.reshape(x.shape[0], 4, 1024).astype(jnp.float32)


# (block-offset u, parity r) -> original 4-tap kernel index i = 2*u + r - 1
_TAP = {(0, 1): 0, (1, 0): 1, (1, 1): 2, (2, 0): 3}


def fold_qnet_params(params):
    """Fold PyTorch-layout conv weights into lane-dense GEMM matrices."""
    f = lambda a: np.asarray(a, np.float32)
    w1, b1 = f(params["c1_w"]), f(params["c1_b"])
    w2, b2 = f(params["c2_w"]), f(params["c2_b"])
    wr1, br1 = f(params["r1_w"]), f(params["r1_b"])
    wr2, br2 = f(params["r2_w"]), f(params["r2_b"])
    w3, b3 = f(params["c3_w"]), f(params["c3_b"])
    w4, b4 = f(params["c4_w"]), f(params["c4_b"])

    # conv1: (32,4,4,4) -> (KH,KW,Cin,Cout) -> (64,32); block-diag over (hr,wr)
    w1mat = np.transpose(w1, (2, 3, 1, 0)).reshape(64, 32)
    wc1 = np.kron(np.eye(4, dtype=np.float32), w1mat)            # (256, 128)
    b1x = np.tile(b1, 16)[None, :]                               # (1, 512)

    # conv2 (4x4 s2 p1, 32->64) folded onto the space-to-depth layout.
    m2 = np.zeros((3, 4, 2, 2, 32, 4, 64), np.float32)           # u,wb,hr,wr,c,ow,n
    for u in range(3):
        for hr in range(2):
            if (u, hr) not in _TAP:
                continue
            i = _TAP[(u, hr)]
            for ow in range(4):
                for v in range(3):
                    wbk = ow + v - 1
                    if not 0 <= wbk <= 3:
                        continue
                    for wr in range(2):
                        if (v, wr) not in _TAP:
                            continue
                        j = _TAP[(v, wr)]
                        m2[u, wbk, hr, wr, :, ow, :] = w2[:, :, i, j].T
    m2 = m2.reshape(3, 512, 256)
    b2x = np.tile(b2, 4)[None, :]                                # (1, 256)

    def fold3x3(w):                                              # (64,64,3,3)
        m = np.zeros((3, 4, 64, 4, 64), np.float32)              # u, w,c, ow,n
        for u in range(3):
            for ow in range(4):
                for dw in range(3):
                    wi = ow + dw - 1
                    if 0 <= wi <= 3:
                        m[u, wi, :, ow, :] = w[:, :, u, dw].T
        return m.reshape(3, 256, 256)

    mr1, br1x = fold3x3(wr1), np.tile(br1, 4)[None, :]
    mr2, br2x = fold3x3(wr2), np.tile(br2, 4)[None, :]

    # conv3 (4x4 s1 p0, 64->128): one (256,128) matrix per input row h.
    m3 = np.transpose(w3, (2, 3, 1, 0)).reshape(4, 256, 128)
    b3x = b3[None, :]
    # conv4 (1x1, 128->16)
    w4m = w4.reshape(16, 128).T                                  # (128, 16)
    b4x = b4[None, :]

    bf = lambda a: jnp.asarray(a, jnp.bfloat16)
    fp = lambda a: jnp.asarray(a, jnp.float32)
    return {
        "wc1": bf(wc1), "b1x": fp(b1x),
        "m2": bf(m2), "b2x": fp(b2x),
        "mr1": bf(mr1), "br1x": fp(br1x),
        "mr2": bf(mr2), "br2x": fp(br2x),
        "m3": bf(m3), "b3x": fp(b3x),
        "w4": bf(w4m), "b4x": fp(b4x),
    }


_WEIGHT_ORDER = ["wc1", "b1x", "m2", "b2x", "mr1", "br1x",
                 "mr2", "br2x", "m3", "b3x", "w4", "b4x"]


def _const_index_map(ndim):
    return lambda b: (0,) * ndim


def qnet_forward(x_nchw, folded):
    """x_nchw: (B, 4, 16, 16) f32 -> (B, 16) f32."""
    B = x_nchw.shape[0]
    p1 = build_p1(x_nchw)                                        # (B, 4, 1024)

    in_specs = [pl.BlockSpec((1, 4, 1024), lambda b: (b, 0, 0))]
    for name in _WEIGHT_ORDER:
        a = folded[name]
        in_specs.append(pl.BlockSpec(a.shape, _const_index_map(a.ndim)))

    out = pl.pallas_call(
        _qnet_kernel,
        grid=(B,),
        in_specs=in_specs,
        out_specs=pl.BlockSpec((1, 1, 16), lambda b: (b, 0, 0)),
        out_shape=jax.ShapeDtypeStruct((B, 1, 16), jnp.float32),
        scratch_shapes=[pltpu.VMEM((6, 512), jnp.float32)],
        compiler_params=pltpu.CompilerParams(
            dimension_semantics=("parallel",)),
    )(p1, *[folded[n] for n in _WEIGHT_ORDER])
    return out.reshape(B, 16)


# ----------------------------------------------------------------------------
# Deterministic parameter init (PyTorch-style uniform fan-in bounds)
# ----------------------------------------------------------------------------
def _init_conv(key, cin, cout, kh, kw):
    k1, k2 = jax.random.split(key)
    fan_in = cin * kh * kw
    bound = 1.0 / np.sqrt(float(fan_in))
    w = jax.random.uniform(k1, (cout, cin, kh, kw), jnp.float32, -bound, bound)
    b = jax.random.uniform(k2, (cout,), jnp.float32, -bound, bound)
    return w, b


def init_qnet_params(key, input_dim=4, dim=32, input_size=16,
                     n_downsample=2, inform_dim=8):
    keys = jax.random.split(key, 6)
    params = {}
    params["c1_w"], params["c1_b"] = _init_conv(keys[0], input_dim, dim, 4, 4)
    params["c2_w"], params["c2_b"] = _init_conv(keys[1], dim, 2 * dim, 4, 4)
    d = 2 * dim
    params["r1_w"], params["r1_b"] = _init_conv(keys[2], d, d, 3, 3)
    params["r2_w"], params["r2_b"] = _init_conv(keys[3], d, d, 3, 3)
    kglob = input_size // (2 ** n_downsample)
    params["c3_w"], params["c3_b"] = _init_conv(keys[4], d, 128, kglob, kglob)
    params["c4_w"], params["c4_b"] = _init_conv(keys[5], 128, inform_dim * 2, 1, 1)
    return params


# ----------------------------------------------------------------------------
# Pure-JAX f32 reference (mirrors the PyTorch module) for correctness check
# ----------------------------------------------------------------------------
def ref_forward(x_nchw, p):
    def conv(x, w, b, stride, pad):
        y = jax.lax.conv_general_dilated(
            x, w, window_strides=(stride, stride),
            padding=[(pad, pad), (pad, pad)],
            dimension_numbers=("NCHW", "OIHW", "NCHW"),
            precision=jax.lax.Precision.HIGHEST)
        return y + b[None, :, None, None]

    r = jax.nn.relu
    h = r(conv(x_nchw, p["c1_w"], p["c1_b"], 2, 1))
    h = r(conv(h, p["c2_w"], p["c2_b"], 2, 1))
    res = h
    t = r(conv(h, p["r1_w"], p["r1_b"], 1, 1))
    h = conv(t, p["r2_w"], p["r2_b"], 1, 1) + res
    h = r(conv(h, p["c3_w"], p["c3_b"], 1, 0))
    h = conv(h, p["c4_w"], p["c4_b"], 1, 0)
    return h.reshape(h.shape[0], -1)


if __name__ == "__main__":
    key = jax.random.PRNGKey(0)
    k_inp, k_par = jax.random.split(key)

    B, C, H, W = 2, 4, 16, 16
    x = jax.random.normal(k_inp, (B, C, H, W), dtype=jnp.float32)

    params = init_qnet_params(k_par, input_dim=C, dim=32, input_size=H,
                              n_downsample=2, inform_dim=8)
    folded = fold_qnet_params(params)

    run = jax.jit(qnet_forward)
    out = jax.block_until_ready(run(x, folded))

    assert out.shape == (B, 16), out.shape
    assert np.isfinite(np.asarray(out)).all()

    ref = jax.block_until_ready(ref_forward(x, params))
    max_err = float(jnp.max(jnp.abs(out - ref)))
    max_ref = float(jnp.max(jnp.abs(ref)))
    # bf16-operand matmuls vs f32 reference: expect ~1% error, allow 10%.
    assert max_err <= 0.1 * max_ref + 2e-3, (max_err, max_ref)

    print("KERNEL_OK")
</pallas_src>

<mosaic_0001>
module attributes {stable_mosaic.version = 11 : i64} {
  func.func @_qnet_kernel(%arg0: i32, %arg1: memref<1x4x1024xf32, #tpu.memory_space<vmem>>, %arg2: memref<256x128xbf16, #tpu.memory_space<vmem>>, %arg3: memref<1x512xf32, #tpu.memory_space<vmem>>, %arg4: memref<3x512x256xbf16, #tpu.memory_space<vmem>>, %arg5: memref<1x256xf32, #tpu.memory_space<vmem>>, %arg6: memref<3x256x256xbf16, #tpu.memory_space<vmem>>, %arg7: memref<1x256xf32, #tpu.memory_space<vmem>>, %arg8: memref<3x256x256xbf16, #tpu.memory_space<vmem>>, %arg9: memref<1x256xf32, #tpu.memory_space<vmem>>, %arg10: memref<4x256x128xbf16, #tpu.memory_space<vmem>>, %arg11: memref<1x128xf32, #tpu.memory_space<vmem>>, %arg12: memref<128x16xbf16, #tpu.memory_space<vmem>>, %arg13: memref<1x16xf32, #tpu.memory_space<vmem>>, %arg14: memref<1x1x16xf32, #tpu.memory_space<vmem>>, %arg15: memref<6x512xf32, #tpu.memory_space<vmem>>) attributes {dimension_semantics = [#tpu.dimension_semantics<parallel>], iteration_bounds = array<i64: 2>, scalar_prefetch = 0 : i64, scratch_operands = 1 : i64, tpu.core_type = #tpu.core_type<tc>, window_params = [{transform_indices = @transform_0, window_bounds = array<i64: 1, 4, 1024>}, {pipeline_mode = #tpu.pipeline_mode<synchronous>, transform_indices = @transform_1, window_bounds = array<i64: 256, 128>}, {pipeline_mode = #tpu.pipeline_mode<synchronous>, transform_indices = @transform_2, window_bounds = array<i64: 1, 512>}, {pipeline_mode = #tpu.pipeline_mode<synchronous>, transform_indices = @transform_3, window_bounds = array<i64: 3, 512, 256>}, {pipeline_mode = #tpu.pipeline_mode<synchronous>, transform_indices = @transform_4, window_bounds = array<i64: 1, 256>}, {pipeline_mode = #tpu.pipeline_mode<synchronous>, transform_indices = @transform_5, window_bounds = array<i64: 3, 256, 256>}, {pipeline_mode = #tpu.pipeline_mode<synchronous>, transform_indices = @transform_6, window_bounds = array<i64: 1, 256>}, {pipeline_mode = #tpu.pipeline_mode<synchronous>, transform_indices = @transform_7, window_bounds = array<i64: 3, 256, 256>}, {pipeline_mode = #tpu.pipeline_mode<synchronous>, transform_indices = @transform_8, window_bounds = array<i64: 1, 256>}, {pipeline_mode = #tpu.pipeline_mode<synchronous>, transform_indices = @transform_9, window_bounds = array<i64: 4, 256, 128>}, {pipeline_mode = #tpu.pipeline_mode<synchronous>, transform_indices = @transform_10, window_bounds = array<i64: 1, 128>}, {pipeline_mode = #tpu.pipeline_mode<synchronous>, transform_indices = @transform_11, window_bounds = array<i64: 128, 16>}, {pipeline_mode = #tpu.pipeline_mode<synchronous>, transform_indices = @transform_12, window_bounds = array<i64: 1, 16>}, {transform_indices = @transform_13, window_bounds = array<i64: 1, 1, 16>}]} {
    %cst = arith.constant 0.000000e+00 : f32
    %0 = vector.broadcast %cst : f32 to vector<6x512xf32>
    %c0 = arith.constant 0 : index
    %c0_0 = arith.constant 0 : index
    %1 = vector.load %arg15[%c0, %c0_0] : memref<6x512xf32, #tpu.memory_space<vmem>>, vector<6x512xf32>
    tpu.vector_store %arg15[%c0, %c0_0], %0 {strides = array<i32>} : memref<6x512xf32, #tpu.memory_space<vmem>>, vector<6x512xf32>,
    %c0_1 = arith.constant 0 : index
    %c0_2 = arith.constant 0 : index
    %c0_3 = arith.constant 0 : index
    %2 = vector.load %arg1[%c0_1, %c0_2, %c0_3] : memref<1x4x1024xf32, #tpu.memory_space<vmem>>, vector<1x4x256xf32>
    %3 = vector.shape_cast %2 : vector<1x4x256xf32> to vector<4x256xf32>
    %4 = arith.truncf %3 : vector<4x256xf32> to vector<4x256xbf16>
    %c0_4 = arith.constant 0 : index
    %c0_5 = arith.constant 0 : index
    %5 = vector.load %arg2[%c0_4, %c0_5] : memref<256x128xbf16, #tpu.memory_space<vmem>>, vector<256x128xbf16>
    %cst_6 = arith.constant dense<0.000000e+00> : vector<4x128xf32>
    %6 = tpu.matmul %4, %5, %cst_6 {dimension_numbers = #tpu.dot_dimension_numbers<[1], [0], [0], [1], [0, 0, 1, 1], [], []>} : vector<4x256xbf16>, vector<256x128xbf16>, vector<4x128xf32> -> vector<4x128xf32>
    %c0_7 = arith.constant 0 : index
    %c0_8 = arith.constant 0 : index
    %7 = vector.load %arg3[%c0_7, %c0_8] : memref<1x512xf32, #tpu.memory_space<vmem>>, vector<1x128xf32>
    %8 = vector.broadcast %7 : vector<1x128xf32> to vector<4x128xf32>
    %9 = arith.addf %6, %8 : vector<4x128xf32>
    %cst_9 = arith.constant 0.000000e+00 : f32
    %10 = vector.broadcast %cst_9 : f32 to vector<4x128xf32>
    %11 = arith.maximumf %9, %10 : vector<4x128xf32>
    %c1 = arith.constant 1 : index
    %c0_10 = arith.constant 0 : index
    %12 = vector.load %arg15[%c1, %c0_10] : memref<6x512xf32, #tpu.memory_space<vmem>>, vector<4x128xf32>
    tpu.vector_store %arg15[%c1, %c0_10], %11 {strides = array<i32>} : memref<6x512xf32, #tpu.memory_space<vmem>>, vector<4x128xf32>,
    %c0_11 = arith.constant 0 : index
    %c0_12 = arith.constant 0 : index
    %c256 = arith.constant 256 : index
    %13 = vector.load %arg1[%c0_11, %c0_12, %c256] : memref<1x4x1024xf32, #tpu.memory_space<vmem>>, vector<1x4x256xf32>
    %14 = vector.shape_cast %13 : vector<1x4x256xf32> to vector<4x256xf32>
    %15 = arith.truncf %14 : vector<4x256xf32> to vector<4x256xbf16>
    %c0_13 = arith.constant 0 : index
    %c0_14 = arith.constant 0 : index
    %16 = vector.load %arg2[%c0_13, %c0_14] : memref<256x128xbf16, #tpu.memory_space<vmem>>, vector<256x128xbf16>
    %cst_15 = arith.constant dense<0.000000e+00> : vector<4x128xf32>
    %17 = tpu.matmul %15, %16, %cst_15 {dimension_numbers = #tpu.dot_dimension_numbers<[1], [0], [0], [1], [0, 0, 1, 1], [], []>} : vector<4x256xbf16>, vector<256x128xbf16>, vector<4x128xf32> -> vector<4x128xf32>
    %c0_16 = arith.constant 0 : index
    %c128 = arith.constant 128 : index
    %18 = vector.load %arg3[%c0_16, %c128] : memref<1x512xf32, #tpu.memory_space<vmem>>, vector<1x128xf32>
    %19 = vector.broadcast %18 : vector<1x128xf32> to vector<4x128xf32>
    %20 = arith.addf %17, %19 : vector<4x128xf32>
    %cst_17 = arith.constant 0.000000e+00 : f32
    %21 = vector.broadcast %cst_17 : f32 to vector<4x128xf32>
    %22 = arith.maximumf %20, %21 : vector<4x128xf32>
    %c1_18 = arith.constant 1 : index
    %c128_19 = arith.constant 128 : index
    %23 = vector.load %arg15[%c1_18, %c128_19] : memref<6x512xf32, #tpu.memory_space<vmem>>, vector<4x128xf32>
    tpu.vector_store %arg15[%c1_18, %c128_19], %22 {strides = array<i32>} : memref<6x512xf32, #tpu.memory_space<vmem>>, vector<4x128xf32>,
    %c0_20 = arith.constant 0 : index
    %c0_21 = arith.constant 0 : index
    %c512 = arith.constant 512 : index
    %24 = vector.load %arg1[%c0_20, %c0_21, %c512] : memref<1x4x1024xf32, #tpu.memory_space<vmem>>, vector<1x4x256xf32>
    %25 = vector.shape_cast %24 : vector<1x4x256xf32> to vector<4x256xf32>
    %26 = arith.truncf %25 : vector<4x256xf32> to vector<4x256xbf16>
    %c0_22 = arith.constant 0 : index
    %c0_23 = arith.constant 0 : index
    %27 = vector.load %arg2[%c0_22, %c0_23] : memref<256x128xbf16, #tpu.memory_space<vmem>>, vector<256x128xbf16>
    %cst_24 = arith.constant dense<0.000000e+00> : vector<4x128xf32>
    %28 = tpu.matmul %26, %27, %cst_24 {dimension_numbers = #tpu.dot_dimension_numbers<[1], [0], [0], [1], [0, 0, 1, 1], [], []>} : vector<4x256xbf16>, vector<256x128xbf16>, vector<4x128xf32> -> vector<4x128xf32>
    %c0_25 = arith.constant 0 : index
    %c256_26 = arith.constant 256 : index
    %29 = vector.load %arg3[%c0_25, %c256_26] : memref<1x512xf32, #tpu.memory_space<vmem>>, vector<1x128xf32>
    %30 = vector.broadcast %29 : vector<1x128xf32> to vector<4x128xf32>
    %31 = arith.addf %28, %30 : vector<4x128xf32>
    %cst_27 = arith.constant 0.000000e+00 : f32
    %32 = vector.broadcast %cst_27 : f32 to vector<4x128xf32>
    %33 = arith.maximumf %31, %32 : vector<4x128xf32>
    %c1_28 = arith.constant 1 : index
    %c256_29 = arith.constant 256 : index
    %34 = vector.load %arg15[%c1_28, %c256_29] : memref<6x512xf32, #tpu.memory_space<vmem>>, vector<4x128xf32>
    tpu.vector_store %arg15[%c1_28, %c256_29], %33 {strides = array<i32>} : memref<6x512xf32, #tpu.memory_space<vmem>>, vector<4x128xf32>,
    %c0_30 = arith.constant 0 : index
    %c0_31 = arith.constant 0 : index
    %c768 = arith.constant 768 : index
    %35 = vector.load %arg1[%c0_30, %c0_31, %c768] : memref<1x4x1024xf32, #tpu.memory_space<vmem>>, vector<1x4x256xf32>
    %36 = vector.shape_cast %35 : vector<1x4x256xf32> to vector<4x256xf32>
    %37 = arith.truncf %36 : vector<4x256xf32> to vector<4x256xbf16>
    %c0_32 = arith.constant 0 : index
    %c0_33 = arith.constant 0 : index
    %38 = vector.load %arg2[%c0_32, %c0_33] : memref<256x128xbf16, #tpu.memory_space<vmem>>, vector<256x128xbf16>
    %cst_34 = arith.constant dense<0.000000e+00> : vector<4x128xf32>
    %39 = tpu.matmul %37, %38, %cst_34 {dimension_numbers = #tpu.dot_dimension_numbers<[1], [0], [0], [1], [0, 0, 1, 1], [], []>} : vector<4x256xbf16>, vector<256x128xbf16>, vector<4x128xf32> -> vector<4x128xf32>
    %c0_35 = arith.constant 0 : index
    %c384 = arith.constant 384 : index
    %40 = vector.load %arg3[%c0_35, %c384] : memref<1x512xf32, #tpu.memory_space<vmem>>, vector<1x128xf32>
    %41 = vector.broadcast %40 : vector<1x128xf32> to vector<4x128xf32>
    %42 = arith.addf %39, %41 : vector<4x128xf32>
    %cst_36 = arith.constant 0.000000e+00 : f32
    %43 = vector.broadcast %cst_36 : f32 to vector<4x128xf32>
    %44 = arith.maximumf %42, %43 : vector<4x128xf32>
    %c1_37 = arith.constant 1 : index
    %c384_38 = arith.constant 384 : index
    %45 = vector.load %arg15[%c1_37, %c384_38] : memref<6x512xf32, #tpu.memory_space<vmem>>, vector<4x128xf32>
    tpu.vector_store %arg15[%c1_37, %c384_38], %44 {strides = array<i32>} : memref<6x512xf32, #tpu.memory_space<vmem>>, vector<4x128xf32>,
    %cst_39 = arith.constant 0.000000e+00 : f32
    %46 = vector.broadcast %cst_39 : f32 to vector<4x256xf32>
    %c0_40 = arith.constant 0 : index
    %c0_41 = arith.constant 0 : index
    %47 = vector.load %arg15[%c0_40, %c0_41] : memref<6x512xf32, #tpu.memory_space<vmem>>, vector<4x512xf32>
    %48 = arith.truncf %47 : vector<4x512xf32> to vector<4x512xbf16>
    %c0_42 = arith.constant 0 : index
    %c0_43 = arith.constant 0 : index
    %c0_44 = arith.constant 0 : index
    %49 = vector.load %arg4[%c0_42, %c0_43, %c0_44] : memref<3x512x256xbf16, #tpu.memory_space<vmem>>, vector<1x512x256xbf16>
    %50 = vector.shape_cast %49 : vector<1x512x256xbf16> to vector<512x256xbf16>
    %cst_45 = arith.constant dense<0.000000e+00> : vector<4x256xf32>
    %51 = tpu.matmul %48, %50, %cst_45 {dimension_numbers = #tpu.dot_dimension_numbers<[1], [0], [0], [1], [0, 0, 1, 1], [], []>} : vector<4x512xbf16>, vector<512x256xbf16>, vector<4x256xf32> -> vector<4x256xf32>
    %52 = arith.addf %46, %51 : vector<4x256xf32>
    %c1_46 = arith.constant 1 : index
    %c0_47 = arith.constant 0 : index
    %53 = vector.load %arg15[%c1_46, %c0_47] : memref<6x512xf32, #tpu.memory_space<vmem>>, vector<4x512xf32>
    %54 = arith.truncf %53 : vector<4x512xf32> to vector<4x512xbf16>
    %c1_48 = arith.constant 1 : index
    %c0_49 = arith.constant 0 : index
    %c0_50 = arith.constant 0 : index
    %55 = vector.load %arg4[%c1_48, %c0_49, %c0_50] : memref<3x512x256xbf16, #tpu.memory_space<vmem>>, vector<1x512x256xbf16>
    %56 = vector.shape_cast %55 : vector<1x512x256xbf16> to vector<512x256xbf16>
    %cst_51 = arith.constant dense<0.000000e+00> : vector<4x256xf32>
    %57 = tpu.matmul %54, %56, %cst_51 {dimension_numbers = #tpu.dot_dimension_numbers<[1], [0], [0], [1], [0, 0, 1, 1], [], []>} : vector<4x512xbf16>, vector<512x256xbf16>, vector<4x256xf32> -> vector<4x256xf32>
    %58 = arith.addf %52, %57 : vector<4x256xf32>
    %c2 = arith.constant 2 : index
    %c0_52 = arith.constant 0 : index
    %59 = vector.load %arg15[%c2, %c0_52] : memref<6x512xf32, #tpu.memory_space<vmem>>, vector<4x512xf32>
    %60 = arith.truncf %59 : vector<4x512xf32> to vector<4x512xbf16>
    %c2_53 = arith.constant 2 : index
    %c0_54 = arith.constant 0 : index
    %c0_55 = arith.constant 0 : index
    %61 = vector.load %arg4[%c2_53, %c0_54, %c0_55] : memref<3x512x256xbf16, #tpu.memory_space<vmem>>, vector<1x512x256xbf16>
    %62 = vector.shape_cast %61 : vector<1x512x256xbf16> to vector<512x256xbf16>
    %cst_56 = arith.constant dense<0.000000e+00> : vector<4x256xf32>
    %63 = tpu.matmul %60, %62, %cst_56 {dimension_numbers = #tpu.dot_dimension_numbers<[1], [0], [0], [1], [0, 0, 1, 1], [], []>} : vector<4x512xbf16>, vector<512x256xbf16>, vector<4x256xf32> -> vector<4x256xf32>
    %64 = arith.addf %58, %63 : vector<4x256xf32>
    %c0_57 = arith.constant 0 : index
    %c0_58 = arith.constant 0 : index
    %65 = vector.load %arg5[%c0_57, %c0_58] : memref<1x256xf32, #tpu.memory_space<vmem>>, vector<1x256xf32>
    %66 = vector.broadcast %65 : vector<1x256xf32> to vector<4x256xf32>
    %67 = arith.addf %64, %66 : vector<4x256xf32>
    %cst_59 = arith.constant 0.000000e+00 : f32
    %68 = vector.broadcast %cst_59 : f32 to vector<4x256xf32>
    %69 = arith.maximumf %67, %68 : vector<4x256xf32>
    %c1_60 = arith.constant 1 : index
    %c0_61 = arith.constant 0 : index
    %70 = vector.load %arg15[%c1_60, %c0_61] : memref<6x512xf32, #tpu.memory_space<vmem>>, vector<4x256xf32>
    tpu.vector_store %arg15[%c1_60, %c0_61], %69 {strides = array<i32>} : memref<6x512xf32, #tpu.memory_space<vmem>>, vector<4x256xf32>,
    %cst_62 = arith.constant 0.000000e+00 : f32
    %71 = vector.broadcast %cst_62 : f32 to vector<4x256xf32>
    %c0_63 = arith.constant 0 : index
    %c0_64 = arith.constant 0 : index
    %72 = vector.load %arg15[%c0_63, %c0_64] : memref<6x512xf32, #tpu.memory_space<vmem>>, vector<4x256xf32>
    %73 = arith.truncf %72 : vector<4x256xf32> to vector<4x256xbf16>
    %c0_65 = arith.constant 0 : index
    %c0_66 = arith.constant 0 : index
    %c0_67 = arith.constant 0 : index
    %74 = vector.load %arg6[%c0_65, %c0_66, %c0_67] : memref<3x256x256xbf16, #tpu.memory_space<vmem>>, vector<1x256x256xbf16>
    %75 = vector.shape_cast %74 : vector<1x256x256xbf16> to vector<256x256xbf16>
    %cst_68 = arith.constant dense<0.000000e+00> : vector<4x256xf32>
    %76 = tpu.matmul %73, %75, %cst_68 {dimension_numbers = #tpu.dot_dimension_numbers<[1], [0], [0], [1], [0, 0, 1, 1], [], []>} : vector<4x256xbf16>, vector<256x256xbf16>, vector<4x256xf32> -> vector<4x256xf32>
    %77 = arith.addf %71, %76 : vector<4x256xf32>
    %c1_69 = arith.constant 1 : index
    %c0_70 = arith.constant 0 : index
    %78 = vector.load %arg15[%c1_69, %c0_70] : memref<6x512xf32, #tpu.memory_space<vmem>>, vector<4x256xf32>
    %79 = arith.truncf %78 : vector<4x256xf32> to vector<4x256xbf16>
    %c1_71 = arith.constant 1 : index
    %c0_72 = arith.constant 0 : index
    %c0_73 = arith.constant 0 : index
    %80 = vector.load %arg6[%c1_71, %c0_72, %c0_73] : memref<3x256x256xbf16, #tpu.memory_space<vmem>>, vector<1x256x256xbf16>
    %81 = vector.shape_cast %80 : vector<1x256x256xbf16> to vector<256x256xbf16>
    %cst_74 = arith.constant dense<0.000000e+00> : vector<4x256xf32>
    %82 = tpu.matmul %79, %81, %cst_74 {dimension_numbers = #tpu.dot_dimension_numbers<[1], [0], [0], [1], [0, 0, 1, 1], [], []>} : vector<4x256xbf16>, vector<256x256xbf16>, vector<4x256xf32> -> vector<4x256xf32>
    %83 = arith.addf %77, %82 : vector<4x256xf32>
    %c2_75 = arith.constant 2 : index
    %c0_76 = arith.constant 0 : index
    %84 = vector.load %arg15[%c2_75, %c0_76] : memref<6x512xf32, #tpu.memory_space<vmem>>, vector<4x256xf32>
    %85 = arith.truncf %84 : vector<4x256xf32> to vector<4x256xbf16>
    %c2_77 = arith.constant 2 : index
    %c0_78 = arith.constant 0 : index
    %c0_79 = arith.constant 0 : index
    %86 = vector.load %arg6[%c2_77, %c0_78, %c0_79] : memref<3x256x256xbf16, #tpu.memory_space<vmem>>, vector<1x256x256xbf16>
    %87 = vector.shape_cast %86 : vector<1x256x256xbf16> to vector<256x256xbf16>
    %cst_80 = arith.constant dense<0.000000e+00> : vector<4x256xf32>
    %88 = tpu.matmul %85, %87, %cst_80 {dimension_numbers = #tpu.dot_dimension_numbers<[1], [0], [0], [1], [0, 0, 1, 1], [], []>} : vector<4x256xbf16>, vector<256x256xbf16>, vector<4x256xf32> -> vector<4x256xf32>
    %89 = arith.addf %83, %88 : vector<4x256xf32>
    %c0_81 = arith.constant 0 : index
    %c0_82 = arith.constant 0 : index
    %90 = vector.load %arg7[%c0_81, %c0_82] : memref<1x256xf32, #tpu.memory_space<vmem>>, vector<1x256xf32>
    %91 = vector.broadcast %90 : vector<1x256xf32> to vector<4x256xf32>
    %92 = arith.addf %89, %91 : vector<4x256xf32>
    %cst_83 = arith.constant 0.000000e+00 : f32
    %93 = vector.broadcast %cst_83 : f32 to vector<4x256xf32>
    %94 = arith.maximumf %92, %93 : vector<4x256xf32>
    %c1_84 = arith.constant 1 : index
    %c0_85 = arith.constant 0 : index
    %95 = vector.load %arg15[%c1_84, %c0_85] : memref<6x512xf32, #tpu.memory_space<vmem>>, vector<4x256xf32>
    tpu.vector_store %arg15[%c1_84, %c0_85], %94 {strides = array<i32>} : memref<6x512xf32, #tpu.memory_space<vmem>>, vector<4x256xf32>,
    %cst_86 = arith.constant 0.000000e+00 : f32
    %96 = vector.broadcast %cst_86 : f32 to vector<4x256xf32>
    %c0_87 = arith.constant 0 : index
    %c0_88 = arith.constant 0 : index
    %97 = vector.load %arg15[%c0_87, %c0_88] : memref<6x512xf32, #tpu.memory_space<vmem>>, vector<4x256xf32>
    %98 = arith.truncf %97 : vector<4x256xf32> to vector<4x256xbf16>
    %c0_89 = arith.constant 0 : index
    %c0_90 = arith.constant 0 : index
    %c0_91 = arith.constant 0 : index
    %99 = vector.load %arg8[%c0_89, %c0_90, %c0_91] : memref<3x256x256xbf16, #tpu.memory_space<vmem>>, vector<1x256x256xbf16>
    %100 = vector.shape_cast %99 : vector<1x256x256xbf16> to vector<256x256xbf16>
    %cst_92 = arith.constant dense<0.000000e+00> : vector<4x256xf32>
    %101 = tpu.matmul %98, %100, %cst_92 {dimension_numbers = #tpu.dot_dimension_numbers<[1], [0], [0], [1], [0, 0, 1, 1], [], []>} : vector<4x256xbf16>, vector<256x256xbf16>, vector<4x256xf32> -> vector<4x256xf32>
    %102 = arith.addf %96, %101 : vector<4x256xf32>
    %c1_93 = arith.constant 1 : index
    %c0_94 = arith.constant 0 : index
    %103 = vector.load %arg15[%c1_93, %c0_94] : memref<6x512xf32, #tpu.memory_space<vmem>>, vector<4x256xf32>
    %104 = arith.truncf %103 : vector<4x256xf32> to vector<4x256xbf16>
    %c1_95 = arith.constant 1 : index
    %c0_96 = arith.constant 0 : index
    %c0_97 = arith.constant 0 : index
    %105 = vector.load %arg8[%c1_95, %c0_96, %c0_97] : memref<3x256x256xbf16, #tpu.memory_space<vmem>>, vector<1x256x256xbf16>
    %106 = vector.shape_cast %105 : vector<1x256x256xbf16> to vector<256x256xbf16>
    %cst_98 = arith.constant dense<0.000000e+00> : vector<4x256xf32>
    %107 = tpu.matmul %104, %106, %cst_98 {dimension_numbers = #tpu.dot_dimension_numbers<[1], [0], [0], [1], [0, 0, 1, 1], [], []>} : vector<4x256xbf16>, vector<256x256xbf16>, vector<4x256xf32> -> vector<4x256xf32>
    %108 = arith.addf %102, %107 : vector<4x256xf32>
    %c2_99 = arith.constant 2 : index
    %c0_100 = arith.constant 0 : index
    %109 = vector.load %arg15[%c2_99, %c0_100] : memref<6x512xf32, #tpu.memory_space<vmem>>, vector<4x256xf32>
    %110 = arith.truncf %109 : vector<4x256xf32> to vector<4x256xbf16>
    %c2_101 = arith.constant 2 : index
    %c0_102 = arith.constant 0 : index
    %c0_103 = arith.constant 0 : index
    %111 = vector.load %arg8[%c2_101, %c0_102, %c0_103] : memref<3x256x256xbf16, #tpu.memory_space<vmem>>, vector<1x256x256xbf16>
    %112 = vector.shape_cast %111 : vector<1x256x256xbf16> to vector<256x256xbf16>
    %cst_104 = arith.constant dense<0.000000e+00> : vector<4x256xf32>
    %113 = tpu.matmul %110, %112, %cst_104 {dimension_numbers = #tpu.dot_dimension_numbers<[1], [0], [0], [1], [0, 0, 1, 1], [], []>} : vector<4x256xbf16>, vector<256x256xbf16>, vector<4x256xf32> -> vector<4x256xf32>
    %114 = arith.addf %108, %113 : vector<4x256xf32>
    %c0_105 = arith.constant 0 : index
    %c0_106 = arith.constant 0 : index
    %115 = vector.load %arg9[%c0_105, %c0_106] : memref<1x256xf32, #tpu.memory_space<vmem>>, vector<1x256xf32>
    %116 = vector.broadcast %115 : vector<1x256xf32> to vector<4x256xf32>
    %117 = arith.addf %114, %116 : vector<4x256xf32>
    %118 = arith.addf %117, %69 : vector<4x256xf32>
    %c0_107 = arith.constant 0 : index
    %c0_108 = arith.constant 0 : index
    %119 = vector.load %arg11[%c0_107, %c0_108] : memref<1x128xf32, #tpu.memory_space<vmem>>, vector<1x128xf32>
    %120 = vector.extract_strided_slice %118 {offsets = [0, 0], sizes = [1, 256], strides = [1, 1]} : vector<4x256xf32> to vector<1x256xf32>
    %121 = arith.truncf %120 : vector<1x256xf32> to vector<1x256xbf16>
    %c0_109 = arith.constant 0 : index
    %c0_110 = arith.constant 0 : index
    %c0_111 = arith.constant 0 : index
    %122 = vector.load %arg10[%c0_109, %c0_110, %c0_111] : memref<4x256x128xbf16, #tpu.memory_space<vmem>>, vector<1x256x128xbf16>
    %123 = vector.shape_cast %122 : vector<1x256x128xbf16> to vector<256x128xbf16>
    %cst_112 = arith.constant dense<0.000000e+00> : vector<1x128xf32>
    %124 = tpu.matmul %121, %123, %cst_112 {dimension_numbers = #tpu.dot_dimension_numbers<[1], [0], [0], [1], [0, 0, 1, 1], [], []>} : vector<1x256xbf16>, vector<256x128xbf16>, vector<1x128xf32> -> vector<1x128xf32>
    %125 = arith.addf %119, %124 : vector<1x128xf32>
    %126 = vector.extract_strided_slice %118 {offsets = [1, 0], sizes = [1, 256], strides = [1, 1]} : vector<4x256xf32> to vector<1x256xf32>
    %127 = arith.truncf %126 : vector<1x256xf32> to vector<1x256xbf16>
    %c1_113 = arith.constant 1 : index
    %c0_114 = arith.constant 0 : index
    %c0_115 = arith.constant 0 : index
    %128 = vector.load %arg10[%c1_113, %c0_114, %c0_115] : memref<4x256x128xbf16, #tpu.memory_space<vmem>>, vector<1x256x128xbf16>
    %129 = vector.shape_cast %128 : vector<1x256x128xbf16> to vector<256x128xbf16>
    %cst_116 = arith.constant dense<0.000000e+00> : vector<1x128xf32>
    %130 = tpu.matmul %127, %129, %cst_116 {dimension_numbers = #tpu.dot_dimension_numbers<[1], [0], [0], [1], [0, 0, 1, 1], [], []>} : vector<1x256xbf16>, vector<256x128xbf16>, vector<1x128xf32> -> vector<1x128xf32>
    %131 = arith.addf %125, %130 : vector<1x128xf32>
    %132 = vector.extract_strided_slice %118 {offsets = [2, 0], sizes = [1, 256], strides = [1, 1]} : vector<4x256xf32> to vector<1x256xf32>
    %133 = arith.truncf %132 : vector<1x256xf32> to vector<1x256xbf16>
    %c2_117 = arith.constant 2 : index
    %c0_118 = arith.constant 0 : index
    %c0_119 = arith.constant 0 : index
    %134 = vector.load %arg10[%c2_117, %c0_118, %c0_119] : memref<4x256x128xbf16, #tpu.memory_space<vmem>>, vector<1x256x128xbf16>
    %135 = vector.shape_cast %134 : vector<1x256x128xbf16> to vector<256x128xbf16>
    %cst_120 = arith.constant dense<0.000000e+00> : vector<1x128xf32>
    %136 = tpu.matmul %133, %135, %cst_120 {dimension_numbers = #tpu.dot_dimension_numbers<[1], [0], [0], [1], [0, 0, 1, 1], [], []>} : vector<1x256xbf16>, vector<256x128xbf16>, vector<1x128xf32> -> vector<1x128xf32>
    %137 = arith.addf %131, %136 : vector<1x128xf32>
    %138 = vector.extract_strided_slice %118 {offsets = [3, 0], sizes = [1, 256], strides = [1, 1]} : vector<4x256xf32> to vector<1x256xf32>
    %139 = arith.truncf %138 : vector<1x256xf32> to vector<1x256xbf16>
    %c3 = arith.constant 3 : index
    %c0_121 = arith.constant 0 : index
    %c0_122 = arith.constant 0 : index
    %140 = vector.load %arg10[%c3, %c0_121, %c0_122] : memref<4x256x128xbf16, #tpu.memory_space<vmem>>, vector<1x256x128xbf16>
    %141 = vector.shape_cast %140 : vector<1x256x128xbf16> to vector<256x128xbf16>
    %cst_123 = arith.constant dense<0.000000e+00> : vector<1x128xf32>
    %142 = tpu.matmul %139, %141, %cst_123 {dimension_numbers = #tpu.dot_dimension_numbers<[1], [0], [0], [1], [0, 0, 1, 1], [], []>} : vector<1x256xbf16>, vector<256x128xbf16>, vector<1x128xf32> -> vector<1x128xf32>
    %143 = arith.addf %137, %142 : vector<1x128xf32>
    %cst_124 = arith.constant 0.000000e+00 : f32
    %144 = vector.broadcast %cst_124 : f32 to vector<1x128xf32>
    %145 = arith.maximumf %143, %144 : vector<1x128xf32>
    %146 = arith.truncf %145 : vector<1x128xf32> to vector<1x128xbf16>
    %c0_125 = arith.constant 0 : index
    %c0_126 = arith.constant 0 : index
    %147 = vector.load %arg12[%c0_125, %c0_126] : memref<128x16xbf16, #tpu.memory_space<vmem>>, vector<128x16xbf16>
    %cst_127 = arith.constant dense<0.000000e+00> : vector<1x16xf32>
    %148 = tpu.matmul %146, %147, %cst_127 {dimension_numbers = #tpu.dot_dimension_numbers<[1], [0], [0], [1], [0, 0, 1, 1], [], []>} : vector<1x128xbf16>, vector<128x16xbf16>, vector<1x16xf32> -> vector<1x16xf32>
    %c0_128 = arith.constant 0 : index
    %c0_129 = arith.constant 0 : index
    %149 = vector.load %arg13[%c0_128, %c0_129] : memref<1x16xf32, #tpu.memory_space<vmem>>, vector<1x16xf32>
    %150 = arith.addf %148, %149 : vector<1x16xf32>
    %151 = vector.shape_cast %150 : vector<1x16xf32> to vector<1x1x16xf32>
    %c0_130 = arith.constant 0 : index
    %c0_131 = arith.constant 0 : index
    %c0_132 = arith.constant 0 : index
    %152 = vector.load %arg14[%c0_130, %c0_131, %c0_132] : memref<1x1x16xf32, #tpu.memory_space<vmem>>, vector<1x1x16xf32>
    tpu.vector_store %arg14[%c0_130, %c0_131, %c0_132], %151 {strides = array<i32>} : memref<1x1x16xf32, #tpu.memory_space<vmem>>, vector<1x1x16xf32>,
    return
  }
  func.func @transform_0(%arg0: i32) -> (i32, i32, i32) {
    %c0_i32 = arith.constant 0 : i32
    %c0_i32_0 = arith.constant 0 : i32
    %c0_i32_1 = arith.constant 0 : i32
    return %arg0, %c0_i32, %c0_i32_0 : i32, i32, i32
  }
  func.func @transform_1(%arg0: i32) -> (i32, i32) {
    %c0_i32 = arith.constant 0 : i32
    %c0_i32_0 = arith.constant 0 : i32
    %c0_i32_1 = arith.constant 0 : i32
    return %c0_i32, %c0_i32_0 : i32, i32
  }
  func.func @transform_2(%arg0: i32) -> (i32, i32) {
    %c0_i32 = arith.constant 0 : i32
    %c0_i32_0 = arith.constant 0 : i32
    %c0_i32_1 = arith.constant 0 : i32
    return %c0_i32, %c0_i32_0 : i32, i32
  }
  func.func @transform_3(%arg0: i32) -> (i32, i32, i32) {
    %c0_i32 = arith.constant 0 : i32
    %c0_i32_0 = arith.constant 0 : i32
    %c0_i32_1 = arith.constant 0 : i32
    %c0_i32_2 = arith.constant 0 : i32
    return %c0_i32, %c0_i32_0, %c0_i32_1 : i32, i32, i32
  }
  func.func @transform_4(%arg0: i32) -> (i32, i32) {
    %c0_i32 = arith.constant 0 : i32
    %c0_i32_0 = arith.constant 0 : i32
    %c0_i32_1 = arith.constant 0 : i32
    return %c0_i32, %c0_i32_0 : i32, i32
  }
  func.func @transform_5(%arg0: i32) -> (i32, i32, i32) {
    %c0_i32 = arith.constant 0 : i32
    %c0_i32_0 = arith.constant 0 : i32
    %c0_i32_1 = arith.constant 0 : i32
    %c0_i32_2 = arith.constant 0 : i32
    return %c0_i32, %c0_i32_0, %c0_i32_1 : i32, i32, i32
  }
  func.func @transform_6(%arg0: i32) -> (i32, i32) {
    %c0_i32 = arith.constant 0 : i32
    %c0_i32_0 = arith.constant 0 : i32
    %c0_i32_1 = arith.constant 0 : i32
    return %c0_i32, %c0_i32_0 : i32, i32
  }
  func.func @transform_7(%arg0: i32) -> (i32, i32, i32) {
    %c0_i32 = arith.constant 0 : i32
    %c0_i32_0 = arith.constant 0 : i32
    %c0_i32_1 = arith.constant 0 : i32
    %c0_i32_2 = arith.constant 0 : i32
    return %c0_i32, %c0_i32_0, %c0_i32_1 : i32, i32, i32
  }
  func.func @transform_8(%arg0: i32) -> (i32, i32) {
    %c0_i32 = arith.constant 0 : i32
    %c0_i32_0 = arith.constant 0 : i32
    %c0_i32_1 = arith.constant 0 : i32
    return %c0_i32, %c0_i32_0 : i32, i32
  }
  func.func @transform_9(%arg0: i32) -> (i32, i32, i32) {
    %c0_i32 = arith.constant 0 : i32
    %c0_i32_0 = arith.constant 0 : i32
    %c0_i32_1 = arith.constant 0 : i32
    %c0_i32_2 = arith.constant 0 : i32
    return %c0_i32, %c0_i32_0, %c0_i32_1 : i32, i32, i32
  }
  func.func @transform_10(%arg0: i32) -> (i32, i32) {
    %c0_i32 = arith.constant 0 : i32
    %c0_i32_0 = arith.constant 0 : i32
    %c0_i32_1 = arith.constant 0 : i32
    return %c0_i32, %c0_i32_0 : i32, i32
  }
  func.func @transform_11(%arg0: i32) -> (i32, i32) {
    %c0_i32 = arith.constant 0 : i32
    %c0_i32_0 = arith.constant 0 : i32
    %c0_i32_1 = arith.constant 0 : i32
    return %c0_i32, %c0_i32_0 : i32, i32
  }
  func.func @transform_12(%arg0: i32) -> (i32, i32) {
    %c0_i32 = arith.constant 0 : i32
    %c0_i32_0 = arith.constant 0 : i32
    %c0_i32_1 = arith.constant 0 : i32
    return %c0_i32, %c0_i32_0 : i32, i32
  }
  func.func @transform_13(%arg0: i32) -> (i32, i32, i32) {
    %c0_i32 = arith.constant 0 : i32
    %c0_i32_0 = arith.constant 0 : i32
    %c0_i32_1 = arith.constant 0 : i32
    return %arg0, %c0_i32, %c0_i32_0 : i32, i32, i32
  }
}

</mosaic_0001>

<llo_original>
// kernel: qnet_forward.1
$region0: #{qnet_forward.1}
  #allocation0 [shape = 'u32[]', space=smem, size = 0x4, offset = 0x4, fixed_abs, tag = 'smem constant byte address 0x4 - core index']
  #allocation1 [shape = 'u32[72,128]{1,0:T(1,128)}', space=vmem, size = 0x9000, scoped, tag = 'internal scratch']
  #allocation2 [shape = 'f32[6,512]{1,0:T(8,128)}', space=vmem, size = 0x4000, scoped, tag = 'scratch operand']
  %s0 = inlined_call_operand.vmem [shape: f32[2,4,1024], index: 0, kind: input, shape index: {}]
  %s1 = inlined_call_operand.vmem [shape: bf16[256,128], index: 1, kind: input, shape index: {}]
  %s2 = inlined_call_operand.vmem [shape: f32[1,512], index: 2, kind: input, shape index: {}]
  %s3 = inlined_call_operand.vmem [shape: bf16[3,512,256], index: 3, kind: input, shape index: {}]
  %s4 = inlined_call_operand.vmem [shape: f32[1,256], index: 4, kind: input, shape index: {}]
  %s5 = inlined_call_operand.vmem [shape: bf16[3,256,256], index: 5, kind: input, shape index: {}]
  %s6 = inlined_call_operand.vmem [shape: f32[1,256], index: 6, kind: input, shape index: {}]
  %s7 = inlined_call_operand.vmem [shape: bf16[3,256,256], index: 7, kind: input, shape index: {}]
  %s8 = inlined_call_operand.vmem [shape: f32[1,256], index: 8, kind: input, shape index: {}]
  %s9 = inlined_call_operand.vmem [shape: bf16[4,256,128], index: 9, kind: input, shape index: {}]
  %s10 = inlined_call_operand.vmem [shape: f32[1,128], index: 10, kind: input, shape index: {}]
  %s11 = inlined_call_operand.vmem [shape: bf16[128,16], index: 11, kind: input, shape index: {}]
  %s12 = inlined_call_operand.vmem [shape: f32[1,16], index: 12, kind: input, shape index: {}]
  %s13 = inlined_call_operand.hbm [shape: f32[2,1,16], index: 13, kind: output, shape index: {}]
  %s14 = sld [smem:[#allocation0]]
  $region85: #{qnet_forward.1} parent=0
    _
  %s16 = ssub.s32 1, %s14
  %s17 = scalar_select 0, %s16, %s14
  $region1: #{qnet_forward.1} parent=0
    #allocation3 [shape = 'u8[1024]{0}', space=vmem, size = 0x400, scoped, tag = 'output window, operand 0']
    #allocation4 [shape = 's32[2]{0}', space=sflag, size = 0x8, scoped, tag = 'scoped memory for qnet_forward.1']
    %18 = vsyncpa [#allocation4], 0
    %s19 = scalar_lea.sflag [#allocation4], 1
    %20 = vsyncpa %s19, 0
    loop: start=0, step=1, limit=4
    $region2: #{qnet_forward.1} parent=1 // loop_pre_header
      _
    $region3: #{qnet_forward.1} parent=1 // loop_header
      %s22 = sphi 0, %s26
      %p23 = scmp.ge.s32.totalorder %s22, 4
      %s32 = sphi 0, %s34
      %s35 = sphi 0, %s32
      %s36 = sphi 0, %s35
      %s52 = sphi 0, %s36
      %s56 = sphi 0, %s56
      %s58 = sphi 0, %s56
      %s59 = sphi 0, %s58
      %s73 = sphi 0, %s59
      %s77 = sphi 0, %s77
      %s79 = sphi 0, %s77
      %s80 = sphi 0, %s79
      %s94 = sphi 0, %s80
      %s98 = sphi 0, %s98
      %s100 = sphi 0, %s98
      %s101 = sphi 0, %s100
      %s115 = sphi 0, %s101
      %s119 = sphi 0, %s119
      %s121 = sphi 0, %s119
      %s122 = sphi 0, %s121
      %s136 = sphi 0, %s122
      %s140 = sphi 0, %s140
      %s142 = sphi 0, %s140
      %s143 = sphi 0, %s142
      %s157 = sphi 0, %s143
      %s161 = sphi 0, %s161
      %s163 = sphi 0, %s161
      %s164 = sphi 0, %s163
      %s178 = sphi 0, %s164
      %s182 = sphi 0, %s182
      %s184 = sphi 0, %s182
      %s185 = sphi 0, %s184
      %s199 = sphi 0, %s185
      %s203 = sphi 0, %s203
      %s205 = sphi 0, %s203
      %s206 = sphi 0, %s205
      %s220 = sphi 0, %s206
      %s224 = sphi 0, %s224
      %s226 = sphi 0, %s224
      %s227 = sphi 0, %s226
      %s241 = sphi 0, %s227
      %s245 = sphi 0, %s245
      %s247 = sphi 0, %s245
      %s248 = sphi 0, %s247
      %s262 = sphi 0, %s248
      %s266 = sphi 0, %s266
      %s268 = sphi 0, %s266
      %s269 = sphi 0, %s268
      %s283 = sphi 0, %s269
      %s287 = sphi 0, %s287
      %s289 = sphi 0, %s287
      %s290 = sphi 0, %s289
      %s304 = sphi 0, %s290
      %s310 = sphi 0, %s312
      %s313 = sphi 0, %s310
      %s314 = sphi 0, %s313
      %s330 = sphi 0, %s314
    $region4: #{qnet_forward.1} parent=1 // loop_header_branch
      %25 = sbr.rel (%p23) target = $region8
    $region5: #{qnet_forward.1} parent=1 // loop_body
      %s27 = ssub.s32 %s22, 1
      %s28 = ssub.s32 %s22, 2
      %s29 = sadd.s32 %s22, 1
      %s30 = ssub.s32 %s22, %s29
      %p31 = scmp.eq.s32.totalorder %s30, 0
      %s33 = sadd.s32 %s32, 1
      %s34 = scalar_select %p31, %s32, %s33
      %p37 = pneg %p31
      %p38 = scmp.eq.s32.totalorder %s22, 1
      %p39 = por %p37, %p38
      %p40 = scmp.ne.s32.totalorder %s32, %s35
      %p41 = scmp.eq.s32.totalorder %s22, 0
      %p42 = por %p40, %p41
      %p43 = scmp.ne.s32.totalorder %s32, %s35
      %p44 = scmp.eq.s32.totalorder %s27, 1
      %p45 = por %p43, %p44
      %p46 = scmp.ne.s32.totalorder %s35, %s36
      %p47 = scmp.eq.s32.totalorder %s27, 0
      %p48 = por %p46, %p47
      %p49 = scmp.ne.s32.totalorder %s35, %s36
      %p50 = scmp.eq.s32.totalorder %s28, 1
      %p51 = por %p49, %p50
      %p53 = scmp.ne.s32.totalorder %s36, %s52
      %p54 = scmp.eq.s32.totalorder %s28, 0
      %p55 = por %p53, %p54
      %s57 = sadd.s32 %s56, 1
      %p60 = scmp.eq.s32.totalorder %s22, 1
      %p61 = scmp.ne.s32.totalorder %s56, %s58
      %p62 = scmp.eq.s32.totalorder %s22, 0
      %p63 = por %p61, %p62
      %p64 = scmp.ne.s32.totalorder %s56, %s58
      %p65 = scmp.eq.s32.totalorder %s27, 1
      %p66 = por %p64, %p65
      %p67 = scmp.ne.s32.totalorder %s58, %s59
      %p68 = scmp.eq.s32.totalorder %s27, 0
      %p69 = por %p67, %p68
      %p70 = scmp.ne.s32.totalorder %s58, %s59
      %p71 = scmp.eq.s32.totalorder %s28, 1
      %p72 = por %p70, %p71
      %p74 = scmp.ne.s32.totalorder %s59, %s73
      %p75 = scmp.eq.s32.totalorder %s28, 0
      %p76 = por %p74, %p75
      %s78 = sadd.s32 %s77, 1
      %p81 = scmp.eq.s32.totalorder %s22, 1
      %p82 = scmp.ne.s32.totalorder %s77, %s79
      %p83 = scmp.eq.s32.totalorder %s22, 0
      %p84 = por %p82, %p83
      %p85 = scmp.ne.s32.totalorder %s77, %s79
      %p86 = scmp.eq.s32.totalorder %s27, 1
      %p87 = por %p85, %p86
      %p88 = scmp.ne.s32.totalorder %s79, %s80
      %p89 = scmp.eq.s32.totalorder %s27, 0
      %p90 = por %p88, %p89
      %p91 = scmp.ne.s32.totalorder %s79, %s80
      %p92 = scmp.eq.s32.totalorder %s28, 1
      %p93 = por %p91, %p92
      %p95 = scmp.ne.s32.totalorder %s80, %s94
      %p96 = scmp.eq.s32.totalorder %s28, 0
      %p97 = por %p95, %p96
      %s99 = sadd.s32 %s98, 1
      %p102 = scmp.eq.s32.totalorder %s22, 1
      %p103 = scmp.ne.s32.totalorder %s98, %s100
      %p104 = scmp.eq.s32.totalorder %s22, 0
      %p105 = por %p103, %p104
      %p106 = scmp.ne.s32.totalorder %s98, %s100
      %p107 = scmp.eq.s32.totalorder %s27, 1
      %p108 = por %p106, %p107
      %p109 = scmp.ne.s32.totalorder %s100, %s101
      %p110 = scmp.eq.s32.totalorder %s27, 0
      %p111 = por %p109, %p110
      %p112 = scmp.ne.s32.totalorder %s100, %s101
      %p113 = scmp.eq.s32.totalorder %s28, 1
      %p114 = por %p112, %p113
      %p116 = scmp.ne.s32.totalorder %s101, %s115
      %p117 = scmp.eq.s32.totalorder %s28, 0
      %p118 = por %p116, %p117
      %s120 = sadd.s32 %s119, 1
      %p123 = scmp.eq.s32.totalorder %s22, 1
      %p124 = scmp.ne.s32.totalorder %s119, %s121
      %p125 = scmp.eq.s32.totalorder %s22, 0
      %p126 = por %p124, %p125
      %p127 = scmp.ne.s32.totalorder %s119, %s121
      %p128 = scmp.eq.s32.totalorder %s27, 1
      %p129 = por %p127, %p128
      %p130 = scmp.ne.s32.totalorder %s121, %s122
      %p131 = scmp.eq.s32.totalorder %s27, 0
      %p132 = por %p130, %p131
      %p133 = scmp.ne.s32.totalorder %s121, %s122
      %p134 = scmp.eq.s32.totalorder %s28, 1
      %p135 = por %p133, %p134
      %p137 = scmp.ne.s32.totalorder %s122, %s136
      %p138 = scmp.eq.s32.totalorder %s28, 0
      %p139 = por %p137, %p138
      %s141 = sadd.s32 %s140, 1
      %p144 = scmp.eq.s32.totalorder %s22, 1
      %p145 = scmp.ne.s32.totalorder %s140, %s142
      %p146 = scmp.eq.s32.totalorder %s22, 0
      %p147 = por %p145, %p146
      %p148 = scmp.ne.s32.totalorder %s140, %s142
      %p149 = scmp.eq.s32.totalorder %s27, 1
      %p150 = por %p148, %p149
      %p151 = scmp.ne.s32.totalorder %s142, %s143
      %p152 = scmp.eq.s32.totalorder %s27, 0
      %p153 = por %p151, %p152
      %p154 = scmp.ne.s32.totalorder %s142, %s143
      %p155 = scmp.eq.s32.totalorder %s28, 1
      %p156 = por %p154, %p155
      %p158 = scmp.ne.s32.totalorder %s143, %s157
      %p159 = scmp.eq.s32.totalorder %s28, 0
      %p160 = por %p158, %p159
      %s162 = sadd.s32 %s161, 1
      %p165 = scmp.eq.s32.totalorder %s22, 1
      %p166 = scmp.ne.s32.totalorder %s161, %s163
      %p167 = scmp.eq.s32.totalorder %s22, 0
      %p168 = por %p166, %p167
      %p169 = scmp.ne.s32.totalorder %s161, %s163
      %p170 = scmp.eq.s32.totalorder %s27, 1
      %p171 = por %p169, %p170
      %p172 = scmp.ne.s32.totalorder %s163, %s164
      %p173 = scmp.eq.s32.totalorder %s27, 0
      %p174 = por %p172, %p173
      %p175 = scmp.ne.s32.totalorder %s163, %s164
      %p176 = scmp.eq.s32.totalorder %s28, 1
      %p177 = por %p175, %p176
      %p179 = scmp.ne.s32.totalorder %s164, %s178
      %p180 = scmp.eq.s32.totalorder %s28, 0
      %p181 = por %p179, %p180
      %s183 = sadd.s32 %s182, 1
      %p186 = scmp.eq.s32.totalorder %s22, 1
      %p187 = scmp.ne.s32.totalorder %s182, %s184
      %p188 = scmp.eq.s32.totalorder %s22, 0
      %p189 = por %p187, %p188
      %p190 = scmp.ne.s32.totalorder %s182, %s184
      %p191 = scmp.eq.s32.totalorder %s27, 1
      %p192 = por %p190, %p191
      %p193 = scmp.ne.s32.totalorder %s184, %s185
      %p194 = scmp.eq.s32.totalorder %s27, 0
      %p195 = por %p193, %p194
      %p196 = scmp.ne.s32.totalorder %s184, %s185
      %p197 = scmp.eq.s32.totalorder %s28, 1
      %p198 = por %p196, %p197
      %p200 = scmp.ne.s32.totalorder %s185, %s199
      %p201 = scmp.eq.s32.totalorder %s28, 0
      %p202 = por %p200, %p201
      %s204 = sadd.s32 %s203, 1
      %p207 = scmp.eq.s32.totalorder %s22, 1
      %p208 = scmp.ne.s32.totalorder %s203, %s205
      %p209 = scmp.eq.s32.totalorder %s22, 0
      %p210 = por %p208, %p209
      %p211 = scmp.ne.s32.totalorder %s203, %s205
      %p212 = scmp.eq.s32.totalorder %s27, 1
      %p213 = por %p211, %p212
      %p214 = scmp.ne.s32.totalorder %s205, %s206
      %p215 = scmp.eq.s32.totalorder %s27, 0
      %p216 = por %p214, %p215
      %p217 = scmp.ne.s32.totalorder %s205, %s206
      %p218 = scmp.eq.s32.totalorder %s28, 1
      %p219 = por %p217, %p218
      %p221 = scmp.ne.s32.totalorder %s206, %s220
      %p222 = scmp.eq.s32.totalorder %s28, 0
      %p223 = por %p221, %p222
      %s225 = sadd.s32 %s224, 1
      %p228 = scmp.eq.s32.totalorder %s22, 1
      %p229 = scmp.ne.s32.totalorder %s224, %s226
      %p230 = scmp.eq.s32.totalorder %s22, 0
      %p231 = por %p229, %p230
      %p232 = scmp.ne.s32.totalorder %s224, %s226
      %p233 = scmp.eq.s32.totalorder %s27, 1
      %p234 = por %p232, %p233
      %p235 = scmp.ne.s32.totalorder %s226, %s227
      %p236 = scmp.eq.s32.totalorder %s27, 0
      %p237 = por %p235, %p236
      %p238 = scmp.ne.s32.totalorder %s226, %s227
      %p239 = scmp.eq.s32.totalorder %s28, 1
      %p240 = por %p238, %p239
      %p242 = scmp.ne.s32.totalorder %s227, %s241
      %p243 = scmp.eq.s32.totalorder %s28, 0
      %p244 = por %p242, %p243
      %s246 = sadd.s32 %s245, 1
      %p249 = scmp.eq.s32.totalorder %s22, 1
      %p250 = scmp.ne.s32.totalorder %s245, %s247
      %p251 = scmp.eq.s32.totalorder %s22, 0
      %p252 = por %p250, %p251
      %p253 = scmp.ne.s32.totalorder %s245, %s247
      %p254 = scmp.eq.s32.totalorder %s27, 1
      %p255 = por %p253, %p254
      %p256 = scmp.ne.s32.totalorder %s247, %s248
      %p257 = scmp.eq.s32.totalorder %s27, 0
      %p258 = por %p256, %p257
      %p259 = scmp.ne.s32.totalorder %s247, %s248
      %p260 = scmp.eq.s32.totalorder %s28, 1
      %p261 = por %p259, %p260
      %p263 = scmp.ne.s32.totalorder %s248, %s262
      %p264 = scmp.eq.s32.totalorder %s28, 0
      %p265 = por %p263, %p264
      %s267 = sadd.s32 %s266, 1
      %p270 = scmp.eq.s32.totalorder %s22, 1
      %p271 = scmp.ne.s32.totalorder %s266, %s268
      %p272 = scmp.eq.s32.totalorder %s22, 0
      %p273 = por %p271, %p272
      %p274 = scmp.ne.s32.totalorder %s266, %s268
      %p275 = scmp.eq.s32.totalorder %s27, 1
      %p276 = por %p274, %p275
      %p277 = scmp.ne.s32.totalorder %s268, %s269
      %p278 = scmp.eq.s32.totalorder %s27, 0
      %p279 = por %p277, %p278
      %p280 = scmp.ne.s32.totalorder %s268, %s269
      %p281 = scmp.eq.s32.totalorder %s28, 1
      %p282 = por %p280, %p281
      %p284 = scmp.ne.s32.totalorder %s269, %s283
      %p285 = scmp.eq.s32.totalorder %s28, 0
      %p286 = por %p284, %p285
      %s288 = sadd.s32 %s287, 1
      %p291 = scmp.eq.s32.totalorder %s22, 1
      %p292 = scmp.ne.s32.totalorder %s287, %s289
      %p293 = scmp.eq.s32.totalorder %s22, 0
      %p294 = por %p292, %p293
      %p295 = scmp.ne.s32.totalorder %s287, %s289
      %p296 = scmp.eq.s32.totalorder %s27, 1
      %p297 = por %p295, %p296
      %p298 = scmp.ne.s32.totalorder %s289, %s290
      %p299 = scmp.eq.s32.totalorder %s27, 0
      %p300 = por %p298, %p299
      %p301 = scmp.ne.s32.totalorder %s289, %s290
      %p302 = scmp.eq.s32.totalorder %s28, 1
      %p303 = por %p301, %p302
      %p305 = scmp.ne.s32.totalorder %s290, %s304
      %p306 = scmp.eq.s32.totalorder %s28, 0
      %p307 = por %p305, %p306
      %s308 = ssub.s32 %s22, %s29
      %p309 = scmp.eq.s32.totalorder %s308, 0
      %s311 = sadd.s32 %s310, 1
      %s312 = scalar_select %p309, %s310, %s311
      %p315 = pneg %p309
      %p316 = scmp.eq.s32.totalorder %s22, 1
      %p317 = por %p315, %p316
      %p318 = scmp.ne.s32.totalorder %s310, %s313
      %p319 = scmp.eq.s32.totalorder %s22, 0
      %p320 = por %p318, %p319
      %p321 = scmp.ne.s32.totalorder %s310, %s313
      %p322 = scmp.eq.s32.totalorder %s27, 1
      %p323 = por %p321, %p322
      %p324 = scmp.ne.s32.totalorder %s313, %s314
      %p325 = scmp.eq.s32.totalorder %s27, 0
      %p326 = por %p324, %p325
      %p327 = scmp.ne.s32.totalorder %s313, %s314
      %p328 = scmp.eq.s32.totalorder %s28, 1
      %p329 = por %p327, %p328
      %p331 = scmp.ne.s32.totalorder %s314, %s330
      %p332 = scmp.eq.s32.totalorder %s28, 0
      %p333 = por %p331, %p332
      %p334 = scmp.le.s32.totalorder 1, %s22
      %p335 = scmp.lt.s32.totalorder %s22, 3
      %p336 = pnand %p334, %p335
      %p337 = pneg %p336
      // Predicated region
      $region9: #{qnet_forward.1} parent=5 // pred_check
        _
      $region10: #{qnet_forward.1} parent=5 // pred_check_branch
        %339 = sbr.rel (%p336) target = $region12
      $region11: #{qnet_forward.1} parent=5 // pred_region
        %s340 = ssub.s32 %s22, 1
        // Predicated region
        $region13: #{qnet_forward.1} parent=11 // pred_check
          %p341 = pneg %p69
        $region14: #{qnet_forward.1} parent=11 // pred_check_branch
          %343 = sbr.rel (%p341) target = $region16
        $region15: #{qnet_forward.1} parent=11 // pred_region
          _
        $region16: #{qnet_forward.1} parent=11 // pred_fallthru
          _
        // Predicated region
        $region17: #{qnet_forward.1} parent=11 // pred_check
          %p344 = pneg %p90
        $region18: #{qnet_forward.1} parent=11 // pred_check_branch
          %346 = sbr.rel (%p344) target = $region20
        $region19: #{qnet_forward.1} parent=11 // pred_region
          _
        $region20: #{qnet_forward.1} parent=11 // pred_fallthru
          _
        // Predicated region
        $region21: #{qnet_forward.1} parent=11 // pred_check
          %p347 = pneg %p111
        $region22: #{qnet_forward.1} parent=11 // pred_check_branch
          %349 = sbr.rel (%p347) target = $region24
        $region23: #{qnet_forward.1} parent=11 // pred_region
          _
        $region24: #{qnet_forward.1} parent=11 // pred_fallthru
          _
        // Predicated region
        $region25: #{qnet_forward.1} parent=11 // pred_check
          %p350 = pneg %p132
        $region26: #{qnet_forward.1} parent=11 // pred_check_branch
          %352 = sbr.rel (%p350) target = $region28
        $region27: #{qnet_forward.1} parent=11 // pred_region
          _
        $region28: #{qnet_forward.1} parent=11 // pred_fallthru
          _
        // Predicated region
        $region29: #{qnet_forward.1} parent=11 // pred_check
          %p353 = pneg %p153
        $region30: #{qnet_forward.1} parent=11 // pred_check_branch
          %355 = sbr.rel (%p353) target = $region32
        $region31: #{qnet_forward.1} parent=11 // pred_region
          _
        $region32: #{qnet_forward.1} parent=11 // pred_fallthru
          _
        // Predicated region
        $region33: #{qnet_forward.1} parent=11 // pred_check
          %p356 = pneg %p174
        $region34: #{qnet_forward.1} parent=11 // pred_check_branch
          %358 = sbr.rel (%p356) target = $region36
        $region35: #{qnet_forward.1} parent=11 // pred_region
          _
        $region36: #{qnet_forward.1} parent=11 // pred_fallthru
          _
        // Predicated region
        $region37: #{qnet_forward.1} parent=11 // pred_check
          %p359 = pneg %p195
        $region38: #{qnet_forward.1} parent=11 // pred_check_branch
          %361 = sbr.rel (%p359) target = $region40
        $region39: #{qnet_forward.1} parent=11 // pred_region
          _
        $region40: #{qnet_forward.1} parent=11 // pred_fallthru
          _
        // Predicated region
        $region41: #{qnet_forward.1} parent=11 // pred_check
          %p362 = pneg %p216
        $region42: #{qnet_forward.1} parent=11 // pred_check_branch
          %364 = sbr.rel (%p362) target = $region44
        $region43: #{qnet_forward.1} parent=11 // pred_region
          _
        $region44: #{qnet_forward.1} parent=11 // pred_fallthru
          _
        // Predicated region
        $region45: #{qnet_forward.1} parent=11 // pred_check
          %p365 = pneg %p237
        $region46: #{qnet_forward.1} parent=11 // pred_check_branch
          %367 = sbr.rel (%p365) target = $region48
        $region47: #{qnet_forward.1} parent=11 // pred_region
          _
        $region48: #{qnet_forward.1} parent=11 // pred_fallthru
          _
        // Predicated region
        $region49: #{qnet_forward.1} parent=11 // pred_check
          %p368 = pneg %p258
        $region50: #{qnet_forward.1} parent=11 // pred_check_branch
          %370 = sbr.rel (%p368) target = $region52
        $region51: #{qnet_forward.1} parent=11 // pred_region
          _
        $region52: #{qnet_forward.1} parent=11 // pred_fallthru
          _
        // Predicated region
        $region53: #{qnet_forward.1} parent=11 // pred_check
          %p371 = pneg %p279
        $region54: #{qnet_forward.1} parent=11 // pred_check_branch
          %373 = sbr.rel (%p371) target = $region56
        $region55: #{qnet_forward.1} parent=11 // pred_region
          _
        $region56: #{qnet_forward.1} parent=11 // pred_fallthru
          _
        // Predicated region
        $region57: #{qnet_forward.1} parent=11 // pred_check
          %p374 = pneg %p300
        $region58: #{qnet_forward.1} parent=11 // pred_check_branch
          %376 = sbr.rel (%p374) target = $region60
        $region59: #{qnet_forward.1} parent=11 // pred_region
          _
        $region60: #{qnet_forward.1} parent=11 // pred_fallthru
          _
      $region12: #{qnet_forward.1} parent=5 // pred_fallthru
        _
      %p377 = scmp.lt.s32.totalorder %s22, 2
      // Predicated region
      $region61: #{qnet_forward.1} parent=5 // pred_check
        %p378 = pneg %p377
      $region62: #{qnet_forward.1} parent=5 // pred_check_branch
        %380 = sbr.rel (%p378) target = $region64
      $region63: #{qnet_forward.1} parent=5 // pred_region
        // Predicated region
        $region65: #{qnet_forward.1} parent=63 // pred_check
          %p381 = pneg %p42
        $region66: #{qnet_forward.1} parent=63 // pred_check_branch
          %383 = sbr.rel (%p381) target = $region68
        $region67: #{qnet_forward.1} parent=63 // pred_region
          %p384 = scmp.lt.s32.totalorder %s22, 1
          %s385 = scalar_select %p384, %s22, 1
          %s386 = smul.addr %s385, 8
          %s387 = smul.addr %s386, 4
          %s388 = scalar_lea.vmem %s0, %s387
        $region68: #{qnet_forward.1} parent=63 // pred_fallthru
          _
      $region64: #{qnet_forward.1} parent=5 // pred_fallthru
        _
      %p389 = scmp.le.s32.totalorder 1, %s22
      %p390 = scmp.lt.s32.totalorder %s22, 3
      %p391 = pnand %p389, %p390
      %p392 = pneg %p391
      // Predicated region
      $region69: #{qnet_forward.1} parent=5 // pred_check
        _
      $region70: #{qnet_forward.1} parent=5 // pred_check_branch
        %394 = sbr.rel (%p391) target = $region72
      $region71: #{qnet_forward.1} parent=5 // pred_region
        %s395 = ssub.s32 %s22, 1
        %p396 = scmp.lt.s32.totalorder %s27, 1
        %s397 = scalar_select %p396, %s27, 1
        %s398 = smul.addr %s397, 8
        %s399 = smul.addr %s398, 4
        %s400 = scalar_lea.vmem %s0, %s399
        %p401 = pneg %p48
        %p402 = pneg %p45
        %p403 = pneg %p69
        %p404 = pneg %p66
        %p405 = pneg %p90
        %p406 = pneg %p87
        %p407 = pneg %p111
        %p408 = pneg %p108
        %p409 = pneg %p132
        %p410 = pneg %p129
        %p411 = pneg %p153
        %p412 = pneg %p150
        %p413 = pneg %p174
        %p414 = pneg %p171
        %p415 = pneg %p195
        %p416 = pneg %p192
        %p417 = pneg %p216
        %p418 = pneg %p213
        %p419 = pneg %p237
        %p420 = pneg %p234
        %p421 = pneg %p258
        %p422 = pneg %p255
        %p423 = pneg %p279
        %p424 = pneg %p276
        %p425 = pneg %p300
        %p426 = pneg %p297
        %p427 = pneg %p326
        %p428 = pneg %p323
        %s429 = sand.u32 %s313, 1
        %s430 = scalar_lea.sflag [#allocation4], %s429
        %s431 = sand.u32 %s313, 1
        %s432 = scalar_lea.vmem [#allocation3], %s431
        %p433 = scmp.lt.s32.totalorder %s27, 1
        %s434 = scalar_select %p433, %s27, 1
        %s435 = smul.addr %s434, 8
        %s436 = smul.addr %s435, 4
        %s437 = scalar_lea.vmem %s0, %s436
        %438 = vst [vmem:[#allocation2] sm:$0x3f] 0.0
        %439 = vst [vmem:[#allocation2 + $0x8] sm:$0x3f] 0.0
        %440 = vst [vmem:[#allocation2 + $0x10] sm:$0x3f] 0.0
        %441 = vst [vmem:[#allocation2 + $0x18] sm:$0x3f] 0.0
        %v442 = vld [vmem:[%s437] sm:$0xff]
        %444 = vst [vmem:[#allocation1] ss:$2 sm:$0xff] %v442
        %v445 = vld.sshfl [vmem:[#allocation1] sm:$0xff pattern:$0x75316420]
        %v446 = vld.sshfl [vmem:[#allocation1 + $0x8] sm:$0xff pattern:$0x75316420]
        %v449 = vpack.c.bf16 %v445, %v445
        %v450 = vpack.c.bf16 %v446, %v446
        %v451 = vld [vmem:[%s1] sm:$0xf]
        %v452 = vld [vmem:[%s1 + $0x4] sm:$0xf]
        %v453 = vld [vmem:[%s1 + $0x8] sm:$0xf]
        %v454 = vld [vmem:[%s1 + $0xc] sm:$0xf]
        %v455 = vld [vmem:[%s1 + $0x10] sm:$0xf]
        %v456 = vld [vmem:[%s1 + $0x14] sm:$0xf]
        %v457 = vld [vmem:[%s1 + $0x18] sm:$0xf]
        %v458 = vld [vmem:[%s1 + $0x1c] sm:$0xf]
        %v459 = vld [vmem:[%s1 + $0x20] sm:$0xf]
        %v460 = vld [vmem:[%s1 + $0x24] sm:$0xf]
        %v461 = vld [vmem:[%s1 + $0x28] sm:$0xf]
        %v462 = vld [vmem:[%s1 + $0x2c] sm:$0xf]
        %v463 = vld [vmem:[%s1 + $0x30] sm:$0xf]
        %v464 = vld [vmem:[%s1 + $0x34] sm:$0xf]
        %v465 = vld [vmem:[%s1 + $0x38] sm:$0xf]
        %v466 = vld [vmem:[%s1 + $0x3c] sm:$0xf]
        %v467 = vld [vmem:[%s1 + $0x40] sm:$0xf]
        %v468 = vld [vmem:[%s1 + $0x44] sm:$0xf]
        %v469 = vld [vmem:[%s1 + $0x48] sm:$0xf]
        %v470 = vld [vmem:[%s1 + $0x4c] sm:$0xf]
        %v471 = vld [vmem:[%s1 + $0x50] sm:$0xf]
        %v472 = vld [vmem:[%s1 + $0x54] sm:$0xf]
        %v473 = vld [vmem:[%s1 + $0x58] sm:$0xf]
        %v474 = vld [vmem:[%s1 + $0x5c] sm:$0xf]
        %v475 = vld [vmem:[%s1 + $0x60] sm:$0xf]
        %v476 = vld [vmem:[%s1 + $0x64] sm:$0xf]
        %v477 = vld [vmem:[%s1 + $0x68] sm:$0xf]
        %v478 = vld [vmem:[%s1 + $0x6c] sm:$0xf]
        %v479 = vld [vmem:[%s1 + $0x70] sm:$0xf]
        %v480 = vld [vmem:[%s1 + $0x74] sm:$0xf]
        %v481 = vld [vmem:[%s1 + $0x78] sm:$0xf]
        %v482 = vld [vmem:[%s1 + $0x7c] sm:$0xf]
        %v483 = vld [vmem:[%s2] sm:$0x1]
        %v485 = vperm.slane %v483, 0
        %v519 = vunpack.c.l.b16 %v451
        %v520 = vunpack.c.l.b16 %v452
        %v521 = vunpack.c.l.b16 %v453
        %v522 = vunpack.c.l.b16 %v454
        %v523 = vunpack.c.l.b16 %v455
        %v524 = vunpack.c.l.b16 %v456
        %v525 = vunpack.c.l.b16 %v457
        %v526 = vunpack.c.l.b16 %v458
        %v527 = vunpack.c.l.b16 %v459
        %v528 = vunpack.c.l.b16 %v460
        %v529 = vunpack.c.l.b16 %v461
        %v530 = vunpack.c.l.b16 %v462
        %v531 = vunpack.c.l.b16 %v463
        %v532 = vunpack.c.l.b16 %v464
        %v533 = vunpack.c.l.b16 %v465
        %v534 = vunpack.c.l.b16 %v466
        %v535 = vunpack.c.l.b16 %v467
        %v536 = vunpack.c.l.b16 %v468
        %v537 = vunpack.c.l.b16 %v469
        %v538 = vunpack.c.l.b16 %v470
        %v539 = vunpack.c.l.b16 %v471
        %v540 = vunpack.c.l.b16 %v472
        %v541 = vunpack.c.l.b16 %v473
        %v542 = vunpack.c.l.b16 %v474
        %v543 = vunpack.c.l.b16 %v475
        %v544 = vunpack.c.l.b16 %v476
        %v545 = vunpack.c.l.b16 %v477
        %v546 = vunpack.c.l.b16 %v478
        %v547 = vunpack.c.l.b16 %v479
        %v548 = vunpack.c.l.b16 %v480
        %v549 = vunpack.c.l.b16 %v481
        %v550 = vunpack.c.l.b16 %v482
        %v551 = vpack.c.b16 %v520, %v519
        %v552 = vpack.c.b16 %v522, %v521
        %v553 = vpack.c.b16 %v524, %v523
        %v554 = vpack.c.b16 %v526, %v525
        %v555 = vpack.c.b16 %v528, %v527
        %v556 = vpack.c.b16 %v530, %v529
        %v557 = vpack.c.b16 %v532, %v531
        %v558 = vpack.c.b16 %v534, %v533
        %v559 = vpack.c.b16 %v536, %v535
        %v560 = vpack.c.b16 %v538, %v537
        %v561 = vpack.c.b16 %v540, %v539
        %v562 = vpack.c.b16 %v542, %v541
        %v563 = vpack.c.b16 %v544, %v543
        %v564 = vpack.c.b16 %v546, %v545
        %v565 = vpack.c.b16 %v548, %v547
        %v566 = vpack.c.b16 %v550, %v549
        %583 = vmatpush.bf16.msra.mxu0 %v558
        %584 = vmatpush.bf16.msra.mxu0 %v557
        %585 = vmatpush.bf16.msra.mxu0 %v556
        %586 = vmatpush.bf16.msra.mxu0 %v555
        %587 = vmatpush.bf16.msra.mxu0 %v554
        %588 = vmatpush.bf16.msra.mxu0 %v553
        %589 = vmatpush.bf16.msra.mxu0 %v552
        %590 = vmatpush.bf16.msra.mxu0 %v551
        %591 = vmatmul.bf16.gmra.mxu0 %v449
        %v592 = vpop.f32.mrf.mxu0
        %v593 = vadd.f32 %v485, %v592
        %v594 = vpop.f32.mrf.mxu0
        %595 = vdwg.mxu0
        %596 = vmatpush.bf16.msra.mxu0 %v566
        %597 = vmatpush.bf16.msra.mxu0 %v565
        %598 = vmatpush.bf16.msra.mxu0 %v564
        %599 = vmatpush.bf16.msra.mxu0 %v563
        %600 = vmatpush.bf16.msra.mxu0 %v562
        %601 = vmatpush.bf16.msra.mxu0 %v561
        %602 = vmatpush.bf16.msra.mxu0 %v560
        %603 = vmatpush.bf16.msra.mxu0 %v559
        %604 = vmatmul.bf16.gmra.mxu0 %v450
        %v605 = vpop.f32.mrf.mxu0
        %v606 = vadd.f32 %v593, %v605
        %v607 = vpop.f32.mrf.mxu0
        %608 = vdwg.mxu0
        %v609 = vmax.f32 %v606, 0.0
        %v611 = vrot.slane %v609, 7
        %613 = vst [vmem:[#allocation2] sm:$0x1e] %v611
        %v614 = vld [vmem:[%s437 + $0x8] sm:$0xff]
        %616 = vst [vmem:[#allocation1] ss:$2 sm:$0xff] %v614
        %v617 = vld.sshfl [vmem:[#allocation1] sm:$0xff pattern:$0x75316420]
        %v618 = vld.sshfl [vmem:[#allocation1 + $0x8] sm:$0xff pattern:$0x75316420]
        %v621 = vpack.c.bf16 %v617, %v617
        %v622 = vpack.c.bf16 %v618, %v618
        %v623 = vld [vmem:[%s1] sm:$0xf]
        %v624 = vld [vmem:[%s1 + $0x4] sm:$0xf]
        %v625 = vld [vmem:[%s1 + $0x8] sm:$0xf]
        %v626 = vld [vmem:[%s1 + $0xc] sm:$0xf]
        %v627 = vld [vmem:[%s1 + $0x10] sm:$0xf]
        %v628 = vld [vmem:[%s1 + $0x14] sm:$0xf]
        %v629 = vld [vmem:[%s1 + $0x18] sm:$0xf]
        %v630 = vld [vmem:[%s1 + $0x1c] sm:$0xf]
        %v631 = vld [vmem:[%s1 + $0x20] sm:$0xf]
        %v632 = vld [vmem:[%s1 + $0x24] sm:$0xf]
        %v633 = vld [vmem:[%s1 + $0x28] sm:$0xf]
        %v634 = vld [vmem:[%s1 + $0x2c] sm:$0xf]
        %v635 = vld [vmem:[%s1 + $0x30] sm:$0xf]
        %v636 = vld [vmem:[%s1 + $0x34] sm:$0xf]
        %v637 = vld [vmem:[%s1 + $0x38] sm:$0xf]
        %v638 = vld [vmem:[%s1 + $0x3c] sm:$0xf]
        %v639 = vld [vmem:[%s1 + $0x40] sm:$0xf]
        %v640 = vld [vmem:[%s1 + $0x44] sm:$0xf]
        %v641 = vld [vmem:[%s1 + $0x48] sm:$0xf]
        %v642 = vld [vmem:[%s1 + $0x4c] sm:$0xf]
        %v643 = vld [vmem:[%s1 + $0x50] sm:$0xf]
        %v644 = vld [vmem:[%s1 + $0x54] sm:$0xf]
        %v645 = vld [vmem:[%s1 + $0x58] sm:$0xf]
        %v646 = vld [vmem:[%s1 + $0x5c] sm:$0xf]
        %v647 = vld [vmem:[%s1 + $0x60] sm:$0xf]
        %v648 = vld [vmem:[%s1 + $0x64] sm:$0xf]
        %v649 = vld [vmem:[%s1 + $0x68] sm:$0xf]
        %v650 = vld [vmem:[%s1 + $0x6c] sm:$0xf]
        %v651 = vld [vmem:[%s1 + $0x70] sm:$0xf]
        %v652 = vld [vmem:[%s1 + $0x74] sm:$0xf]
        %v653 = vld [vmem:[%s1 + $0x78] sm:$0xf]
        %v654 = vld [vmem:[%s1 + $0x7c] sm:$0xf]
        %v655 = vld [vmem:[%s2 + $0x1] sm:$0x1]
        %v657 = vperm.slane %v655, 0
        %v691 = vunpack.c.l.b16 %v623
        %v692 = vunpack.c.l.b16 %v624
        %v693 = vunpack.c.l.b16 %v625
        %v694 = vunpack.c.l.b16 %v626
        %v695 = vunpack.c.l.b16 %v627
        %v696 = vunpack.c.l.b16 %v628
        %v697 = vunpack.c.l.b16 %v629
        %v698 = vunpack.c.l.b16 %v630
        %v699 = vunpack.c.l.b16 %v631
        %v700 = vunpack.c.l.b16 %v632
        %v701 = vunpack.c.l.b16 %v633
        %v702 = vunpack.c.l.b16 %v634
        %v703 = vunpack.c.l.b16 %v635
        %v704 = vunpack.c.l.b16 %v636
        %v705 = vunpack.c.l.b16 %v637
        %v706 = vunpack.c.l.b16 %v638
        %v707 = vunpack.c.l.b16 %v639
        %v708 = vunpack.c.l.b16 %v640
        %v709 = vunpack.c.l.b16 %v641
        %v710 = vunpack.c.l.b16 %v642
        %v711 = vunpack.c.l.b16 %v643
        %v712 = vunpack.c.l.b16 %v644
        %v713 = vunpack.c.l.b16 %v645
        %v714 = vunpack.c.l.b16 %v646
        %v715 = vunpack.c.l.b16 %v647
        %v716 = vunpack.c.l.b16 %v648
        %v717 = vunpack.c.l.b16 %v649
        %v718 = vunpack.c.l.b16 %v650
        %v719 = vunpack.c.l.b16 %v651
        %v720 = vunpack.c.l.b16 %v652
        %v721 = vunpack.c.l.b16 %v653
        %v722 = vunpack.c.l.b16 %v654
        %v723 = vpack.c.b16 %v692, %v691
        %v724 = vpack.c.b16 %v694, %v693
        %v725 = vpack.c.b16 %v696, %v695
        %v726 = vpack.c.b16 %v698, %v697
        %v727 = vpack.c.b16 %v700, %v699
        %v728 = vpack.c.b16 %v702, %v701
        %v729 = vpack.c.b16 %v704, %v703
        %v730 = vpack.c.b16 %v706, %v705
        %v731 = vpack.c.b16 %v708, %v707
        %v732 = vpack.c.b16 %v710, %v709
        %v733 = vpack.c.b16 %v712, %v711
        %v734 = vpack.c.b16 %v714, %v713
        %v735 = vpack.c.b16 %v716, %v715
        %v736 = vpack.c.b16 %v718, %v717
        %v737 = vpack.c.b16 %v720, %v719
        %v738 = vpack.c.b16 %v722, %v721
        %755 = vmatpush.bf16.msra.mxu0 %v730
        %756 = vmatpush.bf16.msra.mxu0 %v729
        %757 = vmatpush.bf16.msra.mxu0 %v728
        %758 = vmatpush.bf16.msra.mxu0 %v727
        %759 = vmatpush.bf16.msra.mxu0 %v726
        %760 = vmatpush.bf16.msra.mxu0 %v725
        %761 = vmatpush.bf16.msra.mxu0 %v724
        %762 = vmatpush.bf16.msra.mxu0 %v723
        %763 = vmatmul.bf16.gmra.mxu0 %v621
        %v764 = vpop.f32.mrf.mxu0
        %v765 = vadd.f32 %v657, %v764
        %v766 = vpop.f32.mrf.mxu0
        %767 = vdwg.mxu0
        %768 = vmatpush.bf16.msra.mxu0 %v738
        %769 = vmatpush.bf16.msra.mxu0 %v737
        %770 = vmatpush.bf16.msra.mxu0 %v736
        %771 = vmatpush.bf16.msra.mxu0 %v735
        %772 = vmatpush.bf16.msra.mxu0 %v734
        %773 = vmatpush.bf16.msra.mxu0 %v733
        %774 = vmatpush.bf16.msra.mxu0 %v732
        %775 = vmatpush.bf16.msra.mxu0 %v731
        %776 = vmatmul.bf16.gmra.mxu0 %v622
        %v777 = vpop.f32.mrf.mxu0
        %v778 = vadd.f32 %v765, %v777
        %v779 = vpop.f32.mrf.mxu0
        %780 = vdwg.mxu0
        %v781 = vmax.f32 %v778, 0.0
        %v783 = vrot.slane %v781, 7
        %785 = vst [vmem:[#allocation2 + $0x8] sm:$0x1e] %v783
        %v786 = vld [vmem:[%s437 + $0x10] sm:$0xff]
        %788 = vst [vmem:[#allocation1] ss:$2 sm:$0xff] %v786
        %v789 = vld.sshfl [vmem:[#allocation1] sm:$0xff pattern:$0x75316420]
        %v790 = vld.sshfl [vmem:[#allocation1 + $0x8] sm:$0xff pattern:$0x75316420]
        %v793 = vpack.c.bf16 %v789, %v789
        %v794 = vpack.c.bf16 %v790, %v790
        %v795 = vld [vmem:[%s1] sm:$0xf]
        %v796 = vld [vmem:[%s1 + $0x4] sm:$0xf]
        %v797 = vld [vmem:[%s1 + $0x8] sm:$0xf]
        %v798 = vld [vmem:[%s1 + $0xc] sm:$0xf]
        %v799 = vld [vmem:[%s1 + $0x10] sm:$0xf]
        %v800 = vld [vmem:[%s1 + $0x14] sm:$0xf]
        %v801 = vld [vmem:[%s1 + $0x18] sm:$0xf]
        %v802 = vld [vmem:[%s1 + $0x1c] sm:$0xf]
        %v803 = vld [vmem:[%s1 + $0x20] sm:$0xf]
        %v804 = vld [vmem:[%s1 + $0x24] sm:$0xf]
        %v805 = vld [vmem:[%s1 + $0x28] sm:$0xf]
        %v806 = vld [vmem:[%s1 + $0x2c] sm:$0xf]
        %v807 = vld [vmem:[%s1 + $0x30] sm:$0xf]
        %v808 = vld [vmem:[%s1 + $0x34] sm:$0xf]
        %v809 = vld [vmem:[%s1 + $0x38] sm:$0xf]
        %v810 = vld [vmem:[%s1 + $0x3c] sm:$0xf]
        %v811 = vld [vmem:[%s1 + $0x40] sm:$0xf]
        %v812 = vld [vmem:[%s1 + $0x44] sm:$0xf]
        %v813 = vld [vmem:[%s1 + $0x48] sm:$0xf]
        %v814 = vld [vmem:[%s1 + $0x4c] sm:$0xf]
        %v815 = vld [vmem:[%s1 + $0x50] sm:$0xf]
        %v816 = vld [vmem:[%s1 + $0x54] sm:$0xf]
        %v817 = vld [vmem:[%s1 + $0x58] sm:$0xf]
        %v818 = vld [vmem:[%s1 + $0x5c] sm:$0xf]
        %v819 = vld [vmem:[%s1 + $0x60] sm:$0xf]
        %v820 = vld [vmem:[%s1 + $0x64] sm:$0xf]
        %v821 = vld [vmem:[%s1 + $0x68] sm:$0xf]
        %v822 = vld [vmem:[%s1 + $0x6c] sm:$0xf]
        %v823 = vld [vmem:[%s1 + $0x70] sm:$0xf]
        %v824 = vld [vmem:[%s1 + $0x74] sm:$0xf]
        %v825 = vld [vmem:[%s1 + $0x78] sm:$0xf]
        %v826 = vld [vmem:[%s1 + $0x7c] sm:$0xf]
        %v827 = vld [vmem:[%s2 + $0x2] sm:$0x1]
        %v829 = vperm.slane %v827, 0
        %v863 = vunpack.c.l.b16 %v795
        %v864 = vunpack.c.l.b16 %v796
        %v865 = vunpack.c.l.b16 %v797
        %v866 = vunpack.c.l.b16 %v798
        %v867 = vunpack.c.l.b16 %v799
        %v868 = vunpack.c.l.b16 %v800
        %v869 = vunpack.c.l.b16 %v801
        %v870 = vunpack.c.l.b16 %v802
        %v871 = vunpack.c.l.b16 %v803
        %v872 = vunpack.c.l.b16 %v804
        %v873 = vunpack.c.l.b16 %v805
        %v874 = vunpack.c.l.b16 %v806
        %v875 = vunpack.c.l.b16 %v807
        %v876 = vunpack.c.l.b16 %v808
        %v877 = vunpack.c.l.b16 %v809
        %v878 = vunpack.c.l.b16 %v810
        %v879 = vunpack.c.l.b16 %v811
        %v880 = vunpack.c.l.b16 %v812
        %v881 = vunpack.c.l.b16 %v813
        %v882 = vunpack.c.l.b16 %v814
        %v883 = vunpack.c.l.b16 %v815
        %v884 = vunpack.c.l.b16 %v816
        %v885 = vunpack.c.l.b16 %v817
        %v886 = vunpack.c.l.b16 %v818
        %v887 = vunpack.c.l.b16 %v819
        %v888 = vunpack.c.l.b16 %v820
        %v889 = vunpack.c.l.b16 %v821
        %v890 = vunpack.c.l.b16 %v822
        %v891 = vunpack.c.l.b16 %v823
        %v892 = vunpack.c.l.b16 %v824
        %v893 = vunpack.c.l.b16 %v825
        %v894 = vunpack.c.l.b16 %v826
        %v895 = vpack.c.b16 %v864, %v863
        %v896 = vpack.c.b16 %v866, %v865
        %v897 = vpack.c.b16 %v868, %v867
        %v898 = vpack.c.b16 %v870, %v869
        %v899 = vpack.c.b16 %v872, %v871
        %v900 = vpack.c.b16 %v874, %v873
        %v901 = vpack.c.b16 %v876, %v875
        %v902 = vpack.c.b16 %v878, %v877
        %v903 = vpack.c.b16 %v880, %v879
        %v904 = vpack.c.b16 %v882, %v881
        %v905 = vpack.c.b16 %v884, %v883
        %v906 = vpack.c.b16 %v886, %v885
        %v907 = vpack.c.b16 %v888, %v887
        %v908 = vpack.c.b16 %v890, %v889
        %v909 = vpack.c.b16 %v892, %v891
        %v910 = vpack.c.b16 %v894, %v893
        %927 = vmatpush.bf16.msra.mxu0 %v902
        %928 = vmatpush.bf16.msra.mxu0 %v901
        %929 = vmatpush.bf16.msra.mxu0 %v900
        %930 = vmatpush.bf16.msra.mxu0 %v899
        %931 = vmatpush.bf16.msra.mxu0 %v898
        %932 = vmatpush.bf16.msra.mxu0 %v897
        %933 = vmatpush.bf16.msra.mxu0 %v896
        %934 = vmatpush.bf16.msra.mxu0 %v895
        %935 = vmatmul.bf16.gmra.mxu0 %v793
        %v936 = vpop.f32.mrf.mxu0
        %v937 = vadd.f32 %v829, %v936
        %v938 = vpop.f32.mrf.mxu0
        %939 = vdwg.mxu0
        %940 = vmatpush.bf16.msra.mxu0 %v910
        %941 = vmatpush.bf16.msra.mxu0 %v909
        %942 = vmatpush.bf16.msra.mxu0 %v908
        %943 = vmatpush.bf16.msra.mxu0 %v907
        %944 = vmatpush.bf16.msra.mxu0 %v906
        %945 = vmatpush.bf16.msra.mxu0 %v905
        %946 = vmatpush.bf16.msra.mxu0 %v904
        %947 = vmatpush.bf16.msra.mxu0 %v903
        %948 = vmatmul.bf16.gmra.mxu0 %v794
        %v949 = vpop.f32.mrf.mxu0
        %v950 = vadd.f32 %v937, %v949
        %v951 = vpop.f32.mrf.mxu0
        %952 = vdwg.mxu0
        %v953 = vmax.f32 %v950, 0.0
        %v955 = vrot.slane %v953, 7
        %957 = vst [vmem:[#allocation2 + $0x10] sm:$0x1e] %v955
        %v958 = vld [vmem:[%s437 + $0x18] sm:$0xff]
        %960 = vst [vmem:[#allocation1] ss:$2 sm:$0xff] %v958
        %v961 = vld.sshfl [vmem:[#allocation1] sm:$0xff pattern:$0x75316420]
        %v962 = vld.sshfl [vmem:[#allocation1 + $0x8] sm:$0xff pattern:$0x75316420]
        %v965 = vpack.c.bf16 %v961, %v961
        %v966 = vpack.c.bf16 %v962, %v962
        %v967 = vld [vmem:[%s1] sm:$0xf]
        %v968 = vld [vmem:[%s1 + $0x4] sm:$0xf]
        %v969 = vld [vmem:[%s1 + $0x8] sm:$0xf]
        %v970 = vld [vmem:[%s1 + $0xc] sm:$0xf]
        %v971 = vld [vmem:[%s1 + $0x10] sm:$0xf]
        %v972 = vld [vmem:[%s1 + $0x14] sm:$0xf]
        %v973 = vld [vmem:[%s1 + $0x18] sm:$0xf]
        %v974 = vld [vmem:[%s1 + $0x1c] sm:$0xf]
        %v975 = vld [vmem:[%s1 + $0x20] sm:$0xf]
        %v976 = vld [vmem:[%s1 + $0x24] sm:$0xf]
        %v977 = vld [vmem:[%s1 + $0x28] sm:$0xf]
        %v978 = vld [vmem:[%s1 + $0x2c] sm:$0xf]
        %v979 = vld [vmem:[%s1 + $0x30] sm:$0xf]
        %v980 = vld [vmem:[%s1 + $0x34] sm:$0xf]
        %v981 = vld [vmem:[%s1 + $0x38] sm:$0xf]
        %v982 = vld [vmem:[%s1 + $0x3c] sm:$0xf]
        %v983 = vld [vmem:[%s1 + $0x40] sm:$0xf]
        %v984 = vld [vmem:[%s1 + $0x44] sm:$0xf]
        %v985 = vld [vmem:[%s1 + $0x48] sm:$0xf]
        %v986 = vld [vmem:[%s1 + $0x4c] sm:$0xf]
        %v987 = vld [vmem:[%s1 + $0x50] sm:$0xf]
        %v988 = vld [vmem:[%s1 + $0x54] sm:$0xf]
        %v989 = vld [vmem:[%s1 + $0x58] sm:$0xf]
        %v990 = vld [vmem:[%s1 + $0x5c] sm:$0xf]
        %v991 = vld [vmem:[%s1 + $0x60] sm:$0xf]
        %v992 = vld [vmem:[%s1 + $0x64] sm:$0xf]
        %v993 = vld [vmem:[%s1 + $0x68] sm:$0xf]
        %v994 = vld [vmem:[%s1 + $0x6c] sm:$0xf]
        %v995 = vld [vmem:[%s1 + $0x70] sm:$0xf]
        %v996 = vld [vmem:[%s1 + $0x74] sm:$0xf]
        %v997 = vld [vmem:[%s1 + $0x78] sm:$0xf]
        %v998 = vld [vmem:[%s1 + $0x7c] sm:$0xf]
        %v999 = vld [vmem:[%s2 + $0x3] sm:$0x1]
        %v1001 = vperm.slane %v999, 0
        %v1035 = vunpack.c.l.b16 %v967
        %v1036 = vunpack.c.l.b16 %v968
        %v1037 = vunpack.c.l.b16 %v969
        %v1038 = vunpack.c.l.b16 %v970
        %v1039 = vunpack.c.l.b16 %v971
        %v1040 = vunpack.c.l.b16 %v972
        %v1041 = vunpack.c.l.b16 %v973
        %v1042 = vunpack.c.l.b16 %v974
        %v1043 = vunpack.c.l.b16 %v975
        %v1044 = vunpack.c.l.b16 %v976
        %v1045 = vunpack.c.l.b16 %v977
        %v1046 = vunpack.c.l.b16 %v978
        %v1047 = vunpack.c.l.b16 %v979
        %v1048 = vunpack.c.l.b16 %v980
        %v1049 = vunpack.c.l.b16 %v981
        %v1050 = vunpack.c.l.b16 %v982
        %v1051 = vunpack.c.l.b16 %v983
        %v1052 = vunpack.c.l.b16 %v984
        %v1053 = vunpack.c.l.b16 %v985
        %v1054 = vunpack.c.l.b16 %v986
        %v1055 = vunpack.c.l.b16 %v987
        %v1056 = vunpack.c.l.b16 %v988
        %v1057 = vunpack.c.l.b16 %v989
        %v1058 = vunpack.c.l.b16 %v990
        %v1059 = vunpack.c.l.b16 %v991
        %v1060 = vunpack.c.l.b16 %v992
        %v1061 = vunpack.c.l.b16 %v993
        %v1062 = vunpack.c.l.b16 %v994
        %v1063 = vunpack.c.l.b16 %v995
        %v1064 = vunpack.c.l.b16 %v996
        %v1065 = vunpack.c.l.b16 %v997
        %v1066 = vunpack.c.l.b16 %v998
        %v1067 = vpack.c.b16 %v1036, %v1035
        %v1068 = vpack.c.b16 %v1038, %v1037
        %v1069 = vpack.c.b16 %v1040, %v1039
        %v1070 = vpack.c.b16 %v1042, %v1041
        %v1071 = vpack.c.b16 %v1044, %v1043
        %v1072 = vpack.c.b16 %v1046, %v1045
        %v1073 = vpack.c.b16 %v1048, %v1047
        %v1074 = vpack.c.b16 %v1050, %v1049
        %v1075 = vpack.c.b16 %v1052, %v1051
        %v1076 = vpack.c.b16 %v1054, %v1053
        %v1077 = vpack.c.b16 %v1056, %v1055
        %v1078 = vpack.c.b16 %v1058, %v1057
        %v1079 = vpack.c.b16 %v1060, %v1059
        %v1080 = vpack.c.b16 %v1062, %v1061
        %v1081 = vpack.c.b16 %v1064, %v1063
        %v1082 = vpack.c.b16 %v1066, %v1065
        %1099 = vmatpush.bf16.msra.mxu0 %v1074
        %1100 = vmatpush.bf16.msra.mxu0 %v1073
        %1101 = vmatpush.bf16.msra.mxu0 %v1072
        %1102 = vmatpush.bf16.msra.mxu0 %v1071
        %1103 = vmatpush.bf16.msra.mxu0 %v1070
        %1104 = vmatpush.bf16.msra.mxu0 %v1069
        %1105 = vmatpush.bf16.msra.mxu0 %v1068
        %1106 = vmatpush.bf16.msra.mxu0 %v1067
        %1107 = vmatmul.bf16.gmra.mxu0 %v965
        %v1108 = vpop.f32.mrf.mxu0
        %v1109 = vadd.f32 %v1001, %v1108
        %v1110 = vpop.f32.mrf.mxu0
        %1111 = vdwg.mxu0
        %1112 = vmatpush.bf16.msra.mxu0 %v1082
        %1113 = vmatpush.bf16.msra.mxu0 %v1081
        %1114 = vmatpush.bf16.msra.mxu0 %v1080
        %1115 = vmatpush.bf16.msra.mxu0 %v1079
        %1116 = vmatpush.bf16.msra.mxu0 %v1078
        %1117 = vmatpush.bf16.msra.mxu0 %v1077
        %1118 = vmatpush.bf16.msra.mxu0 %v1076
        %1119 = vmatpush.bf16.msra.mxu0 %v1075
        %1120 = vmatmul.bf16.gmra.mxu0 %v966
        %v1121 = vpop.f32.mrf.mxu0
        %v1122 = vadd.f32 %v1109, %v1121
        %v1123 = vpop.f32.mrf.mxu0
        %1124 = vdwg.mxu0
        %v1125 = vmax.f32 %v1122, 0.0
        %v1127 = vrot.slane %v1125, 7
        %1129 = vst [vmem:[#allocation2 + $0x18] sm:$0x1e] %v1127
        %v1130 = vld [vmem:[#allocation2] sm:$0xf]
        %v1131 = vld [vmem:[#allocation2 + $0x8] sm:$0xf]
        %v1132 = vld [vmem:[#allocation2 + $0x10] sm:$0xf]
        %v1133 = vld [vmem:[#allocation2 + $0x18] sm:$0xf]
        %v1134 = vpack.c.bf16 %v1130, %v1130
        %v1135 = vpack.c.bf16 %v1131, %v1131
        %v1136 = vpack.c.bf16 %v1132, %v1132
        %v1137 = vpack.c.bf16 %v1133, %v1133
        %v1138 = vld [vmem:[%s3] sm:$0xff]
        %v1139 = vld [vmem:[%s3 + $0x8] sm:$0xff]
        %v1140 = vld [vmem:[%s3 + $0x10] sm:$0xff]
        %v1141 = vld [vmem:[%s3 + $0x18] sm:$0xff]
        %v1142 = vld [vmem:[%s3 + $0x20] sm:$0xff]
        %v1143 = vld [vmem:[%s3 + $0x28] sm:$0xff]
        %v1144 = vld [vmem:[%s3 + $0x30] sm:$0xff]
        %v1145 = vld [vmem:[%s3 + $0x38] sm:$0xff]
        %v1146 = vld [vmem:[%s3 + $0x40] sm:$0xff]
        %v1147 = vld [vmem:[%s3 + $0x48] sm:$0xff]
        %v1148 = vld [vmem:[%s3 + $0x50] sm:$0xff]
        %v1149 = vld [vmem:[%s3 + $0x58] sm:$0xff]
        %v1150 = vld [vmem:[%s3 + $0x60] sm:$0xff]
        %v1151 = vld [vmem:[%s3 + $0x68] sm:$0xff]
        %v1152 = vld [vmem:[%s3 + $0x70] sm:$0xff]
        %v1153 = vld [vmem:[%s3 + $0x78] sm:$0xff]
        %v1154 = vld [vmem:[%s3 + $0x80] sm:$0xff]
        %v1155 = vld [vmem:[%s3 + $0x88] sm:$0xff]
        %v1156 = vld [vmem:[%s3 + $0x90] sm:$0xff]
        %v1157 = vld [vmem:[%s3 + $0x98] sm:$0xff]
        %v1158 = vld [vmem:[%s3 + $0xa0] sm:$0xff]
        %v1159 = vld [vmem:[%s3 + $0xa8] sm:$0xff]
        %v1160 = vld [vmem:[%s3 + $0xb0] sm:$0xff]
        %v1161 = vld [vmem:[%s3 + $0xb8] sm:$0xff]
        %v1162 = vld [vmem:[%s3 + $0xc0] sm:$0xff]
        %v1163 = vld [vmem:[%s3 + $0xc8] sm:$0xff]
        %v1164 = vld [vmem:[%s3 + $0xd0] sm:$0xff]
        %v1165 = vld [vmem:[%s3 + $0xd8] sm:$0xff]
        %v1166 = vld [vmem:[%s3 + $0xe0] sm:$0xff]
        %v1167 = vld [vmem:[%s3 + $0xe8] sm:$0xff]
        %v1168 = vld [vmem:[%s3 + $0xf0] sm:$0xff]
        %v1169 = vld [vmem:[%s3 + $0xf8] sm:$0xff]
        %v1170 = vld [vmem:[%s3 + $0x100] sm:$0xff]
        %v1171 = vld [vmem:[%s3 + $0x108] sm:$0xff]
        %v1172 = vld [vmem:[%s3 + $0x110] sm:$0xff]
        %v1173 = vld [vmem:[%s3 + $0x118] sm:$0xff]
        %v1174 = vld [vmem:[%s3 + $0x120] sm:$0xff]
        %v1175 = vld [vmem:[%s3 + $0x128] sm:$0xff]
        %v1176 = vld [vmem:[%s3 + $0x130] sm:$0xff]
        %v1177 = vld [vmem:[%s3 + $0x138] sm:$0xff]
        %v1178 = vld [vmem:[%s3 + $0x140] sm:$0xff]
        %v1179 = vld [vmem:[%s3 + $0x148] sm:$0xff]
        %v1180 = vld [vmem:[%s3 + $0x150] sm:$0xff]
        %v1181 = vld [vmem:[%s3 + $0x158] sm:$0xff]
        %v1182 = vld [vmem:[%s3 + $0x160] sm:$0xff]
        %v1183 = vld [vmem:[%s3 + $0x168] sm:$0xff]
        %v1184 = vld [vmem:[%s3 + $0x170] sm:$0xff]
        %v1185 = vld [vmem:[%s3 + $0x178] sm:$0xff]
        %v1186 = vld [vmem:[%s3 + $0x180] sm:$0xff]
        %v1187 = vld [vmem:[%s3 + $0x188] sm:$0xff]
        %v1188 = vld [vmem:[%s3 + $0x190] sm:$0xff]
        %v1189 = vld [vmem:[%s3 + $0x198] sm:$0xff]
        %v1190 = vld [vmem:[%s3 + $0x1a0] sm:$0xff]
        %v1191 = vld [vmem:[%s3 + $0x1a8] sm:$0xff]
        %v1192 = vld [vmem:[%s3 + $0x1b0] sm:$0xff]
        %v1193 = vld [vmem:[%s3 + $0x1b8] sm:$0xff]
        %v1194 = vld [vmem:[%s3 + $0x1c0] sm:$0xff]
        %v1195 = vld [vmem:[%s3 + $0x1c8] sm:$0xff]
        %v1196 = vld [vmem:[%s3 + $0x1d0] sm:$0xff]
        %v1197 = vld [vmem:[%s3 + $0x1d8] sm:$0xff]
        %v1198 = vld [vmem:[%s3 + $0x1e0] sm:$0xff]
        %v1199 = vld [vmem:[%s3 + $0x1e8] sm:$0xff]
        %v1200 = vld [vmem:[%s3 + $0x1f0] sm:$0xff]
        %v1201 = vld [vmem:[%s3 + $0x1f8] sm:$0xff]
        %v1202 = vld [vmem:[#allocation2] sm:$0x1e]
        %v1203 = vld [vmem:[#allocation2 + $0x8] sm:$0x1e]
        %v1204 = vld [vmem:[#allocation2 + $0x10] sm:$0x1e]
        %v1205 = vld [vmem:[#allocation2 + $0x18] sm:$0x1e]
        %v1206 = vpack.c.bf16 %v1202, %v1202
        %v1207 = vpack.c.bf16 %v1203, %v1203
        %v1208 = vpack.c.bf16 %v1204, %v1204
        %v1209 = vpack.c.bf16 %v1205, %v1205
        %s1210 = scalar_lea.vmem %s3, 512
        %v1211 = vld [vmem:[%s1210] sm:$0xff]
        %v1212 = vld [vmem:[%s1210 + $0x8] sm:$0xff]
        %v1213 = vld [vmem:[%s1210 + $0x10] sm:$0xff]
        %v1214 = vld [vmem:[%s1210 + $0x18] sm:$0xff]
        %v1215 = vld [vmem:[%s1210 + $0x20] sm:$0xff]
        %v1216 = vld [vmem:[%s1210 + $0x28] sm:$0xff]
        %v1217 = vld [vmem:[%s1210 + $0x30] sm:$0xff]
        %v1218 = vld [vmem:[%s1210 + $0x38] sm:$0xff]
        %v1219 = vld [vmem:[%s1210 + $0x40] sm:$0xff]
        %v1220 = vld [vmem:[%s1210 + $0x48] sm:$0xff]
        %v1221 = vld [vmem:[%s1210 + $0x50] sm:$0xff]
        %v1222 = vld [vmem:[%s1210 + $0x58] sm:$0xff]
        %v1223 = vld [vmem:[%s1210 + $0x60] sm:$0xff]
        %v1224 = vld [vmem:[%s1210 + $0x68] sm:$0xff]
        %v1225 = vld [vmem:[%s1210 + $0x70] sm:$0xff]
        %v1226 = vld [vmem:[%s1210 + $0x78] sm:$0xff]
        %v1227 = vld [vmem:[%s1210 + $0x80] sm:$0xff]
        %v1228 = vld [vmem:[%s1210 + $0x88] sm:$0xff]
        %v1229 = vld [vmem:[%s1210 + $0x90] sm:$0xff]
        %v1230 = vld [vmem:[%s1210 + $0x98] sm:$0xff]
        %v1231 = vld [vmem:[%s1210 + $0xa0] sm:$0xff]
        %v1232 = vld [vmem:[%s1210 + $0xa8] sm:$0xff]
        %v1233 = vld [vmem:[%s1210 + $0xb0] sm:$0xff]
        %v1234 = vld [vmem:[%s1210 + $0xb8] sm:$0xff]
        %v1235 = vld [vmem:[%s1210 + $0xc0] sm:$0xff]
        %v1236 = vld [vmem:[%s1210 + $0xc8] sm:$0xff]
        %v1237 = vld [vmem:[%s1210 + $0xd0] sm:$0xff]
        %v1238 = vld [vmem:[%s1210 + $0xd8] sm:$0xff]
        %v1239 = vld [vmem:[%s1210 + $0xe0] sm:$0xff]
        %v1240 = vld [vmem:[%s1210 + $0xe8] sm:$0xff]
        %v1241 = vld [vmem:[%s1210 + $0xf0] sm:$0xff]
        %v1242 = vld [vmem:[%s1210 + $0xf8] sm:$0xff]
        %v1243 = vld [vmem:[%s1210 + $0x100] sm:$0xff]
        %v1244 = vld [vmem:[%s1210 + $0x108] sm:$0xff]
        %v1245 = vld [vmem:[%s1210 + $0x110] sm:$0xff]
        %v1246 = vld [vmem:[%s1210 + $0x118] sm:$0xff]
        %v1247 = vld [vmem:[%s1210 + $0x120] sm:$0xff]
        %v1248 = vld [vmem:[%s1210 + $0x128] sm:$0xff]
        %v1249 = vld [vmem:[%s1210 + $0x130] sm:$0xff]
        %v1250 = vld [vmem:[%s1210 + $0x138] sm:$0xff]
        %v1251 = vld [vmem:[%s1210 + $0x140] sm:$0xff]
        %v1252 = vld [vmem:[%s1210 + $0x148] sm:$0xff]
        %v1253 = vld [vmem:[%s1210 + $0x150] sm:$0xff]
        %v1254 = vld [vmem:[%s1210 + $0x158] sm:$0xff]
        %v1255 = vld [vmem:[%s1210 + $0x160] sm:$0xff]
        %v1256 = vld [vmem:[%s1210 + $0x168] sm:$0xff]
        %v1257 = vld [vmem:[%s1210 + $0x170] sm:$0xff]
        %v1258 = vld [vmem:[%s1210 + $0x178] sm:$0xff]
        %v1259 = vld [vmem:[%s1210 + $0x180] sm:$0xff]
        %v1260 = vld [vmem:[%s1210 + $0x188] sm:$0xff]
        %v1261 = vld [vmem:[%s1210 + $0x190] sm:$0xff]
        %v1262 = vld [vmem:[%s1210 + $0x198] sm:$0xff]
        %v1263 = vld [vmem:[%s1210 + $0x1a0] sm:$0xff]
        %v1264 = vld [vmem:[%s1210 + $0x1a8] sm:$0xff]
        %v1265 = vld [vmem:[%s1210 + $0x1b0] sm:$0xff]
        %v1266 = vld [vmem:[%s1210 + $0x1b8] sm:$0xff]
        %v1267 = vld [vmem:[%s1210 + $0x1c0] sm:$0xff]
        %v1268 = vld [vmem:[%s1210 + $0x1c8] sm:$0xff]
        %v1269 = vld [vmem:[%s1210 + $0x1d0] sm:$0xff]
        %v1270 = vld [vmem:[%s1210 + $0x1d8] sm:$0xff]
        %v1271 = vld [vmem:[%s1210 + $0x1e0] sm:$0xff]
        %v1272 = vld [vmem:[%s1210 + $0x1e8] sm:$0xff]
        %v1273 = vld [vmem:[%s1210 + $0x1f0] sm:$0xff]
        %v1274 = vld [vmem:[%s1210 + $0x1f8] sm:$0xff]
        %v1276 = vshrl.u32 %v1206, 16
        %v1278 = vshll.u32 %v1206, 16
        %v1280 = vrot.slane %v1278, 1
        %v1281 = vor.u32 %v1276, %v1280
        %v1283 = vshrl.u32 %v1207, 16
        %v1285 = vshll.u32 %v1207, 16
        %v1287 = vrot.slane %v1285, 1
        %v1288 = vor.u32 %v1283, %v1287
        %v1290 = vshrl.u32 %v1208, 16
        %v1292 = vshll.u32 %v1208, 16
        %v1294 = vrot.slane %v1292, 1
        %v1295 = vor.u32 %v1290, %v1294
        %v1297 = vshrl.u32 %v1209, 16
        %v1299 = vshll.u32 %v1209, 16
        %v1301 = vrot.slane %v1299, 1
        %v1302 = vor.u32 %v1297, %v1301
        %v1371 = vunpack.c.l.b16 %v1211
        %v1372 = vunpack.c.h.b16 %v1211
        %v1373 = vunpack.c.l.b16 %v1212
        %v1374 = vunpack.c.h.b16 %v1212
        %v1375 = vunpack.c.l.b16 %v1213
        %v1376 = vunpack.c.h.b16 %v1213
        %v1377 = vunpack.c.l.b16 %v1214
        %v1378 = vunpack.c.h.b16 %v1214
        %v1379 = vunpack.c.l.b16 %v1215
        %v1380 = vunpack.c.h.b16 %v1215
        %v1381 = vunpack.c.l.b16 %v1216
        %v1382 = vunpack.c.h.b16 %v1216
        %v1383 = vunpack.c.l.b16 %v1217
        %v1384 = vunpack.c.h.b16 %v1217
        %v1385 = vunpack.c.l.b16 %v1218
        %v1386 = vunpack.c.h.b16 %v1218
        %v1387 = vunpack.c.l.b16 %v1219
        %v1388 = vunpack.c.h.b16 %v1219
        %v1389 = vunpack.c.l.b16 %v1220
        %v1390 = vunpack.c.h.b16 %v1220
        %v1391 = vunpack.c.l.b16 %v1221
        %v1392 = vunpack.c.h.b16 %v1221
        %v1393 = vunpack.c.l.b16 %v1222
        %v1394 = vunpack.c.h.b16 %v1222
        %v1395 = vunpack.c.l.b16 %v1223
        %v1396 = vunpack.c.h.b16 %v1223
        %v1397 = vunpack.c.l.b16 %v1224
        %v1398 = vunpack.c.h.b16 %v1224
        %v1399 = vunpack.c.l.b16 %v1225
        %v1400 = vunpack.c.h.b16 %v1225
        %v1401 = vunpack.c.l.b16 %v1226
        %v1402 = vunpack.c.h.b16 %v1226
        %v1403 = vunpack.c.l.b16 %v1227
        %v1404 = vunpack.c.h.b16 %v1227
        %v1405 = vunpack.c.l.b16 %v1228
        %v1406 = vunpack.c.h.b16 %v1228
        %v1407 = vunpack.c.l.b16 %v1229
        %v1408 = vunpack.c.h.b16 %v1229
        %v1409 = vunpack.c.l.b16 %v1230
        %v1410 = vunpack.c.h.b16 %v1230
        %v1411 = vunpack.c.l.b16 %v1231
        %v1412 = vunpack.c.h.b16 %v1231
        %v1413 = vunpack.c.l.b16 %v1232
        %v1414 = vunpack.c.h.b16 %v1232
        %v1415 = vunpack.c.l.b16 %v1233
        %v1416 = vunpack.c.h.b16 %v1233
        %v1417 = vunpack.c.l.b16 %v1234
        %v1418 = vunpack.c.h.b16 %v1234
        %v1419 = vunpack.c.l.b16 %v1235
        %v1420 = vunpack.c.h.b16 %v1235
        %v1421 = vunpack.c.l.b16 %v1236
        %v1422 = vunpack.c.h.b16 %v1236
        %v1423 = vunpack.c.l.b16 %v1237
        %v1424 = vunpack.c.h.b16 %v1237
        %v1425 = vunpack.c.l.b16 %v1238
        %v1426 = vunpack.c.h.b16 %v1238
        %v1427 = vunpack.c.l.b16 %v1239
        %v1428 = vunpack.c.h.b16 %v1239
        %v1429 = vunpack.c.l.b16 %v1240
        %v1430 = vunpack.c.h.b16 %v1240
        %v1431 = vunpack.c.l.b16 %v1241
        %v1432 = vunpack.c.h.b16 %v1241
        %v1433 = vunpack.c.l.b16 %v1242
        %v1434 = vunpack.c.h.b16 %v1242
        %v1435 = vunpack.c.l.b16 %v1243
        %v1436 = vunpack.c.h.b16 %v1243
        %v1437 = vunpack.c.l.b16 %v1244
        %v1438 = vunpack.c.h.b16 %v1244
        %v1439 = vunpack.c.l.b16 %v1245
        %v1440 = vunpack.c.h.b16 %v1245
        %v1441 = vunpack.c.l.b16 %v1246
        %v1442 = vunpack.c.h.b16 %v1246
        %v1443 = vunpack.c.l.b16 %v1247
        %v1444 = vunpack.c.h.b16 %v1247
        %v1445 = vunpack.c.l.b16 %v1248
        %v1446 = vunpack.c.h.b16 %v1248
        %v1447 = vunpack.c.l.b16 %v1249
        %v1448 = vunpack.c.h.b16 %v1249
        %v1449 = vunpack.c.l.b16 %v1250
        %v1450 = vunpack.c.h.b16 %v1250
        %v1451 = vunpack.c.l.b16 %v1251
        %v1452 = vunpack.c.h.b16 %v1251
        %v1453 = vunpack.c.l.b16 %v1252
        %v1454 = vunpack.c.h.b16 %v1252
        %v1455 = vunpack.c.l.b16 %v1253
        %v1456 = vunpack.c.h.b16 %v1253
        %v1457 = vunpack.c.l.b16 %v1254
        %v1458 = vunpack.c.h.b16 %v1254
        %v1459 = vunpack.c.l.b16 %v1255
        %v1460 = vunpack.c.h.b16 %v1255
        %v1461 = vunpack.c.l.b16 %v1256
        %v1462 = vunpack.c.h.b16 %v1256
        %v1463 = vunpack.c.l.b16 %v1257
        %v1464 = vunpack.c.h.b16 %v1257
        %v1465 = vunpack.c.l.b16 %v1258
        %v1466 = vunpack.c.h.b16 %v1258
        %v1467 = vunpack.c.l.b16 %v1259
        %v1468 = vunpack.c.h.b16 %v1259
        %v1469 = vunpack.c.l.b16 %v1260
        %v1470 = vunpack.c.h.b16 %v1260
        %v1471 = vunpack.c.l.b16 %v1261
        %v1472 = vunpack.c.h.b16 %v1261
        %v1473 = vunpack.c.l.b16 %v1262
        %v1474 = vunpack.c.h.b16 %v1262
        %v1475 = vunpack.c.l.b16 %v1263
        %v1476 = vunpack.c.h.b16 %v1263
        %v1477 = vunpack.c.l.b16 %v1264
        %v1478 = vunpack.c.h.b16 %v1264
        %v1479 = vunpack.c.l.b16 %v1265
        %v1480 = vunpack.c.h.b16 %v1265
        %v1481 = vunpack.c.l.b16 %v1266
        %v1482 = vunpack.c.h.b16 %v1266
        %v1483 = vunpack.c.l.b16 %v1267
        %v1484 = vunpack.c.h.b16 %v1267
        %v1485 = vunpack.c.l.b16 %v1268
        %v1486 = vunpack.c.h.b16 %v1268
        %v1487 = vunpack.c.l.b16 %v1269
        %v1488 = vunpack.c.h.b16 %v1269
        %v1489 = vunpack.c.l.b16 %v1270
        %v1490 = vunpack.c.h.b16 %v1270
        %v1491 = vunpack.c.l.b16 %v1271
        %v1492 = vunpack.c.h.b16 %v1271
        %v1493 = vunpack.c.l.b16 %v1272
        %v1494 = vunpack.c.h.b16 %v1272
        %v1495 = vunpack.c.l.b16 %v1273
        %v1496 = vunpack.c.h.b16 %v1273
        %v1497 = vunpack.c.l.b16 %v1274
        %v1498 = vunpack.c.h.b16 %v1274
        %v1499 = vpack.c.b16 %v1373, %v1371
        %v1500 = vpack.c.b16 %v1374, %v1372
        %v1501 = vpack.c.b16 %v1377, %v1375
        %v1502 = vpack.c.b16 %v1378, %v1376
        %v1503 = vpack.c.b16 %v1381, %v1379
        %v1504 = vpack.c.b16 %v1382, %v1380
        %v1505 = vpack.c.b16 %v1385, %v1383
        %v1506 = vpack.c.b16 %v1386, %v1384
        %v1507 = vpack.c.b16 %v1389, %v1387
        %v1508 = vpack.c.b16 %v1390, %v1388
        %v1509 = vpack.c.b16 %v1393, %v1391
        %v1510 = vpack.c.b16 %v1394, %v1392
        %v1511 = vpack.c.b16 %v1397, %v1395
        %v1512 = vpack.c.b16 %v1398, %v1396
        %v1513 = vpack.c.b16 %v1401, %v1399
        %v1514 = vpack.c.b16 %v1402, %v1400
        %v1515 = vpack.c.b16 %v1405, %v1403
        %v1516 = vpack.c.b16 %v1406, %v1404
        %v1517 = vpack.c.b16 %v1409, %v1407
        %v1518 = vpack.c.b16 %v1410, %v1408
        %v1519 = vpack.c.b16 %v1413, %v1411
        %v1520 = vpack.c.b16 %v1414, %v1412
        %v1521 = vpack.c.b16 %v1417, %v1415
        %v1522 = vpack.c.b16 %v1418, %v1416
        %v1523 = vpack.c.b16 %v1421, %v1419
        %v1524 = vpack.c.b16 %v1422, %v1420
        %v1525 = vpack.c.b16 %v1425, %v1423
        %v1526 = vpack.c.b16 %v1426, %v1424
        %v1527 = vpack.c.b16 %v1429, %v1427
        %v1528 = vpack.c.b16 %v1430, %v1428
        %v1529 = vpack.c.b16 %v1433, %v1431
        %v1530 = vpack.c.b16 %v1434, %v1432
        %v1531 = vpack.c.b16 %v1437, %v1435
        %v1532 = vpack.c.b16 %v1438, %v1436
        %v1533 = vpack.c.b16 %v1441, %v1439
        %v1534 = vpack.c.b16 %v1442, %v1440
        %v1535 = vpack.c.b16 %v1445, %v1443
        %v1536 = vpack.c.b16 %v1446, %v1444
        %v1537 = vpack.c.b16 %v1449, %v1447
        %v1538 = vpack.c.b16 %v1450, %v1448
        %v1539 = vpack.c.b16 %v1453, %v1451
        %v1540 = vpack.c.b16 %v1454, %v1452
        %v1541 = vpack.c.b16 %v1457, %v1455
        %v1542 = vpack.c.b16 %v1458, %v1456
        %v1543 = vpack.c.b16 %v1461, %v1459
        %v1544 = vpack.c.b16 %v1462, %v1460
        %v1545 = vpack.c.b16 %v1465, %v1463
        %v1546 = vpack.c.b16 %v1466, %v1464
        %v1547 = vpack.c.b16 %v1469, %v1467
        %v1548 = vpack.c.b16 %v1470, %v1468
        %v1549 = vpack.c.b16 %v1473, %v1471
        %v1550 = vpack.c.b16 %v1474, %v1472
        %v1551 = vpack.c.b16 %v1477, %v1475
        %v1552 = vpack.c.b16 %v1478, %v1476
        %v1553 = vpack.c.b16 %v1481, %v1479
        %v1554 = vpack.c.b16 %v1482, %v1480
        %v1555 = vpack.c.b16 %v1485, %v1483
        %v1556 = vpack.c.b16 %v1486, %v1484
        %v1557 = vpack.c.b16 %v1489, %v1487
        %v1558 = vpack.c.b16 %v1490, %v1488
        %v1559 = vpack.c.b16 %v1493, %v1491
        %v1560 = vpack.c.b16 %v1494, %v1492
        %v1561 = vpack.c.b16 %v1497, %v1495
        %v1562 = vpack.c.b16 %v1498, %v1496
        %1627 = vmatpush.bf16.msra.mxu0 %v1513
        %1628 = vmatpush.bf16.msra.mxu0 %v1511
        %1629 = vmatpush.bf16.msra.mxu0 %v1509
        %1630 = vmatpush.bf16.msra.mxu0 %v1507
        %1631 = vmatpush.bf16.msra.mxu0 %v1505
        %1632 = vmatpush.bf16.msra.mxu0 %v1503
        %1633 = vmatpush.bf16.msra.mxu0 %v1501
        %1634 = vmatpush.bf16.msra.mxu0 %v1499
        %1635 = vmatmul.bf16.gmra.mxu0 %v1281
        %v1636 = vpop.f32.mrf.mxu0
        %v1637 = vadd.f32 0.0, %v1636
        %v1638 = vpop.f32.mrf.mxu0
        %1639 = vdwg.mxu0
        %1640 = vmatpush.bf16.msra.mxu0 %v1529
        %1641 = vmatpush.bf16.msra.mxu0 %v1527
        %1642 = vmatpush.bf16.msra.mxu0 %v1525
        %1643 = vmatpush.bf16.msra.mxu0 %v1523
        %1644 = vmatpush.bf16.msra.mxu0 %v1521
        %1645 = vmatpush.bf16.msra.mxu0 %v1519
        %1646 = vmatpush.bf16.msra.mxu0 %v1517
        %1647 = vmatpush.bf16.msra.mxu0 %v1515
        %1648 = vmatmul.bf16.gmra.mxu0 %v1288
        %v1649 = vpop.f32.mrf.mxu0
        %v1650 = vadd.f32 %v1637, %v1649
        %v1651 = vpop.f32.mrf.mxu0
        %1652 = vdwg.mxu0
        %1653 = vmatpush.bf16.msra.mxu0 %v1545
        %1654 = vmatpush.bf16.msra.mxu0 %v1543
        %1655 = vmatpush.bf16.msra.mxu0 %v1541
        %1656 = vmatpush.bf16.msra.mxu0 %v1539
        %1657 = vmatpush.bf16.msra.mxu0 %v1537
        %1658 = vmatpush.bf16.msra.mxu0 %v1535
        %1659 = vmatpush.bf16.msra.mxu0 %v1533
        %1660 = vmatpush.bf16.msra.mxu0 %v1531
        %1661 = vmatmul.bf16.gmra.mxu0 %v1295
        %v1662 = vpop.f32.mrf.mxu0
        %v1663 = vadd.f32 %v1650, %v1662
        %v1664 = vpop.f32.mrf.mxu0
        %1665 = vdwg.mxu0
        %1666 = vmatpush.bf16.msra.mxu0 %v1561
        %1667 = vmatpush.bf16.msra.mxu0 %v1559
        %1668 = vmatpush.bf16.msra.mxu0 %v1557
        %1669 = vmatpush.bf16.msra.mxu0 %v1555
        %1670 = vmatpush.bf16.msra.mxu0 %v1553
        %1671 = vmatpush.bf16.msra.mxu0 %v1551
        %1672 = vmatpush.bf16.msra.mxu0 %v1549
        %1673 = vmatpush.bf16.msra.mxu0 %v1547
        %1674 = vmatmul.bf16.gmra.mxu0 %v1302
        %v1675 = vpop.f32.mrf.mxu0
        %v1676 = vadd.f32 %v1663, %v1675
        %v1677 = vpop.f32.mrf.mxu0
        %1678 = vdwg.mxu0
        %1679 = vmatpush.bf16.msra.mxu0 %v1514
        %1680 = vmatpush.bf16.msra.mxu0 %v1512
        %1681 = vmatpush.bf16.msra.mxu0 %v1510
        %1682 = vmatpush.bf16.msra.mxu0 %v1508
        %1683 = vmatpush.bf16.msra.mxu0 %v1506
        %1684 = vmatpush.bf16.msra.mxu0 %v1504
        %1685 = vmatpush.bf16.msra.mxu0 %v1502
        %1686 = vmatpush.bf16.msra.mxu0 %v1500
        %1687 = vmatmul.bf16.gmra.mxu0 %v1281
        %v1688 = vpop.f32.mrf.mxu0
        %v1689 = vadd.f32 0.0, %v1688
        %v1690 = vpop.f32.mrf.mxu0
        %1691 = vdwg.mxu0
        %1692 = vmatpush.bf16.msra.mxu0 %v1530
        %1693 = vmatpush.bf16.msra.mxu0 %v1528
        %1694 = vmatpush.bf16.msra.mxu0 %v1526
        %1695 = vmatpush.bf16.msra.mxu0 %v1524
        %1696 = vmatpush.bf16.msra.mxu0 %v1522
        %1697 = vmatpush.bf16.msra.mxu0 %v1520
        %1698 = vmatpush.bf16.msra.mxu0 %v1518
        %1699 = vmatpush.bf16.msra.mxu0 %v1516
        %1700 = vmatmul.bf16.gmra.mxu0 %v1288
        %v1701 = vpop.f32.mrf.mxu0
        %v1702 = vadd.f32 %v1689, %v1701
        %v1703 = vpop.f32.mrf.mxu0
        %1704 = vdwg.mxu0
        %1705 = vmatpush.bf16.msra.mxu0 %v1546
        %1706 = vmatpush.bf16.msra.mxu0 %v1544
        %1707 = vmatpush.bf16.msra.mxu0 %v1542
        %1708 = vmatpush.bf16.msra.mxu0 %v1540
        %1709 = vmatpush.bf16.msra.mxu0 %v1538
        %1710 = vmatpush.bf16.msra.mxu0 %v1536
        %1711 = vmatpush.bf16.msra.mxu0 %v1534
        %1712 = vmatpush.bf16.msra.mxu0 %v1532
        %1713 = vmatmul.bf16.gmra.mxu0 %v1295
        %v1714 = vpop.f32.mrf.mxu0
        %v1715 = vadd.f32 %v1702, %v1714
        %v1716 = vpop.f32.mrf.mxu0
        %1717 = vdwg.mxu0
        %1718 = vmatpush.bf16.msra.mxu0 %v1562
        %1719 = vmatpush.bf16.msra.mxu0 %v1560
        %1720 = vmatpush.bf16.msra.mxu0 %v1558
        %1721 = vmatpush.bf16.msra.mxu0 %v1556
        %1722 = vmatpush.bf16.msra.mxu0 %v1554
        %1723 = vmatpush.bf16.msra.mxu0 %v1552
        %1724 = vmatpush.bf16.msra.mxu0 %v1550
        %1725 = vmatpush.bf16.msra.mxu0 %v1548
        %1726 = vmatmul.bf16.gmra.mxu0 %v1302
        %v1727 = vpop.f32.mrf.mxu0
        %v1728 = vadd.f32 %v1715, %v1727
        %v1729 = vpop.f32.mrf.mxu0
        %1730 = vdwg.mxu0
        %v1795 = vunpack.c.l.b16 %v1138
        %v1796 = vunpack.c.h.b16 %v1138
        %v1797 = vunpack.c.l.b16 %v1139
        %v1798 = vunpack.c.h.b16 %v1139
        %v1799 = vunpack.c.l.b16 %v1140
        %v1800 = vunpack.c.h.b16 %v1140
        %v1801 = vunpack.c.l.b16 %v1141
        %v1802 = vunpack.c.h.b16 %v1141
        %v1803 = vunpack.c.l.b16 %v1142
        %v1804 = vunpack.c.h.b16 %v1142
        %v1805 = vunpack.c.l.b16 %v1143
        %v1806 = vunpack.c.h.b16 %v1143
        %v1807 = vunpack.c.l.b16 %v1144
        %v1808 = vunpack.c.h.b16 %v1144
        %v1809 = vunpack.c.l.b16 %v1145
        %v1810 = vunpack.c.h.b16 %v1145
        %v1811 = vunpack.c.l.b16 %v1146
        %v1812 = vunpack.c.h.b16 %v1146
        %v1813 = vunpack.c.l.b16 %v1147
        %v1814 = vunpack.c.h.b16 %v1147
        %v1815 = vunpack.c.l.b16 %v1148
        %v1816 = vunpack.c.h.b16 %v1148
        %v1817 = vunpack.c.l.b16 %v1149
        %v1818 = vunpack.c.h.b16 %v1149
        %v1819 = vunpack.c.l.b16 %v1150
        %v1820 = vunpack.c.h.b16 %v1150
        %v1821 = vunpack.c.l.b16 %v1151
        %v1822 = vunpack.c.h.b16 %v1151
        %v1823 = vunpack.c.l.b16 %v1152
        %v1824 = vunpack.c.h.b16 %v1152
        %v1825 = vunpack.c.l.b16 %v1153
        %v1826 = vunpack.c.h.b16 %v1153
        %v1827 = vunpack.c.l.b16 %v1154
        %v1828 = vunpack.c.h.b16 %v1154
        %v1829 = vunpack.c.l.b16 %v1155
        %v1830 = vunpack.c.h.b16 %v1155
        %v1831 = vunpack.c.l.b16 %v1156
        %v1832 = vunpack.c.h.b16 %v1156
        %v1833 = vunpack.c.l.b16 %v1157
        %v1834 = vunpack.c.h.b16 %v1157
        %v1835 = vunpack.c.l.b16 %v1158
        %v1836 = vunpack.c.h.b16 %v1158
        %v1837 = vunpack.c.l.b16 %v1159
        %v1838 = vunpack.c.h.b16 %v1159
        %v1839 = vunpack.c.l.b16 %v1160
        %v1840 = vunpack.c.h.b16 %v1160
        %v1841 = vunpack.c.l.b16 %v1161
        %v1842 = vunpack.c.h.b16 %v1161
        %v1843 = vunpack.c.l.b16 %v1162
        %v1844 = vunpack.c.h.b16 %v1162
        %v1845 = vunpack.c.l.b16 %v1163
        %v1846 = vunpack.c.h.b16 %v1163
        %v1847 = vunpack.c.l.b16 %v1164
        %v1848 = vunpack.c.h.b16 %v1164
        %v1849 = vunpack.c.l.b16 %v1165
        %v1850 = vunpack.c.h.b16 %v1165
        %v1851 = vunpack.c.l.b16 %v1166
        %v1852 = vunpack.c.h.b16 %v1166
        %v1853 = vunpack.c.l.b16 %v1167
        %v1854 = vunpack.c.h.b16 %v1167
        %v1855 = vunpack.c.l.b16 %v1168
        %v1856 = vunpack.c.h.b16 %v1168
        %v1857 = vunpack.c.l.b16 %v1169
        %v1858 = vunpack.c.h.b16 %v1169
        %v1859 = vunpack.c.l.b16 %v1170
        %v1860 = vunpack.c.h.b16 %v1170
        %v1861 = vunpack.c.l.b16 %v1171
        %v1862 = vunpack.c.h.b16 %v1171
        %v1863 = vunpack.c.l.b16 %v1172
        %v1864 = vunpack.c.h.b16 %v1172
        %v1865 = vunpack.c.l.b16 %v1173
        %v1866 = vunpack.c.h.b16 %v1173
        %v1867 = vunpack.c.l.b16 %v1174
        %v1868 = vunpack.c.h.b16 %v1174
        %v1869 = vunpack.c.l.b16 %v1175
        %v1870 = vunpack.c.h.b16 %v1175
        %v1871 = vunpack.c.l.b16 %v1176
        %v1872 = vunpack.c.h.b16 %v1176
        %v1873 = vunpack.c.l.b16 %v1177
        %v1874 = vunpack.c.h.b16 %v1177
        %v1875 = vunpack.c.l.b16 %v1178
        %v1876 = vunpack.c.h.b16 %v1178
        %v1877 = vunpack.c.l.b16 %v1179
        %v1878 = vunpack.c.h.b16 %v1179
        %v1879 = vunpack.c.l.b16 %v1180
        %v1880 = vunpack.c.h.b16 %v1180
        %v1881 = vunpack.c.l.b16 %v1181
        %v1882 = vunpack.c.h.b16 %v1181
        %v1883 = vunpack.c.l.b16 %v1182
        %v1884 = vunpack.c.h.b16 %v1182
        %v1885 = vunpack.c.l.b16 %v1183
        %v1886 = vunpack.c.h.b16 %v1183
        %v1887 = vunpack.c.l.b16 %v1184
        %v1888 = vunpack.c.h.b16 %v1184
        %v1889 = vunpack.c.l.b16 %v1185
        %v1890 = vunpack.c.h.b16 %v1185
        %v1891 = vunpack.c.l.b16 %v1186
        %v1892 = vunpack.c.h.b16 %v1186
        %v1893 = vunpack.c.l.b16 %v1187
        %v1894 = vunpack.c.h.b16 %v1187
        %v1895 = vunpack.c.l.b16 %v1188
        %v1896 = vunpack.c.h.b16 %v1188
        %v1897 = vunpack.c.l.b16 %v1189
        %v1898 = vunpack.c.h.b16 %v1189
        %v1899 = vunpack.c.l.b16 %v1190
        %v1900 = vunpack.c.h.b16 %v1190
        %v1901 = vunpack.c.l.b16 %v1191
        %v1902 = vunpack.c.h.b16 %v1191
        %v1903 = vunpack.c.l.b16 %v1192
        %v1904 = vunpack.c.h.b16 %v1192
        %v1905 = vunpack.c.l.b16 %v1193
        %v1906 = vunpack.c.h.b16 %v1193
        %v1907 = vunpack.c.l.b16 %v1194
        %v1908 = vunpack.c.h.b16 %v1194
        %v1909 = vunpack.c.l.b16 %v1195
        %v1910 = vunpack.c.h.b16 %v1195
        %v1911 = vunpack.c.l.b16 %v1196
        %v1912 = vunpack.c.h.b16 %v1196
        %v1913 = vunpack.c.l.b16 %v1197
        %v1914 = vunpack.c.h.b16 %v1197
        %v1915 = vunpack.c.l.b16 %v1198
        %v1916 = vunpack.c.h.b16 %v1198
        %v1917 = vunpack.c.l.b16 %v1199
        %v1918 = vunpack.c.h.b16 %v1199
        %v1919 = vunpack.c.l.b16 %v1200
        %v1920 = vunpack.c.h.b16 %v1200
        %v1921 = vunpack.c.l.b16 %v1201
        %v1922 = vunpack.c.h.b16 %v1201
        %v1923 = vpack.c.b16 %v1797, %v1795
        %v1924 = vpack.c.b16 %v1798, %v1796
        %v1925 = vpack.c.b16 %v1801, %v1799
        %v1926 = vpack.c.b16 %v1802, %v1800
        %v1927 = vpack.c.b16 %v1805, %v1803
        %v1928 = vpack.c.b16 %v1806, %v1804
        %v1929 = vpack.c.b16 %v1809, %v1807
        %v1930 = vpack.c.b16 %v1810, %v1808
        %v1931 = vpack.c.b16 %v1813, %v1811
        %v1932 = vpack.c.b16 %v1814, %v1812
        %v1933 = vpack.c.b16 %v1817, %v1815
        %v1934 = vpack.c.b16 %v1818, %v1816
        %v1935 = vpack.c.b16 %v1821, %v1819
        %v1936 = vpack.c.b16 %v1822, %v1820
        %v1937 = vpack.c.b16 %v1825, %v1823
        %v1938 = vpack.c.b16 %v1826, %v1824
        %v1939 = vpack.c.b16 %v1829, %v1827
        %v1940 = vpack.c.b16 %v1830, %v1828
        %v1941 = vpack.c.b16 %v1833, %v1831
        %v1942 = vpack.c.b16 %v1834, %v1832
        %v1943 = vpack.c.b16 %v1837, %v1835
        %v1944 = vpack.c.b16 %v1838, %v1836
        %v1945 = vpack.c.b16 %v1841, %v1839
        %v1946 = vpack.c.b16 %v1842, %v1840
        %v1947 = vpack.c.b16 %v1845, %v1843
        %v1948 = vpack.c.b16 %v1846, %v1844
        %v1949 = vpack.c.b16 %v1849, %v1847
        %v1950 = vpack.c.b16 %v1850, %v1848
        %v1951 = vpack.c.b16 %v1853, %v1851
        %v1952 = vpack.c.b16 %v1854, %v1852
        %v1953 = vpack.c.b16 %v1857, %v1855
        %v1954 = vpack.c.b16 %v1858, %v1856
        %v1955 = vpack.c.b16 %v1861, %v1859
        %v1956 = vpack.c.b16 %v1862, %v1860
        %v1957 = vpack.c.b16 %v1865, %v1863
        %v1958 = vpack.c.b16 %v1866, %v1864
        %v1959 = vpack.c.b16 %v1869, %v1867
        %v1960 = vpack.c.b16 %v1870, %v1868
        %v1961 = vpack.c.b16 %v1873, %v1871
        %v1962 = vpack.c.b16 %v1874, %v1872
        %v1963 = vpack.c.b16 %v1877, %v1875
        %v1964 = vpack.c.b16 %v1878, %v1876
        %v1965 = vpack.c.b16 %v1881, %v1879
        %v1966 = vpack.c.b16 %v1882, %v1880
        %v1967 = vpack.c.b16 %v1885, %v1883
        %v1968 = vpack.c.b16 %v1886, %v1884
        %v1969 = vpack.c.b16 %v1889, %v1887
        %v1970 = vpack.c.b16 %v1890, %v1888
        %v1971 = vpack.c.b16 %v1893, %v1891
        %v1972 = vpack.c.b16 %v1894, %v1892
        %v1973 = vpack.c.b16 %v1897, %v1895
        %v1974 = vpack.c.b16 %v1898, %v1896
        %v1975 = vpack.c.b16 %v1901, %v1899
        %v1976 = vpack.c.b16 %v1902, %v1900
        %v1977 = vpack.c.b16 %v1905, %v1903
        %v1978 = vpack.c.b16 %v1906, %v1904
        %v1979 = vpack.c.b16 %v1909, %v1907
        %v1980 = vpack.c.b16 %v1910, %v1908
        %v1981 = vpack.c.b16 %v1913, %v1911
        %v1982 = vpack.c.b16 %v1914, %v1912
        %v1983 = vpack.c.b16 %v1917, %v1915
        %v1984 = vpack.c.b16 %v1918, %v1916
        %v1985 = vpack.c.b16 %v1921, %v1919
        %v1986 = vpack.c.b16 %v1922, %v1920
        %2051 = vmatpush.bf16.msra.mxu0 %v1937
        %2052 = vmatpush.bf16.msra.mxu0 %v1935
        %2053 = vmatpush.bf16.msra.mxu0 %v1933
        %2054 = vmatpush.bf16.msra.mxu0 %v1931
        %2055 = vmatpush.bf16.msra.mxu0 %v1929
        %2056 = vmatpush.bf16.msra.mxu0 %v1927
        %2057 = vmatpush.bf16.msra.mxu0 %v1925
        %2058 = vmatpush.bf16.msra.mxu0 %v1923
        %2059 = vmatmul.bf16.gmra.mxu0 %v1134
        %v2060 = vpop.f32.mrf.mxu0
        %v2061 = vadd.f32 %v1676, %v2060
        %v2062 = vpop.f32.mrf.mxu0
        %2063 = vdwg.mxu0
        %2064 = vmatpush.bf16.msra.mxu0 %v1953
        %2065 = vmatpush.bf16.msra.mxu0 %v1951
        %2066 = vmatpush.bf16.msra.mxu0 %v1949
        %2067 = vmatpush.bf16.msra.mxu0 %v1947
        %2068 = vmatpush.bf16.msra.mxu0 %v1945
        %2069 = vmatpush.bf16.msra.mxu0 %v1943
        %2070 = vmatpush.bf16.msra.mxu0 %v1941
        %2071 = vmatpush.bf16.msra.mxu0 %v1939
        %2072 = vmatmul.bf16.gmra.mxu0 %v1135
        %v2073 = vpop.f32.mrf.mxu0
        %v2074 = vadd.f32 %v2061, %v2073
        %v2075 = vpop.f32.mrf.mxu0
        %2076 = vdwg.mxu0
        %2077 = vmatpush.bf16.msra.mxu0 %v1969
        %2078 = vmatpush.bf16.msra.mxu0 %v1967
        %2079 = vmatpush.bf16.msra.mxu0 %v1965
        %2080 = vmatpush.bf16.msra.mxu0 %v1963
        %2081 = vmatpush.bf16.msra.mxu0 %v1961
        %2082 = vmatpush.bf16.msra.mxu0 %v1959
        %2083 = vmatpush.bf16.msra.mxu0 %v1957
        %2084 = vmatpush.bf16.msra.mxu0 %v1955
        %2085 = vmatmul.bf16.gmra.mxu0 %v1136
        %v2086 = vpop.f32.mrf.mxu0
        %v2087 = vadd.f32 %v2074, %v2086
        %v2088 = vpop.f32.mrf.mxu0
        %2089 = vdwg.mxu0
        %2090 = vmatpush.bf16.msra.mxu0 %v1985
        %2091 = vmatpush.bf16.msra.mxu0 %v1983
        %2092 = vmatpush.bf16.msra.mxu0 %v1981
        %2093 = vmatpush.bf16.msra.mxu0 %v1979
        %2094 = vmatpush.bf16.msra.mxu0 %v1977
        %2095 = vmatpush.bf16.msra.mxu0 %v1975
        %2096 = vmatpush.bf16.msra.mxu0 %v1973
        %2097 = vmatpush.bf16.msra.mxu0 %v1971
        %2098 = vmatmul.bf16.gmra.mxu0 %v1137
        %v2099 = vpop.f32.mrf.mxu0
        %v2100 = vadd.f32 %v2087, %v2099
        %v2101 = vpop.f32.mrf.mxu0
        %2102 = vdwg.mxu0
        %2103 = vmatpush.bf16.msra.mxu0 %v1938
        %2104 = vmatpush.bf16.msra.mxu0 %v1936
        %2105 = vmatpush.bf16.msra.mxu0 %v1934
        %2106 = vmatpush.bf16.msra.mxu0 %v1932
        %2107 = vmatpush.bf16.msra.mxu0 %v1930
        %2108 = vmatpush.bf16.msra.mxu0 %v1928
        %2109 = vmatpush.bf16.msra.mxu0 %v1926
        %2110 = vmatpush.bf16.msra.mxu0 %v1924
        %2111 = vmatmul.bf16.gmra.mxu0 %v1134
        %v2112 = vpop.f32.mrf.mxu0
        %v2113 = vadd.f32 %v1728, %v2112
        %v2114 = vpop.f32.mrf.mxu0
        %2115 = vdwg.mxu0
        %2116 = vmatpush.bf16.msra.mxu0 %v1954
        %2117 = vmatpush.bf16.msra.mxu0 %v1952
        %2118 = vmatpush.bf16.msra.mxu0 %v1950
        %2119 = vmatpush.bf16.msra.mxu0 %v1948
        %2120 = vmatpush.bf16.msra.mxu0 %v1946
        %2121 = vmatpush.bf16.msra.mxu0 %v1944
        %2122 = vmatpush.bf16.msra.mxu0 %v1942
        %2123 = vmatpush.bf16.msra.mxu0 %v1940
        %2124 = vmatmul.bf16.gmra.mxu0 %v1135
        %v2125 = vpop.f32.mrf.mxu0
        %v2126 = vadd.f32 %v2113, %v2125
        %v2127 = vpop.f32.mrf.mxu0
        %2128 = vdwg.mxu0
        %2129 = vmatpush.bf16.msra.mxu0 %v1970
        %2130 = vmatpush.bf16.msra.mxu0 %v1968
        %2131 = vmatpush.bf16.msra.mxu0 %v1966
        %2132 = vmatpush.bf16.msra.mxu0 %v1964
        %2133 = vmatpush.bf16.msra.mxu0 %v1962
        %2134 = vmatpush.bf16.msra.mxu0 %v1960
        %2135 = vmatpush.bf16.msra.mxu0 %v1958
        %2136 = vmatpush.bf16.msra.mxu0 %v1956
        %2137 = vmatmul.bf16.gmra.mxu0 %v1136
        %v2138 = vpop.f32.mrf.mxu0
        %v2139 = vadd.f32 %v2126, %v2138
        %v2140 = vpop.f32.mrf.mxu0
        %2141 = vdwg.mxu0
        %2142 = vmatpush.bf16.msra.mxu0 %v1986
        %2143 = vmatpush.bf16.msra.mxu0 %v1984
        %2144 = vmatpush.bf16.msra.mxu0 %v1982
        %2145 = vmatpush.bf16.msra.mxu0 %v1980
        %2146 = vmatpush.bf16.msra.mxu0 %v1978
        %2147 = vmatpush.bf16.msra.mxu0 %v1976
        %2148 = vmatpush.bf16.msra.mxu0 %v1974
        %2149 = vmatpush.bf16.msra.mxu0 %v1972
        %2150 = vmatmul.bf16.gmra.mxu0 %v1137
        %v2151 = vpop.f32.mrf.mxu0
        %v2152 = vadd.f32 %v2139, %v2151
        %v2153 = vpop.f32.mrf.mxu0
        %2154 = vdwg.mxu0
        %v2155 = vld [vmem:[#allocation2] sm:$0x3c]
        %v2156 = vld [vmem:[#allocation2 + $0x8] sm:$0x3c]
        %v2157 = vld [vmem:[#allocation2 + $0x10] sm:$0x3c]
        %v2158 = vld [vmem:[#allocation2 + $0x18] sm:$0x3c]
        %v2159 = vpack.c.bf16 %v2155, %v2155
        %v2160 = vpack.c.bf16 %v2156, %v2156
        %v2161 = vpack.c.bf16 %v2157, %v2157
        %v2162 = vpack.c.bf16 %v2158, %v2158
        %s2163 = scalar_lea.vmem %s3, 1024
        %v2164 = vld [vmem:[%s2163] sm:$0xff]
        %v2165 = vld [vmem:[%s2163 + $0x8] sm:$0xff]
        %v2166 = vld [vmem:[%s2163 + $0x10] sm:$0xff]
        %v2167 = vld [vmem:[%s2163 + $0x18] sm:$0xff]
        %v2168 = vld [vmem:[%s2163 + $0x20] sm:$0xff]
        %v2169 = vld [vmem:[%s2163 + $0x28] sm:$0xff]
        %v2170 = vld [vmem:[%s2163 + $0x30] sm:$0xff]
        %v2171 = vld [vmem:[%s2163 + $0x38] sm:$0xff]
        %v2172 = vld [vmem:[%s2163 + $0x40] sm:$0xff]
        %v2173 = vld [vmem:[%s2163 + $0x48] sm:$0xff]
        %v2174 = vld [vmem:[%s2163 + $0x50] sm:$0xff]
        %v2175 = vld [vmem:[%s2163 + $0x58] sm:$0xff]
        %v2176 = vld [vmem:[%s2163 + $0x60] sm:$0xff]
        %v2177 = vld [vmem:[%s2163 + $0x68] sm:$0xff]
        %v2178 = vld [vmem:[%s2163 + $0x70] sm:$0xff]
        %v2179 = vld [vmem:[%s2163 + $0x78] sm:$0xff]
        %v2180 = vld [vmem:[%s2163 + $0x80] sm:$0xff]
        %v2181 = vld [vmem:[%s2163 + $0x88] sm:$0xff]
        %v2182 = vld [vmem:[%s2163 + $0x90] sm:$0xff]
        %v2183 = vld [vmem:[%s2163 + $0x98] sm:$0xff]
        %v2184 = vld [vmem:[%s2163 + $0xa0] sm:$0xff]
        %v2185 = vld [vmem:[%s2163 + $0xa8] sm:$0xff]
        %v2186 = vld [vmem:[%s2163 + $0xb0] sm:$0xff]
        %v2187 = vld [vmem:[%s2163 + $0xb8] sm:$0xff]
        %v2188 = vld [vmem:[%s2163 + $0xc0] sm:$0xff]
        %v2189 = vld [vmem:[%s2163 + $0xc8] sm:$0xff]
        %v2190 = vld [vmem:[%s2163 + $0xd0] sm:$0xff]
        %v2191 = vld [vmem:[%s2163 + $0xd8] sm:$0xff]
        %v2192 = vld [vmem:[%s2163 + $0xe0] sm:$0xff]
        %v2193 = vld [vmem:[%s2163 + $0xe8] sm:$0xff]
        %v2194 = vld [vmem:[%s2163 + $0xf0] sm:$0xff]
        %v2195 = vld [vmem:[%s2163 + $0xf8] sm:$0xff]
        %v2196 = vld [vmem:[%s2163 + $0x100] sm:$0xff]
        %v2197 = vld [vmem:[%s2163 + $0x108] sm:$0xff]
        %v2198 = vld [vmem:[%s2163 + $0x110] sm:$0xff]
        %v2199 = vld [vmem:[%s2163 + $0x118] sm:$0xff]
        %v2200 = vld [vmem:[%s2163 + $0x120] sm:$0xff]
        %v2201 = vld [vmem:[%s2163 + $0x128] sm:$0xff]
        %v2202 = vld [vmem:[%s2163 + $0x130] sm:$0xff]
        %v2203 = vld [vmem:[%s2163 + $0x138] sm:$0xff]
        %v2204 = vld [vmem:[%s2163 + $0x140] sm:$0xff]
        %v2205 = vld [vmem:[%s2163 + $0x148] sm:$0xff]
        %v2206 = vld [vmem:[%s2163 + $0x150] sm:$0xff]
        %v2207 = vld [vmem:[%s2163 + $0x158] sm:$0xff]
        %v2208 = vld [vmem:[%s2163 + $0x160] sm:$0xff]
        %v2209 = vld [vmem:[%s2163 + $0x168] sm:$0xff]
        %v2210 = vld [vmem:[%s2163 + $0x170] sm:$0xff]
        %v2211 = vld [vmem:[%s2163 + $0x178] sm:$0xff]
        %v2212 = vld [vmem:[%s2163 + $0x180] sm:$0xff]
        %v2213 = vld [vmem:[%s2163 + $0x188] sm:$0xff]
        %v2214 = vld [vmem:[%s2163 + $0x190] sm:$0xff]
        %v2215 = vld [vmem:[%s2163 + $0x198] sm:$0xff]
        %v2216 = vld [vmem:[%s2163 + $0x1a0] sm:$0xff]
        %v2217 = vld [vmem:[%s2163 + $0x1a8] sm:$0xff]
        %v2218 = vld [vmem:[%s2163 + $0x1b0] sm:$0xff]
        %v2219 = vld [vmem:[%s2163 + $0x1b8] sm:$0xff]
        %v2220 = vld [vmem:[%s2163 + $0x1c0] sm:$0xff]
        %v2221 = vld [vmem:[%s2163 + $0x1c8] sm:$0xff]
        %v2222 = vld [vmem:[%s2163 + $0x1d0] sm:$0xff]
        %v2223 = vld [vmem:[%s2163 + $0x1d8] sm:$0xff]
        %v2224 = vld [vmem:[%s2163 + $0x1e0] sm:$0xff]
        %v2225 = vld [vmem:[%s2163 + $0x1e8] sm:$0xff]
        %v2226 = vld [vmem:[%s2163 + $0x1f0] sm:$0xff]
        %v2227 = vld [vmem:[%s2163 + $0x1f8] sm:$0xff]
        %v2232 = vrot.slane %v2159, 1
        %v2233 = vrot.slane %v2160, 1
        %v2234 = vrot.slane %v2161, 1
        %v2235 = vrot.slane %v2162, 1
        %v2304 = vunpack.c.l.b16 %v2164
        %v2305 = vunpack.c.h.b16 %v2164
        %v2306 = vunpack.c.l.b16 %v2165
        %v2307 = vunpack.c.h.b16 %v2165
        %v2308 = vunpack.c.l.b16 %v2166
        %v2309 = vunpack.c.h.b16 %v2166
        %v2310 = vunpack.c.l.b16 %v2167
        %v2311 = vunpack.c.h.b16 %v2167
        %v2312 = vunpack.c.l.b16 %v2168
        %v2313 = vunpack.c.h.b16 %v2168
        %v2314 = vunpack.c.l.b16 %v2169
        %v2315 = vunpack.c.h.b16 %v2169
        %v2316 = vunpack.c.l.b16 %v2170
        %v2317 = vunpack.c.h.b16 %v2170
        %v2318 = vunpack.c.l.b16 %v2171
        %v2319 = vunpack.c.h.b16 %v2171
        %v2320 = vunpack.c.l.b16 %v2172
        %v2321 = vunpack.c.h.b16 %v2172
        %v2322 = vunpack.c.l.b16 %v2173
        %v2323 = vunpack.c.h.b16 %v2173
        %v2324 = vunpack.c.l.b16 %v2174
        %v2325 = vunpack.c.h.b16 %v2174
        %v2326 = vunpack.c.l.b16 %v2175
        %v2327 = vunpack.c.h.b16 %v2175
        %v2328 = vunpack.c.l.b16 %v2176
        %v2329 = vunpack.c.h.b16 %v2176
        %v2330 = vunpack.c.l.b16 %v2177
        %v2331 = vunpack.c.h.b16 %v2177
        %v2332 = vunpack.c.l.b16 %v2178
        %v2333 = vunpack.c.h.b16 %v2178
        %v2334 = vunpack.c.l.b16 %v2179
        %v2335 = vunpack.c.h.b16 %v2179
        %v2336 = vunpack.c.l.b16 %v2180
        %v2337 = vunpack.c.h.b16 %v2180
        %v2338 = vunpack.c.l.b16 %v2181
        %v2339 = vunpack.c.h.b16 %v2181
        %v2340 = vunpack.c.l.b16 %v2182
        %v2341 = vunpack.c.h.b16 %v2182
        %v2342 = vunpack.c.l.b16 %v2183
        %v2343 = vunpack.c.h.b16 %v2183
        %v2344 = vunpack.c.l.b16 %v2184
        %v2345 = vunpack.c.h.b16 %v2184
        %v2346 = vunpack.c.l.b16 %v2185
        %v2347 = vunpack.c.h.b16 %v2185
        %v2348 = vunpack.c.l.b16 %v2186
        %v2349 = vunpack.c.h.b16 %v2186
        %v2350 = vunpack.c.l.b16 %v2187
        %v2351 = vunpack.c.h.b16 %v2187
        %v2352 = vunpack.c.l.b16 %v2188
        %v2353 = vunpack.c.h.b16 %v2188
        %v2354 = vunpack.c.l.b16 %v2189
        %v2355 = vunpack.c.h.b16 %v2189
        %v2356 = vunpack.c.l.b16 %v2190
        %v2357 = vunpack.c.h.b16 %v2190
        %v2358 = vunpack.c.l.b16 %v2191
        %v2359 = vunpack.c.h.b16 %v2191
        %v2360 = vunpack.c.l.b16 %v2192
        %v2361 = vunpack.c.h.b16 %v2192
        %v2362 = vunpack.c.l.b16 %v2193
        %v2363 = vunpack.c.h.b16 %v2193
        %v2364 = vunpack.c.l.b16 %v2194
        %v2365 = vunpack.c.h.b16 %v2194
        %v2366 = vunpack.c.l.b16 %v2195
        %v2367 = vunpack.c.h.b16 %v2195
        %v2368 = vunpack.c.l.b16 %v2196
        %v2369 = vunpack.c.h.b16 %v2196
        %v2370 = vunpack.c.l.b16 %v2197
        %v2371 = vunpack.c.h.b16 %v2197
        %v2372 = vunpack.c.l.b16 %v2198
        %v2373 = vunpack.c.h.b16 %v2198
        %v2374 = vunpack.c.l.b16 %v2199
        %v2375 = vunpack.c.h.b16 %v2199
        %v2376 = vunpack.c.l.b16 %v2200
        %v2377 = vunpack.c.h.b16 %v2200
        %v2378 = vunpack.c.l.b16 %v2201
        %v2379 = vunpack.c.h.b16 %v2201
        %v2380 = vunpack.c.l.b16 %v2202
        %v2381 = vunpack.c.h.b16 %v2202
        %v2382 = vunpack.c.l.b16 %v2203
        %v2383 = vunpack.c.h.b16 %v2203
        %v2384 = vunpack.c.l.b16 %v2204
        %v2385 = vunpack.c.h.b16 %v2204
        %v2386 = vunpack.c.l.b16 %v2205
        %v2387 = vunpack.c.h.b16 %v2205
        %v2388 = vunpack.c.l.b16 %v2206
        %v2389 = vunpack.c.h.b16 %v2206
        %v2390 = vunpack.c.l.b16 %v2207
        %v2391 = vunpack.c.h.b16 %v2207
        %v2392 = vunpack.c.l.b16 %v2208
        %v2393 = vunpack.c.h.b16 %v2208
        %v2394 = vunpack.c.l.b16 %v2209
        %v2395 = vunpack.c.h.b16 %v2209
        %v2396 = vunpack.c.l.b16 %v2210
        %v2397 = vunpack.c.h.b16 %v2210
        %v2398 = vunpack.c.l.b16 %v2211
        %v2399 = vunpack.c.h.b16 %v2211
        %v2400 = vunpack.c.l.b16 %v2212
        %v2401 = vunpack.c.h.b16 %v2212
        %v2402 = vunpack.c.l.b16 %v2213
        %v2403 = vunpack.c.h.b16 %v2213
        %v2404 = vunpack.c.l.b16 %v2214
        %v2405 = vunpack.c.h.b16 %v2214
        %v2406 = vunpack.c.l.b16 %v2215
        %v2407 = vunpack.c.h.b16 %v2215
        %v2408 = vunpack.c.l.b16 %v2216
        %v2409 = vunpack.c.h.b16 %v2216
        %v2410 = vunpack.c.l.b16 %v2217
        %v2411 = vunpack.c.h.b16 %v2217
        %v2412 = vunpack.c.l.b16 %v2218
        %v2413 = vunpack.c.h.b16 %v2218
        %v2414 = vunpack.c.l.b16 %v2219
        %v2415 = vunpack.c.h.b16 %v2219
        %v2416 = vunpack.c.l.b16 %v2220
        %v2417 = vunpack.c.h.b16 %v2220
        %v2418 = vunpack.c.l.b16 %v2221
        %v2419 = vunpack.c.h.b16 %v2221
        %v2420 = vunpack.c.l.b16 %v2222
        %v2421 = vunpack.c.h.b16 %v2222
        %v2422 = vunpack.c.l.b16 %v2223
        %v2423 = vunpack.c.h.b16 %v2223
        %v2424 = vunpack.c.l.b16 %v2224
        %v2425 = vunpack.c.h.b16 %v2224
        %v2426 = vunpack.c.l.b16 %v2225
        %v2427 = vunpack.c.h.b16 %v2225
        %v2428 = vunpack.c.l.b16 %v2226
        %v2429 = vunpack.c.h.b16 %v2226
        %v2430 = vunpack.c.l.b16 %v2227
        %v2431 = vunpack.c.h.b16 %v2227
        %v2432 = vpack.c.b16 %v2306, %v2304
        %v2433 = vpack.c.b16 %v2307, %v2305
        %v2434 = vpack.c.b16 %v2310, %v2308
        %v2435 = vpack.c.b16 %v2311, %v2309
        %v2436 = vpack.c.b16 %v2314, %v2312
        %v2437 = vpack.c.b16 %v2315, %v2313
        %v2438 = vpack.c.b16 %v2318, %v2316
        %v2439 = vpack.c.b16 %v2319, %v2317
        %v2440 = vpack.c.b16 %v2322, %v2320
        %v2441 = vpack.c.b16 %v2323, %v2321
        %v2442 = vpack.c.b16 %v2326, %v2324
        %v2443 = vpack.c.b16 %v2327, %v2325
        %v2444 = vpack.c.b16 %v2330, %v2328
        %v2445 = vpack.c.b16 %v2331, %v2329
        %v2446 = vpack.c.b16 %v2334, %v2332
        %v2447 = vpack.c.b16 %v2335, %v2333
        %v2448 = vpack.c.b16 %v2338, %v2336
        %v2449 = vpack.c.b16 %v2339, %v2337
        %v2450 = vpack.c.b16 %v2342, %v2340
        %v2451 = vpack.c.b16 %v2343, %v2341
        %v2452 = vpack.c.b16 %v2346, %v2344
        %v2453 = vpack.c.b16 %v2347, %v2345
        %v2454 = vpack.c.b16 %v2350, %v2348
        %v2455 = vpack.c.b16 %v2351, %v2349
        %v2456 = vpack.c.b16 %v2354, %v2352
        %v2457 = vpack.c.b16 %v2355, %v2353
        %v2458 = vpack.c.b16 %v2358, %v2356
        %v2459 = vpack.c.b16 %v2359, %v2357
        %v2460 = vpack.c.b16 %v2362, %v2360
        %v2461 = vpack.c.b16 %v2363, %v2361
        %v2462 = vpack.c.b16 %v2366, %v2364
        %v2463 = vpack.c.b16 %v2367, %v2365
        %v2464 = vpack.c.b16 %v2370, %v2368
        %v2465 = vpack.c.b16 %v2371, %v2369
        %v2466 = vpack.c.b16 %v2374, %v2372
        %v2467 = vpack.c.b16 %v2375, %v2373
        %v2468 = vpack.c.b16 %v2378, %v2376
        %v2469 = vpack.c.b16 %v2379, %v2377
        %v2470 = vpack.c.b16 %v2382, %v2380
        %v2471 = vpack.c.b16 %v2383, %v2381
        %v2472 = vpack.c.b16 %v2386, %v2384
        %v2473 = vpack.c.b16 %v2387, %v2385
        %v2474 = vpack.c.b16 %v2390, %v2388
        %v2475 = vpack.c.b16 %v2391, %v2389
        %v2476 = vpack.c.b16 %v2394, %v2392
        %v2477 = vpack.c.b16 %v2395, %v2393
        %v2478 = vpack.c.b16 %v2398, %v2396
        %v2479 = vpack.c.b16 %v2399, %v2397
        %v2480 = vpack.c.b16 %v2402, %v2400
        %v2481 = vpack.c.b16 %v2403, %v2401
        %v2482 = vpack.c.b16 %v2406, %v2404
        %v2483 = vpack.c.b16 %v2407, %v2405
        %v2484 = vpack.c.b16 %v2410, %v2408
        %v2485 = vpack.c.b16 %v2411, %v2409
        %v2486 = vpack.c.b16 %v2414, %v2412
        %v2487 = vpack.c.b16 %v2415, %v2413
        %v2488 = vpack.c.b16 %v2418, %v2416
        %v2489 = vpack.c.b16 %v2419, %v2417
        %v2490 = vpack.c.b16 %v2422, %v2420
        %v2491 = vpack.c.b16 %v2423, %v2421
        %v2492 = vpack.c.b16 %v2426, %v2424
        %v2493 = vpack.c.b16 %v2427, %v2425
        %v2494 = vpack.c.b16 %v2430, %v2428
        %v2495 = vpack.c.b16 %v2431, %v2429
        %2560 = vmatpush.bf16.msra.mxu0 %v2446
        %2561 = vmatpush.bf16.msra.mxu0 %v2444
        %2562 = vmatpush.bf16.msra.mxu0 %v2442
        %2563 = vmatpush.bf16.msra.mxu0 %v2440
        %2564 = vmatpush.bf16.msra.mxu0 %v2438
        %2565 = vmatpush.bf16.msra.mxu0 %v2436
        %2566 = vmatpush.bf16.msra.mxu0 %v2434
        %2567 = vmatpush.bf16.msra.mxu0 %v2432
        %2568 = vmatmul.bf16.gmra.mxu0 %v2232
        %v2569 = vpop.f32.mrf.mxu0
        %v2570 = vadd.f32 0.0, %v2569
        %v2571 = vpop.f32.mrf.mxu0
        %2572 = vdwg.mxu0
        %2573 = vmatpush.bf16.msra.mxu0 %v2462
        %2574 = vmatpush.bf16.msra.mxu0 %v2460
        %2575 = vmatpush.bf16.msra.mxu0 %v2458
        %2576 = vmatpush.bf16.msra.mxu0 %v2456
        %2577 = vmatpush.bf16.msra.mxu0 %v2454
        %2578 = vmatpush.bf16.msra.mxu0 %v2452
        %2579 = vmatpush.bf16.msra.mxu0 %v2450
        %2580 = vmatpush.bf16.msra.mxu0 %v2448
        %2581 = vmatmul.bf16.gmra.mxu0 %v2233
        %v2582 = vpop.f32.mrf.mxu0
        %v2583 = vadd.f32 %v2570, %v2582
        %v2584 = vpop.f32.mrf.mxu0
        %2585 = vdwg.mxu0
        %2586 = vmatpush.bf16.msra.mxu0 %v2478
        %2587 = vmatpush.bf16.msra.mxu0 %v2476
        %2588 = vmatpush.bf16.msra.mxu0 %v2474
        %2589 = vmatpush.bf16.msra.mxu0 %v2472
        %2590 = vmatpush.bf16.msra.mxu0 %v2470
        %2591 = vmatpush.bf16.msra.mxu0 %v2468
        %2592 = vmatpush.bf16.msra.mxu0 %v2466
        %2593 = vmatpush.bf16.msra.mxu0 %v2464
        %2594 = vmatmul.bf16.gmra.mxu0 %v2234
        %v2595 = vpop.f32.mrf.mxu0
        %v2596 = vadd.f32 %v2583, %v2595
        %v2597 = vpop.f32.mrf.mxu0
        %2598 = vdwg.mxu0
        %2599 = vmatpush.bf16.msra.mxu0 %v2494
        %2600 = vmatpush.bf16.msra.mxu0 %v2492
        %2601 = vmatpush.bf16.msra.mxu0 %v2490
        %2602 = vmatpush.bf16.msra.mxu0 %v2488
        %2603 = vmatpush.bf16.msra.mxu0 %v2486
        %2604 = vmatpush.bf16.msra.mxu0 %v2484
        %2605 = vmatpush.bf16.msra.mxu0 %v2482
        %2606 = vmatpush.bf16.msra.mxu0 %v2480
        %2607 = vmatmul.bf16.gmra.mxu0 %v2235
        %v2608 = vpop.f32.mrf.mxu0
        %v2609 = vadd.f32 %v2596, %v2608
        %v2610 = vpop.f32.mrf.mxu0
        %2611 = vdwg.mxu0
        %2612 = vmatpush.bf16.msra.mxu0 %v2447
        %2613 = vmatpush.bf16.msra.mxu0 %v2445
        %2614 = vmatpush.bf16.msra.mxu0 %v2443
        %2615 = vmatpush.bf16.msra.mxu0 %v2441
        %2616 = vmatpush.bf16.msra.mxu0 %v2439
        %2617 = vmatpush.bf16.msra.mxu0 %v2437
        %2618 = vmatpush.bf16.msra.mxu0 %v2435
        %2619 = vmatpush.bf16.msra.mxu0 %v2433
        %2620 = vmatmul.bf16.gmra.mxu0 %v2232
        %v2621 = vpop.f32.mrf.mxu0
        %v2622 = vadd.f32 0.0, %v2621
        %v2623 = vpop.f32.mrf.mxu0
        %2624 = vdwg.mxu0
        %2625 = vmatpush.bf16.msra.mxu0 %v2463
        %2626 = vmatpush.bf16.msra.mxu0 %v2461
        %2627 = vmatpush.bf16.msra.mxu0 %v2459
        %2628 = vmatpush.bf16.msra.mxu0 %v2457
        %2629 = vmatpush.bf16.msra.mxu0 %v2455
        %2630 = vmatpush.bf16.msra.mxu0 %v2453
        %2631 = vmatpush.bf16.msra.mxu0 %v2451
        %2632 = vmatpush.bf16.msra.mxu0 %v2449
        %2633 = vmatmul.bf16.gmra.mxu0 %v2233
        %v2634 = vpop.f32.mrf.mxu0
        %v2635 = vadd.f32 %v2622, %v2634
        %v2636 = vpop.f32.mrf.mxu0
        %2637 = vdwg.mxu0
        %2638 = vmatpush.bf16.msra.mxu0 %v2479
        %2639 = vmatpush.bf16.msra.mxu0 %v2477
        %2640 = vmatpush.bf16.msra.mxu0 %v2475
        %2641 = vmatpush.bf16.msra.mxu0 %v2473
        %2642 = vmatpush.bf16.msra.mxu0 %v2471
        %2643 = vmatpush.bf16.msra.mxu0 %v2469
        %2644 = vmatpush.bf16.msra.mxu0 %v2467
        %2645 = vmatpush.bf16.msra.mxu0 %v2465
        %2646 = vmatmul.bf16.gmra.mxu0 %v2234
        %v2647 = vpop.f32.mrf.mxu0
        %v2648 = vadd.f32 %v2635, %v2647
        %v2649 = vpop.f32.mrf.mxu0
        %2650 = vdwg.mxu0
        %2651 = vmatpush.bf16.msra.mxu0 %v2495
        %2652 = vmatpush.bf16.msra.mxu0 %v2493
        %2653 = vmatpush.bf16.msra.mxu0 %v2491
        %2654 = vmatpush.bf16.msra.mxu0 %v2489
        %2655 = vmatpush.bf16.msra.mxu0 %v2487
        %2656 = vmatpush.bf16.msra.mxu0 %v2485
        %2657 = vmatpush.bf16.msra.mxu0 %v2483
        %2658 = vmatpush.bf16.msra.mxu0 %v2481
        %2659 = vmatmul.bf16.gmra.mxu0 %v2235
        %v2660 = vpop.f32.mrf.mxu0
        %v2661 = vadd.f32 %v2648, %v2660
        %v2662 = vpop.f32.mrf.mxu0
        %2663 = vdwg.mxu0
        %v2664 = vadd.f32 %v2100, %v2609
        %v2665 = vadd.f32 %v2152, %v2661
        %v2666 = vld [vmem:[%s4] sm:$0x3]
        %v2668 = vperm.slane %v2666, 0
        %v2669 = vperm.slane %v2666, 1
        %v2672 = vadd.f32 %v2664, %v2668
        %v2673 = vadd.f32 %v2665, %v2669
        %v2674 = vmax.f32 %v2672, 0.0
        %v2675 = vmax.f32 %v2673, 0.0
        %v2678 = vrot.slane %v2674, 7
        %v2679 = vrot.slane %v2675, 7
        %2682 = vst [vmem:[#allocation2] sm:$0x1e] %v2678
        %2683 = vst [vmem:[#allocation2 + $0x8] sm:$0x1e] %v2679
        %v2684 = vld [vmem:[#allocation2] sm:$0xf]
        %v2685 = vld [vmem:[#allocation2 + $0x8] sm:$0xf]
        %v2686 = vpack.c.bf16 %v2684, %v2684
        %v2687 = vpack.c.bf16 %v2685, %v2685
        %v2688 = vld [vmem:[%s5] sm:$0xff]
        %v2689 = vld [vmem:[%s5 + $0x8] sm:$0xff]
        %v2690 = vld [vmem:[%s5 + $0x10] sm:$0xff]
        %v2691 = vld [vmem:[%s5 + $0x18] sm:$0xff]
        %v2692 = vld [vmem:[%s5 + $0x20] sm:$0xff]
        %v2693 = vld [vmem:[%s5 + $0x28] sm:$0xff]
        %v2694 = vld [vmem:[%s5 + $0x30] sm:$0xff]
        %v2695 = vld [vmem:[%s5 + $0x38] sm:$0xff]
        %v2696 = vld [vmem:[%s5 + $0x40] sm:$0xff]
        %v2697 = vld [vmem:[%s5 + $0x48] sm:$0xff]
        %v2698 = vld [vmem:[%s5 + $0x50] sm:$0xff]
        %v2699 = vld [vmem:[%s5 + $0x58] sm:$0xff]
        %v2700 = vld [vmem:[%s5 + $0x60] sm:$0xff]
        %v2701 = vld [vmem:[%s5 + $0x68] sm:$0xff]
        %v2702 = vld [vmem:[%s5 + $0x70] sm:$0xff]
        %v2703 = vld [vmem:[%s5 + $0x78] sm:$0xff]
        %v2704 = vld [vmem:[%s5 + $0x80] sm:$0xff]
        %v2705 = vld [vmem:[%s5 + $0x88] sm:$0xff]
        %v2706 = vld [vmem:[%s5 + $0x90] sm:$0xff]
        %v2707 = vld [vmem:[%s5 + $0x98] sm:$0xff]
        %v2708 = vld [vmem:[%s5 + $0xa0] sm:$0xff]
        %v2709 = vld [vmem:[%s5 + $0xa8] sm:$0xff]
        %v2710 = vld [vmem:[%s5 + $0xb0] sm:$0xff]
        %v2711 = vld [vmem:[%s5 + $0xb8] sm:$0xff]
        %v2712 = vld [vmem:[%s5 + $0xc0] sm:$0xff]
        %v2713 = vld [vmem:[%s5 + $0xc8] sm:$0xff]
        %v2714 = vld [vmem:[%s5 + $0xd0] sm:$0xff]
        %v2715 = vld [vmem:[%s5 + $0xd8] sm:$0xff]
        %v2716 = vld [vmem:[%s5 + $0xe0] sm:$0xff]
        %v2717 = vld [vmem:[%s5 + $0xe8] sm:$0xff]
        %v2718 = vld [vmem:[%s5 + $0xf0] sm:$0xff]
        %v2719 = vld [vmem:[%s5 + $0xf8] sm:$0xff]
        %v2720 = vld [vmem:[#allocation2] sm:$0x1e]
        %v2721 = vld [vmem:[#allocation2 + $0x8] sm:$0x1e]
        %v2722 = vpack.c.bf16 %v2720, %v2720
        %v2723 = vpack.c.bf16 %v2721, %v2721
        %s2724 = scalar_lea.vmem %s5, 256
        %v2725 = vld [vmem:[%s2724] sm:$0xff]
        %v2726 = vld [vmem:[%s2724 + $0x8] sm:$0xff]
        %v2727 = vld [vmem:[%s2724 + $0x10] sm:$0xff]
        %v2728 = vld [vmem:[%s2724 + $0x18] sm:$0xff]
        %v2729 = vld [vmem:[%s2724 + $0x20] sm:$0xff]
        %v2730 = vld [vmem:[%s2724 + $0x28] sm:$0xff]
        %v2731 = vld [vmem:[%s2724 + $0x30] sm:$0xff]
        %v2732 = vld [vmem:[%s2724 + $0x38] sm:$0xff]
        %v2733 = vld [vmem:[%s2724 + $0x40] sm:$0xff]
        %v2734 = vld [vmem:[%s2724 + $0x48] sm:$0xff]
        %v2735 = vld [vmem:[%s2724 + $0x50] sm:$0xff]
        %v2736 = vld [vmem:[%s2724 + $0x58] sm:$0xff]
        %v2737 = vld [vmem:[%s2724 + $0x60] sm:$0xff]
        %v2738 = vld [vmem:[%s2724 + $0x68] sm:$0xff]
        %v2739 = vld [vmem:[%s2724 + $0x70] sm:$0xff]
        %v2740 = vld [vmem:[%s2724 + $0x78] sm:$0xff]
        %v2741 = vld [vmem:[%s2724 + $0x80] sm:$0xff]
        %v2742 = vld [vmem:[%s2724 + $0x88] sm:$0xff]
        %v2743 = vld [vmem:[%s2724 + $0x90] sm:$0xff]
        %v2744 = vld [vmem:[%s2724 + $0x98] sm:$0xff]
        %v2745 = vld [vmem:[%s2724 + $0xa0] sm:$0xff]
        %v2746 = vld [vmem:[%s2724 + $0xa8] sm:$0xff]
        %v2747 = vld [vmem:[%s2724 + $0xb0] sm:$0xff]
        %v2748 = vld [vmem:[%s2724 + $0xb8] sm:$0xff]
        %v2749 = vld [vmem:[%s2724 + $0xc0] sm:$0xff]
        %v2750 = vld [vmem:[%s2724 + $0xc8] sm:$0xff]
        %v2751 = vld [vmem:[%s2724 + $0xd0] sm:$0xff]
        %v2752 = vld [vmem:[%s2724 + $0xd8] sm:$0xff]
        %v2753 = vld [vmem:[%s2724 + $0xe0] sm:$0xff]
        %v2754 = vld [vmem:[%s2724 + $0xe8] sm:$0xff]
        %v2755 = vld [vmem:[%s2724 + $0xf0] sm:$0xff]
        %v2756 = vld [vmem:[%s2724 + $0xf8] sm:$0xff]
        %v2758 = vshrl.u32 %v2722, 16
        %v2760 = vshll.u32 %v2722, 16
        %v2762 = vrot.slane %v2760, 1
        %v2763 = vor.u32 %v2758, %v2762
        %v2765 = vshrl.u32 %v2723, 16
        %v2767 = vshll.u32 %v2723, 16
        %v2769 = vrot.slane %v2767, 1
        %v2770 = vor.u32 %v2765, %v2769
        %v2805 = vunpack.c.l.b16 %v2725
        %v2806 = vunpack.c.h.b16 %v2725
        %v2807 = vunpack.c.l.b16 %v2726
        %v2808 = vunpack.c.h.b16 %v2726
        %v2809 = vunpack.c.l.b16 %v2727
        %v2810 = vunpack.c.h.b16 %v2727
        %v2811 = vunpack.c.l.b16 %v2728
        %v2812 = vunpack.c.h.b16 %v2728
        %v2813 = vunpack.c.l.b16 %v2729
        %v2814 = vunpack.c.h.b16 %v2729
        %v2815 = vunpack.c.l.b16 %v2730
        %v2816 = vunpack.c.h.b16 %v2730
        %v2817 = vunpack.c.l.b16 %v2731
        %v2818 = vunpack.c.h.b16 %v2731
        %v2819 = vunpack.c.l.b16 %v2732
        %v2820 = vunpack.c.h.b16 %v2732
        %v2821 = vunpack.c.l.b16 %v2733
        %v2822 = vunpack.c.h.b16 %v2733
        %v2823 = vunpack.c.l.b16 %v2734
        %v2824 = vunpack.c.h.b16 %v2734
        %v2825 = vunpack.c.l.b16 %v2735
        %v2826 = vunpack.c.h.b16 %v2735
        %v2827 = vunpack.c.l.b16 %v2736
        %v2828 = vunpack.c.h.b16 %v2736
        %v2829 = vunpack.c.l.b16 %v2737
        %v2830 = vunpack.c.h.b16 %v2737
        %v2831 = vunpack.c.l.b16 %v2738
        %v2832 = vunpack.c.h.b16 %v2738
        %v2833 = vunpack.c.l.b16 %v2739
        %v2834 = vunpack.c.h.b16 %v2739
        %v2835 = vunpack.c.l.b16 %v2740
        %v2836 = vunpack.c.h.b16 %v2740
        %v2837 = vunpack.c.l.b16 %v2741
        %v2838 = vunpack.c.h.b16 %v2741
        %v2839 = vunpack.c.l.b16 %v2742
        %v2840 = vunpack.c.h.b16 %v2742
        %v2841 = vunpack.c.l.b16 %v2743
        %v2842 = vunpack.c.h.b16 %v2743
        %v2843 = vunpack.c.l.b16 %v2744
        %v2844 = vunpack.c.h.b16 %v2744
        %v2845 = vunpack.c.l.b16 %v2745
        %v2846 = vunpack.c.h.b16 %v2745
        %v2847 = vunpack.c.l.b16 %v2746
        %v2848 = vunpack.c.h.b16 %v2746
        %v2849 = vunpack.c.l.b16 %v2747
        %v2850 = vunpack.c.h.b16 %v2747
        %v2851 = vunpack.c.l.b16 %v2748
        %v2852 = vunpack.c.h.b16 %v2748
        %v2853 = vunpack.c.l.b16 %v2749
        %v2854 = vunpack.c.h.b16 %v2749
        %v2855 = vunpack.c.l.b16 %v2750
        %v2856 = vunpack.c.h.b16 %v2750
        %v2857 = vunpack.c.l.b16 %v2751
        %v2858 = vunpack.c.h.b16 %v2751
        %v2859 = vunpack.c.l.b16 %v2752
        %v2860 = vunpack.c.h.b16 %v2752
        %v2861 = vunpack.c.l.b16 %v2753
        %v2862 = vunpack.c.h.b16 %v2753
        %v2863 = vunpack.c.l.b16 %v2754
        %v2864 = vunpack.c.h.b16 %v2754
        %v2865 = vunpack.c.l.b16 %v2755
        %v2866 = vunpack.c.h.b16 %v2755
        %v2867 = vunpack.c.l.b16 %v2756
        %v2868 = vunpack.c.h.b16 %v2756
        %v2869 = vpack.c.b16 %v2807, %v2805
        %v2870 = vpack.c.b16 %v2808, %v2806
        %v2871 = vpack.c.b16 %v2811, %v2809
        %v2872 = vpack.c.b16 %v2812, %v2810
        %v2873 = vpack.c.b16 %v2815, %v2813
        %v2874 = vpack.c.b16 %v2816, %v2814
        %v2875 = vpack.c.b16 %v2819, %v2817
        %v2876 = vpack.c.b16 %v2820, %v2818
        %v2877 = vpack.c.b16 %v2823, %v2821
        %v2878 = vpack.c.b16 %v2824, %v2822
        %v2879 = vpack.c.b16 %v2827, %v2825
        %v2880 = vpack.c.b16 %v2828, %v2826
        %v2881 = vpack.c.b16 %v2831, %v2829
        %v2882 = vpack.c.b16 %v2832, %v2830
        %v2883 = vpack.c.b16 %v2835, %v2833
        %v2884 = vpack.c.b16 %v2836, %v2834
        %v2885 = vpack.c.b16 %v2839, %v2837
        %v2886 = vpack.c.b16 %v2840, %v2838
        %v2887 = vpack.c.b16 %v2843, %v2841
        %v2888 = vpack.c.b16 %v2844, %v2842
        %v2889 = vpack.c.b16 %v2847, %v2845
        %v2890 = vpack.c.b16 %v2848, %v2846
        %v2891 = vpack.c.b16 %v2851, %v2849
        %v2892 = vpack.c.b16 %v2852, %v2850
        %v2893 = vpack.c.b16 %v2855, %v2853
        %v2894 = vpack.c.b16 %v2856, %v2854
        %v2895 = vpack.c.b16 %v2859, %v2857
        %v2896 = vpack.c.b16 %v2860, %v2858
        %v2897 = vpack.c.b16 %v2863, %v2861
        %v2898 = vpack.c.b16 %v2864, %v2862
        %v2899 = vpack.c.b16 %v2867, %v2865
        %v2900 = vpack.c.b16 %v2868, %v2866
        %2933 = vmatpush.bf16.msra.mxu0 %v2883
        %2934 = vmatpush.bf16.msra.mxu0 %v2881
        %2935 = vmatpush.bf16.msra.mxu0 %v2879
        %2936 = vmatpush.bf16.msra.mxu0 %v2877
        %2937 = vmatpush.bf16.msra.mxu0 %v2875
        %2938 = vmatpush.bf16.msra.mxu0 %v2873
        %2939 = vmatpush.bf16.msra.mxu0 %v2871
        %2940 = vmatpush.bf16.msra.mxu0 %v2869
        %2941 = vmatmul.bf16.gmra.mxu0 %v2763
        %v2942 = vpop.f32.mrf.mxu0
        %v2943 = vadd.f32 0.0, %v2942
        %v2944 = vpop.f32.mrf.mxu0
        %2945 = vdwg.mxu0
        %2946 = vmatpush.bf16.msra.mxu0 %v2899
        %2947 = vmatpush.bf16.msra.mxu0 %v2897
        %2948 = vmatpush.bf16.msra.mxu0 %v2895
        %2949 = vmatpush.bf16.msra.mxu0 %v2893
        %2950 = vmatpush.bf16.msra.mxu0 %v2891
        %2951 = vmatpush.bf16.msra.mxu0 %v2889
        %2952 = vmatpush.bf16.msra.mxu0 %v2887
        %2953 = vmatpush.bf16.msra.mxu0 %v2885
        %2954 = vmatmul.bf16.gmra.mxu0 %v2770
        %v2955 = vpop.f32.mrf.mxu0
        %v2956 = vadd.f32 %v2943, %v2955
        %v2957 = vpop.f32.mrf.mxu0
        %2958 = vdwg.mxu0
        %2959 = vmatpush.bf16.msra.mxu0 %v2884
        %2960 = vmatpush.bf16.msra.mxu0 %v2882
        %2961 = vmatpush.bf16.msra.mxu0 %v2880
        %2962 = vmatpush.bf16.msra.mxu0 %v2878
        %2963 = vmatpush.bf16.msra.mxu0 %v2876
        %2964 = vmatpush.bf16.msra.mxu0 %v2874
        %2965 = vmatpush.bf16.msra.mxu0 %v2872
        %2966 = vmatpush.bf16.msra.mxu0 %v2870
        %2967 = vmatmul.bf16.gmra.mxu0 %v2763
        %v2968 = vpop.f32.mrf.mxu0
        %v2969 = vadd.f32 0.0, %v2968
        %v2970 = vpop.f32.mrf.mxu0
        %2971 = vdwg.mxu0
        %2972 = vmatpush.bf16.msra.mxu0 %v2900
        %2973 = vmatpush.bf16.msra.mxu0 %v2898
        %2974 = vmatpush.bf16.msra.mxu0 %v2896
        %2975 = vmatpush.bf16.msra.mxu0 %v2894
        %2976 = vmatpush.bf16.msra.mxu0 %v2892
        %2977 = vmatpush.bf16.msra.mxu0 %v2890
        %2978 = vmatpush.bf16.msra.mxu0 %v2888
        %2979 = vmatpush.bf16.msra.mxu0 %v2886
        %2980 = vmatmul.bf16.gmra.mxu0 %v2770
        %v2981 = vpop.f32.mrf.mxu0
        %v2982 = vadd.f32 %v2969, %v2981
        %v2983 = vpop.f32.mrf.mxu0
        %2984 = vdwg.mxu0
        %v3017 = vunpack.c.l.b16 %v2688
        %v3018 = vunpack.c.h.b16 %v2688
        %v3019 = vunpack.c.l.b16 %v2689
        %v3020 = vunpack.c.h.b16 %v2689
        %v3021 = vunpack.c.l.b16 %v2690
        %v3022 = vunpack.c.h.b16 %v2690
        %v3023 = vunpack.c.l.b16 %v2691
        %v3024 = vunpack.c.h.b16 %v2691
        %v3025 = vunpack.c.l.b16 %v2692
        %v3026 = vunpack.c.h.b16 %v2692
        %v3027 = vunpack.c.l.b16 %v2693
        %v3028 = vunpack.c.h.b16 %v2693
        %v3029 = vunpack.c.l.b16 %v2694
        %v3030 = vunpack.c.h.b16 %v2694
        %v3031 = vunpack.c.l.b16 %v2695
        %v3032 = vunpack.c.h.b16 %v2695
        %v3033 = vunpack.c.l.b16 %v2696
        %v3034 = vunpack.c.h.b16 %v2696
        %v3035 = vunpack.c.l.b16 %v2697
        %v3036 = vunpack.c.h.b16 %v2697
        %v3037 = vunpack.c.l.b16 %v2698
        %v3038 = vunpack.c.h.b16 %v2698
        %v3039 = vunpack.c.l.b16 %v2699
        %v3040 = vunpack.c.h.b16 %v2699
        %v3041 = vunpack.c.l.b16 %v2700
        %v3042 = vunpack.c.h.b16 %v2700
        %v3043 = vunpack.c.l.b16 %v2701
        %v3044 = vunpack.c.h.b16 %v2701
        %v3045 = vunpack.c.l.b16 %v2702
        %v3046 = vunpack.c.h.b16 %v2702
        %v3047 = vunpack.c.l.b16 %v2703
        %v3048 = vunpack.c.h.b16 %v2703
        %v3049 = vunpack.c.l.b16 %v2704
        %v3050 = vunpack.c.h.b16 %v2704
        %v3051 = vunpack.c.l.b16 %v2705
        %v3052 = vunpack.c.h.b16 %v2705
        %v3053 = vunpack.c.l.b16 %v2706
        %v3054 = vunpack.c.h.b16 %v2706
        %v3055 = vunpack.c.l.b16 %v2707
        %v3056 = vunpack.c.h.b16 %v2707
        %v3057 = vunpack.c.l.b16 %v2708
        %v3058 = vunpack.c.h.b16 %v2708
        %v3059 = vunpack.c.l.b16 %v2709
        %v3060 = vunpack.c.h.b16 %v2709
        %v3061 = vunpack.c.l.b16 %v2710
        %v3062 = vunpack.c.h.b16 %v2710
        %v3063 = vunpack.c.l.b16 %v2711
        %v3064 = vunpack.c.h.b16 %v2711
        %v3065 = vunpack.c.l.b16 %v2712
        %v3066 = vunpack.c.h.b16 %v2712
        %v3067 = vunpack.c.l.b16 %v2713
        %v3068 = vunpack.c.h.b16 %v2713
        %v3069 = vunpack.c.l.b16 %v2714
        %v3070 = vunpack.c.h.b16 %v2714
        %v3071 = vunpack.c.l.b16 %v2715
        %v3072 = vunpack.c.h.b16 %v2715
        %v3073 = vunpack.c.l.b16 %v2716
        %v3074 = vunpack.c.h.b16 %v2716
        %v3075 = vunpack.c.l.b16 %v2717
        %v3076 = vunpack.c.h.b16 %v2717
        %v3077 = vunpack.c.l.b16 %v2718
        %v3078 = vunpack.c.h.b16 %v2718
        %v3079 = vunpack.c.l.b16 %v2719
        %v3080 = vunpack.c.h.b16 %v2719
        %v3081 = vpack.c.b16 %v3019, %v3017
        %v3082 = vpack.c.b16 %v3020, %v3018
        %v3083 = vpack.c.b16 %v3023, %v3021
        %v3084 = vpack.c.b16 %v3024, %v3022
        %v3085 = vpack.c.b16 %v3027, %v3025
        %v3086 = vpack.c.b16 %v3028, %v3026
        %v3087 = vpack.c.b16 %v3031, %v3029
        %v3088 = vpack.c.b16 %v3032, %v3030
        %v3089 = vpack.c.b16 %v3035, %v3033
        %v3090 = vpack.c.b16 %v3036, %v3034
        %v3091 = vpack.c.b16 %v3039, %v3037
        %v3092 = vpack.c.b16 %v3040, %v3038
        %v3093 = vpack.c.b16 %v3043, %v3041
        %v3094 = vpack.c.b16 %v3044, %v3042
        %v3095 = vpack.c.b16 %v3047, %v3045
        %v3096 = vpack.c.b16 %v3048, %v3046
        %v3097 = vpack.c.b16 %v3051, %v3049
        %v3098 = vpack.c.b16 %v3052, %v3050
        %v3099 = vpack.c.b16 %v3055, %v3053
        %v3100 = vpack.c.b16 %v3056, %v3054
        %v3101 = vpack.c.b16 %v3059, %v3057
        %v3102 = vpack.c.b16 %v3060, %v3058
        %v3103 = vpack.c.b16 %v3063, %v3061
        %v3104 = vpack.c.b16 %v3064, %v3062
        %v3105 = vpack.c.b16 %v3067, %v3065
        %v3106 = vpack.c.b16 %v3068, %v3066
        %v3107 = vpack.c.b16 %v3071, %v3069
        %v3108 = vpack.c.b16 %v3072, %v3070
        %v3109 = vpack.c.b16 %v3075, %v3073
        %v3110 = vpack.c.b16 %v3076, %v3074
        %v3111 = vpack.c.b16 %v3079, %v3077
        %v3112 = vpack.c.b16 %v3080, %v3078
        %3145 = vmatpush.bf16.msra.mxu0 %v3095
        %3146 = vmatpush.bf16.msra.mxu0 %v3093
        %3147 = vmatpush.bf16.msra.mxu0 %v3091
        %3148 = vmatpush.bf16.msra.mxu0 %v3089
        %3149 = vmatpush.bf16.msra.mxu0 %v3087
        %3150 = vmatpush.bf16.msra.mxu0 %v3085
        %3151 = vmatpush.bf16.msra.mxu0 %v3083
        %3152 = vmatpush.bf16.msra.mxu0 %v3081
        %3153 = vmatmul.bf16.gmra.mxu0 %v2686
        %v3154 = vpop.f32.mrf.mxu0
        %v3155 = vadd.f32 %v2956, %v3154
        %v3156 = vpop.f32.mrf.mxu0
        %3157 = vdwg.mxu0
        %3158 = vmatpush.bf16.msra.mxu0 %v3111
        %3159 = vmatpush.bf16.msra.mxu0 %v3109
        %3160 = vmatpush.bf16.msra.mxu0 %v3107
        %3161 = vmatpush.bf16.msra.mxu0 %v3105
        %3162 = vmatpush.bf16.msra.mxu0 %v3103
        %3163 = vmatpush.bf16.msra.mxu0 %v3101
        %3164 = vmatpush.bf16.msra.mxu0 %v3099
        %3165 = vmatpush.bf16.msra.mxu0 %v3097
        %3166 = vmatmul.bf16.gmra.mxu0 %v2687
        %v3167 = vpop.f32.mrf.mxu0
        %v3168 = vadd.f32 %v3155, %v3167
        %v3169 = vpop.f32.mrf.mxu0
        %3170 = vdwg.mxu0
        %3171 = vmatpush.bf16.msra.mxu0 %v3096
        %3172 = vmatpush.bf16.msra.mxu0 %v3094
        %3173 = vmatpush.bf16.msra.mxu0 %v3092
        %3174 = vmatpush.bf16.msra.mxu0 %v3090
        %3175 = vmatpush.bf16.msra.mxu0 %v3088
        %3176 = vmatpush.bf16.msra.mxu0 %v3086
        %3177 = vmatpush.bf16.msra.mxu0 %v3084
        %3178 = vmatpush.bf16.msra.mxu0 %v3082
        %3179 = vmatmul.bf16.gmra.mxu0 %v2686
        %v3180 = vpop.f32.mrf.mxu0
        %v3181 = vadd.f32 %v2982, %v3180
        %v3182 = vpop.f32.mrf.mxu0
        %3183 = vdwg.mxu0
        %3184 = vmatpush.bf16.msra.mxu0 %v3112
        %3185 = vmatpush.bf16.msra.mxu0 %v3110
        %3186 = vmatpush.bf16.msra.mxu0 %v3108
        %3187 = vmatpush.bf16.msra.mxu0 %v3106
        %3188 = vmatpush.bf16.msra.mxu0 %v3104
        %3189 = vmatpush.bf16.msra.mxu0 %v3102
        %3190 = vmatpush.bf16.msra.mxu0 %v3100
        %3191 = vmatpush.bf16.msra.mxu0 %v3098
        %3192 = vmatmul.bf16.gmra.mxu0 %v2687
        %v3193 = vpop.f32.mrf.mxu0
        %v3194 = vadd.f32 %v3181, %v3193
        %v3195 = vpop.f32.mrf.mxu0
        %3196 = vdwg.mxu0
        %v3197 = vld [vmem:[#allocation2] sm:$0x3c]
        %v3198 = vld [vmem:[#allocation2 + $0x8] sm:$0x3c]
        %v3199 = vpack.c.bf16 %v3197, %v3197
        %v3200 = vpack.c.bf16 %v3198, %v3198
        %s3201 = scalar_lea.vmem %s5, 512
        %v3202 = vld [vmem:[%s3201] sm:$0xff]
        %v3203 = vld [vmem:[%s3201 + $0x8] sm:$0xff]
        %v3204 = vld [vmem:[%s3201 + $0x10] sm:$0xff]
        %v3205 = vld [vmem:[%s3201 + $0x18] sm:$0xff]
        %v3206 = vld [vmem:[%s3201 + $0x20] sm:$0xff]
        %v3207 = vld [vmem:[%s3201 + $0x28] sm:$0xff]
        %v3208 = vld [vmem:[%s3201 + $0x30] sm:$0xff]
        %v3209 = vld [vmem:[%s3201 + $0x38] sm:$0xff]
        %v3210 = vld [vmem:[%s3201 + $0x40] sm:$0xff]
        %v3211 = vld [vmem:[%s3201 + $0x48] sm:$0xff]
        %v3212 = vld [vmem:[%s3201 + $0x50] sm:$0xff]
        %v3213 = vld [vmem:[%s3201 + $0x58] sm:$0xff]
        %v3214 = vld [vmem:[%s3201 + $0x60] sm:$0xff]
        %v3215 = vld [vmem:[%s3201 + $0x68] sm:$0xff]
        %v3216 = vld [vmem:[%s3201 + $0x70] sm:$0xff]
        %v3217 = vld [vmem:[%s3201 + $0x78] sm:$0xff]
        %v3218 = vld [vmem:[%s3201 + $0x80] sm:$0xff]
        %v3219 = vld [vmem:[%s3201 + $0x88] sm:$0xff]
        %v3220 = vld [vmem:[%s3201 + $0x90] sm:$0xff]
        %v3221 = vld [vmem:[%s3201 + $0x98] sm:$0xff]
        %v3222 = vld [vmem:[%s3201 + $0xa0] sm:$0xff]
        %v3223 = vld [vmem:[%s3201 + $0xa8] sm:$0xff]
        %v3224 = vld [vmem:[%s3201 + $0xb0] sm:$0xff]
        %v3225 = vld [vmem:[%s3201 + $0xb8] sm:$0xff]
        %v3226 = vld [vmem:[%s3201 + $0xc0] sm:$0xff]
        %v3227 = vld [vmem:[%s3201 + $0xc8] sm:$0xff]
        %v3228 = vld [vmem:[%s3201 + $0xd0] sm:$0xff]
        %v3229 = vld [vmem:[%s3201 + $0xd8] sm:$0xff]
        %v3230 = vld [vmem:[%s3201 + $0xe0] sm:$0xff]
        %v3231 = vld [vmem:[%s3201 + $0xe8] sm:$0xff]
        %v3232 = vld [vmem:[%s3201 + $0xf0] sm:$0xff]
        %v3233 = vld [vmem:[%s3201 + $0xf8] sm:$0xff]
        %v3236 = vrot.slane %v3199, 1
        %v3237 = vrot.slane %v3200, 1
        %v3272 = vunpack.c.l.b16 %v3202
        %v3273 = vunpack.c.h.b16 %v3202
        %v3274 = vunpack.c.l.b16 %v3203
        %v3275 = vunpack.c.h.b16 %v3203
        %v3276 = vunpack.c.l.b16 %v3204
        %v3277 = vunpack.c.h.b16 %v3204
        %v3278 = vunpack.c.l.b16 %v3205
        %v3279 = vunpack.c.h.b16 %v3205
        %v3280 = vunpack.c.l.b16 %v3206
        %v3281 = vunpack.c.h.b16 %v3206
        %v3282 = vunpack.c.l.b16 %v3207
        %v3283 = vunpack.c.h.b16 %v3207
        %v3284 = vunpack.c.l.b16 %v3208
        %v3285 = vunpack.c.h.b16 %v3208
        %v3286 = vunpack.c.l.b16 %v3209
        %v3287 = vunpack.c.h.b16 %v3209
        %v3288 = vunpack.c.l.b16 %v3210
        %v3289 = vunpack.c.h.b16 %v3210
        %v3290 = vunpack.c.l.b16 %v3211
        %v3291 = vunpack.c.h.b16 %v3211
        %v3292 = vunpack.c.l.b16 %v3212
        %v3293 = vunpack.c.h.b16 %v3212
        %v3294 = vunpack.c.l.b16 %v3213
        %v3295 = vunpack.c.h.b16 %v3213
        %v3296 = vunpack.c.l.b16 %v3214
        %v3297 = vunpack.c.h.b16 %v3214
        %v3298 = vunpack.c.l.b16 %v3215
        %v3299 = vunpack.c.h.b16 %v3215
        %v3300 = vunpack.c.l.b16 %v3216
        %v3301 = vunpack.c.h.b16 %v3216
        %v3302 = vunpack.c.l.b16 %v3217
        %v3303 = vunpack.c.h.b16 %v3217
        %v3304 = vunpack.c.l.b16 %v3218
        %v3305 = vunpack.c.h.b16 %v3218
        %v3306 = vunpack.c.l.b16 %v3219
        %v3307 = vunpack.c.h.b16 %v3219
        %v3308 = vunpack.c.l.b16 %v3220
        %v3309 = vunpack.c.h.b16 %v3220
        %v3310 = vunpack.c.l.b16 %v3221
        %v3311 = vunpack.c.h.b16 %v3221
        %v3312 = vunpack.c.l.b16 %v3222
        %v3313 = vunpack.c.h.b16 %v3222
        %v3314 = vunpack.c.l.b16 %v3223
        %v3315 = vunpack.c.h.b16 %v3223
        %v3316 = vunpack.c.l.b16 %v3224
        %v3317 = vunpack.c.h.b16 %v3224
        %v3318 = vunpack.c.l.b16 %v3225
        %v3319 = vunpack.c.h.b16 %v3225
        %v3320 = vunpack.c.l.b16 %v3226
        %v3321 = vunpack.c.h.b16 %v3226
        %v3322 = vunpack.c.l.b16 %v3227
        %v3323 = vunpack.c.h.b16 %v3227
        %v3324 = vunpack.c.l.b16 %v3228
        %v3325 = vunpack.c.h.b16 %v3228
        %v3326 = vunpack.c.l.b16 %v3229
        %v3327 = vunpack.c.h.b16 %v3229
        %v3328 = vunpack.c.l.b16 %v3230
        %v3329 = vunpack.c.h.b16 %v3230
        %v3330 = vunpack.c.l.b16 %v3231
        %v3331 = vunpack.c.h.b16 %v3231
        %v3332 = vunpack.c.l.b16 %v3232
        %v3333 = vunpack.c.h.b16 %v3232
        %v3334 = vunpack.c.l.b16 %v3233
        %v3335 = vunpack.c.h.b16 %v3233
        %v3336 = vpack.c.b16 %v3274, %v3272
        %v3337 = vpack.c.b16 %v3275, %v3273
        %v3338 = vpack.c.b16 %v3278, %v3276
        %v3339 = vpack.c.b16 %v3279, %v3277
        %v3340 = vpack.c.b16 %v3282, %v3280
        %v3341 = vpack.c.b16 %v3283, %v3281
        %v3342 = vpack.c.b16 %v3286, %v3284
        %v3343 = vpack.c.b16 %v3287, %v3285
        %v3344 = vpack.c.b16 %v3290, %v3288
        %v3345 = vpack.c.b16 %v3291, %v3289
        %v3346 = vpack.c.b16 %v3294, %v3292
        %v3347 = vpack.c.b16 %v3295, %v3293
        %v3348 = vpack.c.b16 %v3298, %v3296
        %v3349 = vpack.c.b16 %v3299, %v3297
        %v3350 = vpack.c.b16 %v3302, %v3300
        %v3351 = vpack.c.b16 %v3303, %v3301
        %v3352 = vpack.c.b16 %v3306, %v3304
        %v3353 = vpack.c.b16 %v3307, %v3305
        %v3354 = vpack.c.b16 %v3310, %v3308
        %v3355 = vpack.c.b16 %v3311, %v3309
        %v3356 = vpack.c.b16 %v3314, %v3312
        %v3357 = vpack.c.b16 %v3315, %v3313
        %v3358 = vpack.c.b16 %v3318, %v3316
        %v3359 = vpack.c.b16 %v3319, %v3317
        %v3360 = vpack.c.b16 %v3322, %v3320
        %v3361 = vpack.c.b16 %v3323, %v3321
        %v3362 = vpack.c.b16 %v3326, %v3324
        %v3363 = vpack.c.b16 %v3327, %v3325
        %v3364 = vpack.c.b16 %v3330, %v3328
        %v3365 = vpack.c.b16 %v3331, %v3329
        %v3366 = vpack.c.b16 %v3334, %v3332
        %v3367 = vpack.c.b16 %v3335, %v3333
        %3400 = vmatpush.bf16.msra.mxu0 %v3350
        %3401 = vmatpush.bf16.msra.mxu0 %v3348
        %3402 = vmatpush.bf16.msra.mxu0 %v3346
        %3403 = vmatpush.bf16.msra.mxu0 %v3344
        %3404 = vmatpush.bf16.msra.mxu0 %v3342
        %3405 = vmatpush.bf16.msra.mxu0 %v3340
        %3406 = vmatpush.bf16.msra.mxu0 %v3338
        %3407 = vmatpush.bf16.msra.mxu0 %v3336
        %3408 = vmatmul.bf16.gmra.mxu0 %v3236
        %v3409 = vpop.f32.mrf.mxu0
        %v3410 = vadd.f32 0.0, %v3409
        %v3411 = vpop.f32.mrf.mxu0
        %3412 = vdwg.mxu0
        %3413 = vmatpush.bf16.msra.mxu0 %v3366
        %3414 = vmatpush.bf16.msra.mxu0 %v3364
        %3415 = vmatpush.bf16.msra.mxu0 %v3362
        %3416 = vmatpush.bf16.msra.mxu0 %v3360
        %3417 = vmatpush.bf16.msra.mxu0 %v3358
        %3418 = vmatpush.bf16.msra.mxu0 %v3356
        %3419 = vmatpush.bf16.msra.mxu0 %v3354
        %3420 = vmatpush.bf16.msra.mxu0 %v3352
        %3421 = vmatmul.bf16.gmra.mxu0 %v3237
        %v3422 = vpop.f32.mrf.mxu0
        %v3423 = vadd.f32 %v3410, %v3422
        %v3424 = vpop.f32.mrf.mxu0
        %3425 = vdwg.mxu0
        %3426 = vmatpush.bf16.msra.mxu0 %v3351
        %3427 = vmatpush.bf16.msra.mxu0 %v3349
        %3428 = vmatpush.bf16.msra.mxu0 %v3347
        %3429 = vmatpush.bf16.msra.mxu0 %v3345
        %3430 = vmatpush.bf16.msra.mxu0 %v3343
        %3431 = vmatpush.bf16.msra.mxu0 %v3341
        %3432 = vmatpush.bf16.msra.mxu0 %v3339
        %3433 = vmatpush.bf16.msra.mxu0 %v3337
        %3434 = vmatmul.bf16.gmra.mxu0 %v3236
        %v3435 = vpop.f32.mrf.mxu0
        %v3436 = vadd.f32 0.0, %v3435
        %v3437 = vpop.f32.mrf.mxu0
        %3438 = vdwg.mxu0
        %3439 = vmatpush.bf16.msra.mxu0 %v3367
        %3440 = vmatpush.bf16.msra.mxu0 %v3365
        %3441 = vmatpush.bf16.msra.mxu0 %v3363
        %3442 = vmatpush.bf16.msra.mxu0 %v3361
        %3443 = vmatpush.bf16.msra.mxu0 %v3359
        %3444 = vmatpush.bf16.msra.mxu0 %v3357
        %3445 = vmatpush.bf16.msra.mxu0 %v3355
        %3446 = vmatpush.bf16.msra.mxu0 %v3353
        %3447 = vmatmul.bf16.gmra.mxu0 %v3237
        %v3448 = vpop.f32.mrf.mxu0
        %v3449 = vadd.f32 %v3436, %v3448
        %v3450 = vpop.f32.mrf.mxu0
        %3451 = vdwg.mxu0
        %v3452 = vadd.f32 %v3168, %v3423
        %v3453 = vadd.f32 %v3194, %v3449
        %v3454 = vld [vmem:[%s6] sm:$0x3]
        %v3456 = vperm.slane %v3454, 0
        %v3457 = vperm.slane %v3454, 1
        %v3460 = vadd.f32 %v3452, %v3456
        %v3461 = vadd.f32 %v3453, %v3457
        %v3462 = vmax.f32 %v3460, 0.0
        %v3463 = vmax.f32 %v3461, 0.0
        %v3466 = vrot.slane %v3462, 7
        %v3467 = vrot.slane %v3463, 7
        %3470 = vst [vmem:[#allocation2] sm:$0x1e] %v3466
        %3471 = vst [vmem:[#allocation2 + $0x8] sm:$0x1e] %v3467
        %v3472 = vld [vmem:[#allocation2] sm:$0xf]
        %v3473 = vld [vmem:[#allocation2 + $0x8] sm:$0xf]
        %v3474 = vpack.c.bf16 %v3472, %v3472
        %v3475 = vpack.c.bf16 %v3473, %v3473
        %v3476 = vld [vmem:[%s7] sm:$0xff]
        %v3477 = vld [vmem:[%s7 + $0x8] sm:$0xff]
        %v3478 = vld [vmem:[%s7 + $0x10] sm:$0xff]
        %v3479 = vld [vmem:[%s7 + $0x18] sm:$0xff]
        %v3480 = vld [vmem:[%s7 + $0x20] sm:$0xff]
        %v3481 = vld [vmem:[%s7 + $0x28] sm:$0xff]
        %v3482 = vld [vmem:[%s7 + $0x30] sm:$0xff]
        %v3483 = vld [vmem:[%s7 + $0x38] sm:$0xff]
        %v3484 = vld [vmem:[%s7 + $0x40] sm:$0xff]
        %v3485 = vld [vmem:[%s7 + $0x48] sm:$0xff]
        %v3486 = vld [vmem:[%s7 + $0x50] sm:$0xff]
        %v3487 = vld [vmem:[%s7 + $0x58] sm:$0xff]
        %v3488 = vld [vmem:[%s7 + $0x60] sm:$0xff]
        %v3489 = vld [vmem:[%s7 + $0x68] sm:$0xff]
        %v3490 = vld [vmem:[%s7 + $0x70] sm:$0xff]
        %v3491 = vld [vmem:[%s7 + $0x78] sm:$0xff]
        %v3492 = vld [vmem:[%s7 + $0x80] sm:$0xff]
        %v3493 = vld [vmem:[%s7 + $0x88] sm:$0xff]
        %v3494 = vld [vmem:[%s7 + $0x90] sm:$0xff]
        %v3495 = vld [vmem:[%s7 + $0x98] sm:$0xff]
        %v3496 = vld [vmem:[%s7 + $0xa0] sm:$0xff]
        %v3497 = vld [vmem:[%s7 + $0xa8] sm:$0xff]
        %v3498 = vld [vmem:[%s7 + $0xb0] sm:$0xff]
        %v3499 = vld [vmem:[%s7 + $0xb8] sm:$0xff]
        %v3500 = vld [vmem:[%s7 + $0xc0] sm:$0xff]
        %v3501 = vld [vmem:[%s7 + $0xc8] sm:$0xff]
        %v3502 = vld [vmem:[%s7 + $0xd0] sm:$0xff]
        %v3503 = vld [vmem:[%s7 + $0xd8] sm:$0xff]
        %v3504 = vld [vmem:[%s7 + $0xe0] sm:$0xff]
        %v3505 = vld [vmem:[%s7 + $0xe8] sm:$0xff]
        %v3506 = vld [vmem:[%s7 + $0xf0] sm:$0xff]
        %v3507 = vld [vmem:[%s7 + $0xf8] sm:$0xff]
        %v3508 = vld [vmem:[#allocation2] sm:$0x1e]
        %v3509 = vld [vmem:[#allocation2 + $0x8] sm:$0x1e]
        %v3510 = vpack.c.bf16 %v3508, %v3508
        %v3511 = vpack.c.bf16 %v3509, %v3509
        %s3512 = scalar_lea.vmem %s7, 256
        %v3513 = vld [vmem:[%s3512] sm:$0xff]
        %v3514 = vld [vmem:[%s3512 + $0x8] sm:$0xff]
        %v3515 = vld [vmem:[%s3512 + $0x10] sm:$0xff]
        %v3516 = vld [vmem:[%s3512 + $0x18] sm:$0xff]
        %v3517 = vld [vmem:[%s3512 + $0x20] sm:$0xff]
        %v3518 = vld [vmem:[%s3512 + $0x28] sm:$0xff]
        %v3519 = vld [vmem:[%s3512 + $0x30] sm:$0xff]
        %v3520 = vld [vmem:[%s3512 + $0x38] sm:$0xff]
        %v3521 = vld [vmem:[%s3512 + $0x40] sm:$0xff]
        %v3522 = vld [vmem:[%s3512 + $0x48] sm:$0xff]
        %v3523 = vld [vmem:[%s3512 + $0x50] sm:$0xff]
        %v3524 = vld [vmem:[%s3512 + $0x58] sm:$0xff]
        %v3525 = vld [vmem:[%s3512 + $0x60] sm:$0xff]
        %v3526 = vld [vmem:[%s3512 + $0x68] sm:$0xff]
        %v3527 = vld [vmem:[%s3512 + $0x70] sm:$0xff]
        %v3528 = vld [vmem:[%s3512 + $0x78] sm:$0xff]
        %v3529 = vld [vmem:[%s3512 + $0x80] sm:$0xff]
        %v3530 = vld [vmem:[%s3512 + $0x88] sm:$0xff]
        %v3531 = vld [vmem:[%s3512 + $0x90] sm:$0xff]
        %v3532 = vld [vmem:[%s3512 + $0x98] sm:$0xff]
        %v3533 = vld [vmem:[%s3512 + $0xa0] sm:$0xff]
        %v3534 = vld [vmem:[%s3512 + $0xa8] sm:$0xff]
        %v3535 = vld [vmem:[%s3512 + $0xb0] sm:$0xff]
        %v3536 = vld [vmem:[%s3512 + $0xb8] sm:$0xff]
        %v3537 = vld [vmem:[%s3512 + $0xc0] sm:$0xff]
        %v3538 = vld [vmem:[%s3512 + $0xc8] sm:$0xff]
        %v3539 = vld [vmem:[%s3512 + $0xd0] sm:$0xff]
        %v3540 = vld [vmem:[%s3512 + $0xd8] sm:$0xff]
        %v3541 = vld [vmem:[%s3512 + $0xe0] sm:$0xff]
        %v3542 = vld [vmem:[%s3512 + $0xe8] sm:$0xff]
        %v3543 = vld [vmem:[%s3512 + $0xf0] sm:$0xff]
        %v3544 = vld [vmem:[%s3512 + $0xf8] sm:$0xff]
        %v3546 = vshrl.u32 %v3510, 16
        %v3548 = vshll.u32 %v3510, 16
        %v3550 = vrot.slane %v3548, 1
        %v3551 = vor.u32 %v3546, %v3550
        %v3553 = vshrl.u32 %v3511, 16
        %v3555 = vshll.u32 %v3511, 16
        %v3557 = vrot.slane %v3555, 1
        %v3558 = vor.u32 %v3553, %v3557
        %v3593 = vunpack.c.l.b16 %v3513
        %v3594 = vunpack.c.h.b16 %v3513
        %v3595 = vunpack.c.l.b16 %v3514
        %v3596 = vunpack.c.h.b16 %v3514
        %v3597 = vunpack.c.l.b16 %v3515
        %v3598 = vunpack.c.h.b16 %v3515
        %v3599 = vunpack.c.l.b16 %v3516
        %v3600 = vunpack.c.h.b16 %v3516
        %v3601 = vunpack.c.l.b16 %v3517
        %v3602 = vunpack.c.h.b16 %v3517
        %v3603 = vunpack.c.l.b16 %v3518
        %v3604 = vunpack.c.h.b16 %v3518
        %v3605 = vunpack.c.l.b16 %v3519
        %v3606 = vunpack.c.h.b16 %v3519
        %v3607 = vunpack.c.l.b16 %v3520
        %v3608 = vunpack.c.h.b16 %v3520
        %v3609 = vunpack.c.l.b16 %v3521
        %v3610 = vunpack.c.h.b16 %v3521
        %v3611 = vunpack.c.l.b16 %v3522
        %v3612 = vunpack.c.h.b16 %v3522
        %v3613 = vunpack.c.l.b16 %v3523
        %v3614 = vunpack.c.h.b16 %v3523
        %v3615 = vunpack.c.l.b16 %v3524
        %v3616 = vunpack.c.h.b16 %v3524
        %v3617 = vunpack.c.l.b16 %v3525
        %v3618 = vunpack.c.h.b16 %v3525
        %v3619 = vunpack.c.l.b16 %v3526
        %v3620 = vunpack.c.h.b16 %v3526
        %v3621 = vunpack.c.l.b16 %v3527
        %v3622 = vunpack.c.h.b16 %v3527
        %v3623 = vunpack.c.l.b16 %v3528
        %v3624 = vunpack.c.h.b16 %v3528
        %v3625 = vunpack.c.l.b16 %v3529
        %v3626 = vunpack.c.h.b16 %v3529
        %v3627 = vunpack.c.l.b16 %v3530
        %v3628 = vunpack.c.h.b16 %v3530
        %v3629 = vunpack.c.l.b16 %v3531
        %v3630 = vunpack.c.h.b16 %v3531
        %v3631 = vunpack.c.l.b16 %v3532
        %v3632 = vunpack.c.h.b16 %v3532
        %v3633 = vunpack.c.l.b16 %v3533
        %v3634 = vunpack.c.h.b16 %v3533
        %v3635 = vunpack.c.l.b16 %v3534
        %v3636 = vunpack.c.h.b16 %v3534
        %v3637 = vunpack.c.l.b16 %v3535
        %v3638 = vunpack.c.h.b16 %v3535
        %v3639 = vunpack.c.l.b16 %v3536
        %v3640 = vunpack.c.h.b16 %v3536
        %v3641 = vunpack.c.l.b16 %v3537
        %v3642 = vunpack.c.h.b16 %v3537
        %v3643 = vunpack.c.l.b16 %v3538
        %v3644 = vunpack.c.h.b16 %v3538
        %v3645 = vunpack.c.l.b16 %v3539
        %v3646 = vunpack.c.h.b16 %v3539
        %v3647 = vunpack.c.l.b16 %v3540
        %v3648 = vunpack.c.h.b16 %v3540
        %v3649 = vunpack.c.l.b16 %v3541
        %v3650 = vunpack.c.h.b16 %v3541
        %v3651 = vunpack.c.l.b16 %v3542
        %v3652 = vunpack.c.h.b16 %v3542
        %v3653 = vunpack.c.l.b16 %v3543
        %v3654 = vunpack.c.h.b16 %v3543
        %v3655 = vunpack.c.l.b16 %v3544
        %v3656 = vunpack.c.h.b16 %v3544
        %v3657 = vpack.c.b16 %v3595, %v3593
        %v3658 = vpack.c.b16 %v3596, %v3594
        %v3659 = vpack.c.b16 %v3599, %v3597
        %v3660 = vpack.c.b16 %v3600, %v3598
        %v3661 = vpack.c.b16 %v3603, %v3601
        %v3662 = vpack.c.b16 %v3604, %v3602
        %v3663 = vpack.c.b16 %v3607, %v3605
        %v3664 = vpack.c.b16 %v3608, %v3606
        %v3665 = vpack.c.b16 %v3611, %v3609
        %v3666 = vpack.c.b16 %v3612, %v3610
        %v3667 = vpack.c.b16 %v3615, %v3613
        %v3668 = vpack.c.b16 %v3616, %v3614
        %v3669 = vpack.c.b16 %v3619, %v3617
        %v3670 = vpack.c.b16 %v3620, %v3618
        %v3671 = vpack.c.b16 %v3623, %v3621
        %v3672 = vpack.c.b16 %v3624, %v3622
        %v3673 = vpack.c.b16 %v3627, %v3625
        %v3674 = vpack.c.b16 %v3628, %v3626
        %v3675 = vpack.c.b16 %v3631, %v3629
        %v3676 = vpack.c.b16 %v3632, %v3630
        %v3677 = vpack.c.b16 %v3635, %v3633
        %v3678 = vpack.c.b16 %v3636, %v3634
        %v3679 = vpack.c.b16 %v3639, %v3637
        %v3680 = vpack.c.b16 %v3640, %v3638
        %v3681 = vpack.c.b16 %v3643, %v3641
        %v3682 = vpack.c.b16 %v3644, %v3642
        %v3683 = vpack.c.b16 %v3647, %v3645
        %v3684 = vpack.c.b16 %v3648, %v3646
        %v3685 = vpack.c.b16 %v3651, %v3649
        %v3686 = vpack.c.b16 %v3652, %v3650
        %v3687 = vpack.c.b16 %v3655, %v3653
        %v3688 = vpack.c.b16 %v3656, %v3654
        %3721 = vmatpush.bf16.msra.mxu0 %v3671
        %3722 = vmatpush.bf16.msra.mxu0 %v3669
        %3723 = vmatpush.bf16.msra.mxu0 %v3667
        %3724 = vmatpush.bf16.msra.mxu0 %v3665
        %3725 = vmatpush.bf16.msra.mxu0 %v3663
        %3726 = vmatpush.bf16.msra.mxu0 %v3661
        %3727 = vmatpush.bf16.msra.mxu0 %v3659
        %3728 = vmatpush.bf16.msra.mxu0 %v3657
        %3729 = vmatmul.bf16.gmra.mxu0 %v3551
        %v3730 = vpop.f32.mrf.mxu0
        %v3731 = vadd.f32 0.0, %v3730
        %v3732 = vpop.f32.mrf.mxu0
        %3733 = vdwg.mxu0
        %3734 = vmatpush.bf16.msra.mxu0 %v3687
        %3735 = vmatpush.bf16.msra.mxu0 %v3685
        %3736 = vmatpush.bf16.msra.mxu0 %v3683
        %3737 = vmatpush.bf16.msra.mxu0 %v3681
        %3738 = vmatpush.bf16.msra.mxu0 %v3679
        %3739 = vmatpush.bf16.msra.mxu0 %v3677
        %3740 = vmatpush.bf16.msra.mxu0 %v3675
        %3741 = vmatpush.bf16.msra.mxu0 %v3673
        %3742 = vmatmul.bf16.gmra.mxu0 %v3558
        %v3743 = vpop.f32.mrf.mxu0
        %v3744 = vadd.f32 %v3731, %v3743
        %v3745 = vpop.f32.mrf.mxu0
        %3746 = vdwg.mxu0
        %3747 = vmatpush.bf16.msra.mxu0 %v3672
        %3748 = vmatpush.bf16.msra.mxu0 %v3670
        %3749 = vmatpush.bf16.msra.mxu0 %v3668
        %3750 = vmatpush.bf16.msra.mxu0 %v3666
        %3751 = vmatpush.bf16.msra.mxu0 %v3664
        %3752 = vmatpush.bf16.msra.mxu0 %v3662
        %3753 = vmatpush.bf16.msra.mxu0 %v3660
        %3754 = vmatpush.bf16.msra.mxu0 %v3658
        %3755 = vmatmul.bf16.gmra.mxu0 %v3551
        %v3756 = vpop.f32.mrf.mxu0
        %v3757 = vadd.f32 0.0, %v3756
        %v3758 = vpop.f32.mrf.mxu0
        %3759 = vdwg.mxu0
        %3760 = vmatpush.bf16.msra.mxu0 %v3688
        %3761 = vmatpush.bf16.msra.mxu0 %v3686
        %3762 = vmatpush.bf16.msra.mxu0 %v3684
        %3763 = vmatpush.bf16.msra.mxu0 %v3682
        %3764 = vmatpush.bf16.msra.mxu0 %v3680
        %3765 = vmatpush.bf16.msra.mxu0 %v3678
        %3766 = vmatpush.bf16.msra.mxu0 %v3676
        %3767 = vmatpush.bf16.msra.mxu0 %v3674
        %3768 = vmatmul.bf16.gmra.mxu0 %v3558
        %v3769 = vpop.f32.mrf.mxu0
        %v3770 = vadd.f32 %v3757, %v3769
        %v3771 = vpop.f32.mrf.mxu0
        %3772 = vdwg.mxu0
        %v3805 = vunpack.c.l.b16 %v3476
        %v3806 = vunpack.c.h.b16 %v3476
        %v3807 = vunpack.c.l.b16 %v3477
        %v3808 = vunpack.c.h.b16 %v3477
        %v3809 = vunpack.c.l.b16 %v3478
        %v3810 = vunpack.c.h.b16 %v3478
        %v3811 = vunpack.c.l.b16 %v3479
        %v3812 = vunpack.c.h.b16 %v3479
        %v3813 = vunpack.c.l.b16 %v3480
        %v3814 = vunpack.c.h.b16 %v3480
        %v3815 = vunpack.c.l.b16 %v3481
        %v3816 = vunpack.c.h.b16 %v3481
        %v3817 = vunpack.c.l.b16 %v3482
        %v3818 = vunpack.c.h.b16 %v3482
        %v3819 = vunpack.c.l.b16 %v3483
        %v3820 = vunpack.c.h.b16 %v3483
        %v3821 = vunpack.c.l.b16 %v3484
        %v3822 = vunpack.c.h.b16 %v3484
        %v3823 = vunpack.c.l.b16 %v3485
        %v3824 = vunpack.c.h.b16 %v3485
        %v3825 = vunpack.c.l.b16 %v3486
        %v3826 = vunpack.c.h.b16 %v3486
        %v3827 = vunpack.c.l.b16 %v3487
        %v3828 = vunpack.c.h.b16 %v3487
        %v3829 = vunpack.c.l.b16 %v3488
        %v3830 = vunpack.c.h.b16 %v3488
        %v3831 = vunpack.c.l.b16 %v3489
        %v3832 = vunpack.c.h.b16 %v3489
        %v3833 = vunpack.c.l.b16 %v3490
        %v3834 = vunpack.c.h.b16 %v3490
        %v3835 = vunpack.c.l.b16 %v3491
        %v3836 = vunpack.c.h.b16 %v3491
        %v3837 = vunpack.c.l.b16 %v3492
        %v3838 = vunpack.c.h.b16 %v3492
        %v3839 = vunpack.c.l.b16 %v3493
        %v3840 = vunpack.c.h.b16 %v3493
        %v3841 = vunpack.c.l.b16 %v3494
        %v3842 = vunpack.c.h.b16 %v3494
        %v3843 = vunpack.c.l.b16 %v3495
        %v3844 = vunpack.c.h.b16 %v3495
        %v3845 = vunpack.c.l.b16 %v3496
        %v3846 = vunpack.c.h.b16 %v3496
        %v3847 = vunpack.c.l.b16 %v3497
        %v3848 = vunpack.c.h.b16 %v3497
        %v3849 = vunpack.c.l.b16 %v3498
        %v3850 = vunpack.c.h.b16 %v3498
        %v3851 = vunpack.c.l.b16 %v3499
        %v3852 = vunpack.c.h.b16 %v3499
        %v3853 = vunpack.c.l.b16 %v3500
        %v3854 = vunpack.c.h.b16 %v3500
        %v3855 = vunpack.c.l.b16 %v3501
        %v3856 = vunpack.c.h.b16 %v3501
        %v3857 = vunpack.c.l.b16 %v3502
        %v3858 = vunpack.c.h.b16 %v3502
        %v3859 = vunpack.c.l.b16 %v3503
        %v3860 = vunpack.c.h.b16 %v3503
        %v3861 = vunpack.c.l.b16 %v3504
        %v3862 = vunpack.c.h.b16 %v3504
        %v3863 = vunpack.c.l.b16 %v3505
        %v3864 = vunpack.c.h.b16 %v3505
        %v3865 = vunpack.c.l.b16 %v3506
        %v3866 = vunpack.c.h.b16 %v3506
        %v3867 = vunpack.c.l.b16 %v3507
        %v3868 = vunpack.c.h.b16 %v3507
        %v3869 = vpack.c.b16 %v3807, %v3805
        %v3870 = vpack.c.b16 %v3808, %v3806
        %v3871 = vpack.c.b16 %v3811, %v3809
        %v3872 = vpack.c.b16 %v3812, %v3810
        %v3873 = vpack.c.b16 %v3815, %v3813
        %v3874 = vpack.c.b16 %v3816, %v3814
        %v3875 = vpack.c.b16 %v3819, %v3817
        %v3876 = vpack.c.b16 %v3820, %v3818
        %v3877 = vpack.c.b16 %v3823, %v3821
        %v3878 = vpack.c.b16 %v3824, %v3822
        %v3879 = vpack.c.b16 %v3827, %v3825
        %v3880 = vpack.c.b16 %v3828, %v3826
        %v3881 = vpack.c.b16 %v3831, %v3829
        %v3882 = vpack.c.b16 %v3832, %v3830
        %v3883 = vpack.c.b16 %v3835, %v3833
        %v3884 = vpack.c.b16 %v3836, %v3834
        %v3885 = vpack.c.b16 %v3839, %v3837
        %v3886 = vpack.c.b16 %v3840, %v3838
        %v3887 = vpack.c.b16 %v3843, %v3841
        %v3888 = vpack.c.b16 %v3844, %v3842
        %v3889 = vpack.c.b16 %v3847, %v3845
        %v3890 = vpack.c.b16 %v3848, %v3846
        %v3891 = vpack.c.b16 %v3851, %v3849
        %v3892 = vpack.c.b16 %v3852, %v3850
        %v3893 = vpack.c.b16 %v3855, %v3853
        %v3894 = vpack.c.b16 %v3856, %v3854
        %v3895 = vpack.c.b16 %v3859, %v3857
        %v3896 = vpack.c.b16 %v3860, %v3858
        %v3897 = vpack.c.b16 %v3863, %v3861
        %v3898 = vpack.c.b16 %v3864, %v3862
        %v3899 = vpack.c.b16 %v3867, %v3865
        %v3900 = vpack.c.b16 %v3868, %v3866
        %3933 = vmatpush.bf16.msra.mxu0 %v3883
        %3934 = vmatpush.bf16.msra.mxu0 %v3881
        %3935 = vmatpush.bf16.msra.mxu0 %v3879
        %3936 = vmatpush.bf16.msra.mxu0 %v3877
        %3937 = vmatpush.bf16.msra.mxu0 %v3875
        %3938 = vmatpush.bf16.msra.mxu0 %v3873
        %3939 = vmatpush.bf16.msra.mxu0 %v3871
        %3940 = vmatpush.bf16.msra.mxu0 %v3869
        %3941 = vmatmul.bf16.gmra.mxu0 %v3474
        %v3942 = vpop.f32.mrf.mxu0
        %v3943 = vadd.f32 %v3744, %v3942
        %v3944 = vpop.f32.mrf.mxu0
        %3945 = vdwg.mxu0
        %3946 = vmatpush.bf16.msra.mxu0 %v3899
        %3947 = vmatpush.bf16.msra.mxu0 %v3897
        %3948 = vmatpush.bf16.msra.mxu0 %v3895
        %3949 = vmatpush.bf16.msra.mxu0 %v3893
        %3950 = vmatpush.bf16.msra.mxu0 %v3891
        %3951 = vmatpush.bf16.msra.mxu0 %v3889
        %3952 = vmatpush.bf16.msra.mxu0 %v3887
        %3953 = vmatpush.bf16.msra.mxu0 %v3885
        %3954 = vmatmul.bf16.gmra.mxu0 %v3475
        %v3955 = vpop.f32.mrf.mxu0
        %v3956 = vadd.f32 %v3943, %v3955
        %v3957 = vpop.f32.mrf.mxu0
        %3958 = vdwg.mxu0
        %3959 = vmatpush.bf16.msra.mxu0 %v3884
        %3960 = vmatpush.bf16.msra.mxu0 %v3882
        %3961 = vmatpush.bf16.msra.mxu0 %v3880
        %3962 = vmatpush.bf16.msra.mxu0 %v3878
        %3963 = vmatpush.bf16.msra.mxu0 %v3876
        %3964 = vmatpush.bf16.msra.mxu0 %v3874
        %3965 = vmatpush.bf16.msra.mxu0 %v3872
        %3966 = vmatpush.bf16.msra.mxu0 %v3870
        %3967 = vmatmul.bf16.gmra.mxu0 %v3474
        %v3968 = vpop.f32.mrf.mxu0
        %v3969 = vadd.f32 %v3770, %v3968
        %v3970 = vpop.f32.mrf.mxu0
        %3971 = vdwg.mxu0
        %3972 = vmatpush.bf16.msra.mxu0 %v3900
        %3973 = vmatpush.bf16.msra.mxu0 %v3898
        %3974 = vmatpush.bf16.msra.mxu0 %v3896
        %3975 = vmatpush.bf16.msra.mxu0 %v3894
        %3976 = vmatpush.bf16.msra.mxu0 %v3892
        %3977 = vmatpush.bf16.msra.mxu0 %v3890
        %3978 = vmatpush.bf16.msra.mxu0 %v3888
        %3979 = vmatpush.bf16.msra.mxu0 %v3886
        %3980 = vmatmul.bf16.gmra.mxu0 %v3475
        %v3981 = vpop.f32.mrf.mxu0
        %v3982 = vadd.f32 %v3969, %v3981
        %v3983 = vpop.f32.mrf.mxu0
        %3984 = vdwg.mxu0
        %v3985 = vld [vmem:[#allocation2] sm:$0x3c]
        %v3986 = vld [vmem:[#allocation2 + $0x8] sm:$0x3c]
        %v3987 = vpack.c.bf16 %v3985, %v3985
        %v3988 = vpack.c.bf16 %v3986, %v3986
        %s3989 = scalar_lea.vmem %s7, 512
        %v3990 = vld [vmem:[%s3989] sm:$0xff]
        %v3991 = vld [vmem:[%s3989 + $0x8] sm:$0xff]
        %v3992 = vld [vmem:[%s3989 + $0x10] sm:$0xff]
        %v3993 = vld [vmem:[%s3989 + $0x18] sm:$0xff]
        %v3994 = vld [vmem:[%s3989 + $0x20] sm:$0xff]
        %v3995 = vld [vmem:[%s3989 + $0x28] sm:$0xff]
        %v3996 = vld [vmem:[%s3989 + $0x30] sm:$0xff]
        %v3997 = vld [vmem:[%s3989 + $0x38] sm:$0xff]
        %v3998 = vld [vmem:[%s3989 + $0x40] sm:$0xff]
        %v3999 = vld [vmem:[%s3989 + $0x48] sm:$0xff]
        %v4000 = vld [vmem:[%s3989 + $0x50] sm:$0xff]
        %v4001 = vld [vmem:[%s3989 + $0x58] sm:$0xff]
        %v4002 = vld [vmem:[%s3989 + $0x60] sm:$0xff]
        %v4003 = vld [vmem:[%s3989 + $0x68] sm:$0xff]
        %v4004 = vld [vmem:[%s3989 + $0x70] sm:$0xff]
        %v4005 = vld [vmem:[%s3989 + $0x78] sm:$0xff]
        %v4006 = vld [vmem:[%s3989 + $0x80] sm:$0xff]
        %v4007 = vld [vmem:[%s3989 + $0x88] sm:$0xff]
        %v4008 = vld [vmem:[%s3989 + $0x90] sm:$0xff]
        %v4009 = vld [vmem:[%s3989 + $0x98] sm:$0xff]
        %v4010 = vld [vmem:[%s3989 + $0xa0] sm:$0xff]
        %v4011 = vld [vmem:[%s3989 + $0xa8] sm:$0xff]
        %v4012 = vld [vmem:[%s3989 + $0xb0] sm:$0xff]
        %v4013 = vld [vmem:[%s3989 + $0xb8] sm:$0xff]
        %v4014 = vld [vmem:[%s3989 + $0xc0] sm:$0xff]
        %v4015 = vld [vmem:[%s3989 + $0xc8] sm:$0xff]
        %v4016 = vld [vmem:[%s3989 + $0xd0] sm:$0xff]
        %v4017 = vld [vmem:[%s3989 + $0xd8] sm:$0xff]
        %v4018 = vld [vmem:[%s3989 + $0xe0] sm:$0xff]
        %v4019 = vld [vmem:[%s3989 + $0xe8] sm:$0xff]
        %v4020 = vld [vmem:[%s3989 + $0xf0] sm:$0xff]
        %v4021 = vld [vmem:[%s3989 + $0xf8] sm:$0xff]
        %v4024 = vrot.slane %v3987, 1
        %v4025 = vrot.slane %v3988, 1
        %v4060 = vunpack.c.l.b16 %v3990
        %v4061 = vunpack.c.h.b16 %v3990
        %v4062 = vunpack.c.l.b16 %v3991
        %v4063 = vunpack.c.h.b16 %v3991
        %v4064 = vunpack.c.l.b16 %v3992
        %v4065 = vunpack.c.h.b16 %v3992
        %v4066 = vunpack.c.l.b16 %v3993
        %v4067 = vunpack.c.h.b16 %v3993
        %v4068 = vunpack.c.l.b16 %v3994
        %v4069 = vunpack.c.h.b16 %v3994
        %v4070 = vunpack.c.l.b16 %v3995
        %v4071 = vunpack.c.h.b16 %v3995
        %v4072 = vunpack.c.l.b16 %v3996
        %v4073 = vunpack.c.h.b16 %v3996
        %v4074 = vunpack.c.l.b16 %v3997
        %v4075 = vunpack.c.h.b16 %v3997
        %v4076 = vunpack.c.l.b16 %v3998
        %v4077 = vunpack.c.h.b16 %v3998
        %v4078 = vunpack.c.l.b16 %v3999
        %v4079 = vunpack.c.h.b16 %v3999
        %v4080 = vunpack.c.l.b16 %v4000
        %v4081 = vunpack.c.h.b16 %v4000
        %v4082 = vunpack.c.l.b16 %v4001
        %v4083 = vunpack.c.h.b16 %v4001
        %v4084 = vunpack.c.l.b16 %v4002
        %v4085 = vunpack.c.h.b16 %v4002
        %v4086 = vunpack.c.l.b16 %v4003
        %v4087 = vunpack.c.h.b16 %v4003
        %v4088 = vunpack.c.l.b16 %v4004
        %v4089 = vunpack.c.h.b16 %v4004
        %v4090 = vunpack.c.l.b16 %v4005
        %v4091 = vunpack.c.h.b16 %v4005
        %v4092 = vunpack.c.l.b16 %v4006
        %v4093 = vunpack.c.h.b16 %v4006
        %v4094 = vunpack.c.l.b16 %v4007
        %v4095 = vunpack.c.h.b16 %v4007
        %v4096 = vunpack.c.l.b16 %v4008
        %v4097 = vunpack.c.h.b16 %v4008
        %v4098 = vunpack.c.l.b16 %v4009
        %v4099 = vunpack.c.h.b16 %v4009
        %v4100 = vunpack.c.l.b16 %v4010
        %v4101 = vunpack.c.h.b16 %v4010
        %v4102 = vunpack.c.l.b16 %v4011
        %v4103 = vunpack.c.h.b16 %v4011
        %v4104 = vunpack.c.l.b16 %v4012
        %v4105 = vunpack.c.h.b16 %v4012
        %v4106 = vunpack.c.l.b16 %v4013
        %v4107 = vunpack.c.h.b16 %v4013
        %v4108 = vunpack.c.l.b16 %v4014
        %v4109 = vunpack.c.h.b16 %v4014
        %v4110 = vunpack.c.l.b16 %v4015
        %v4111 = vunpack.c.h.b16 %v4015
        %v4112 = vunpack.c.l.b16 %v4016
        %v4113 = vunpack.c.h.b16 %v4016
        %v4114 = vunpack.c.l.b16 %v4017
        %v4115 = vunpack.c.h.b16 %v4017
        %v4116 = vunpack.c.l.b16 %v4018
        %v4117 = vunpack.c.h.b16 %v4018
        %v4118 = vunpack.c.l.b16 %v4019
        %v4119 = vunpack.c.h.b16 %v4019
        %v4120 = vunpack.c.l.b16 %v4020
        %v4121 = vunpack.c.h.b16 %v4020
        %v4122 = vunpack.c.l.b16 %v4021
        %v4123 = vunpack.c.h.b16 %v4021
        %v4124 = vpack.c.b16 %v4062, %v4060
        %v4125 = vpack.c.b16 %v4063, %v4061
        %v4126 = vpack.c.b16 %v4066, %v4064
        %v4127 = vpack.c.b16 %v4067, %v4065
        %v4128 = vpack.c.b16 %v4070, %v4068
        %v4129 = vpack.c.b16 %v4071, %v4069
        %v4130 = vpack.c.b16 %v4074, %v4072
        %v4131 = vpack.c.b16 %v4075, %v4073
        %v4132 = vpack.c.b16 %v4078, %v4076
        %v4133 = vpack.c.b16 %v4079, %v4077
        %v4134 = vpack.c.b16 %v4082, %v4080
        %v4135 = vpack.c.b16 %v4083, %v4081
        %v4136 = vpack.c.b16 %v4086, %v4084
        %v4137 = vpack.c.b16 %v4087, %v4085
        %v4138 = vpack.c.b16 %v4090, %v4088
        %v4139 = vpack.c.b16 %v4091, %v4089
        %v4140 = vpack.c.b16 %v4094, %v4092
        %v4141 = vpack.c.b16 %v4095, %v4093
        %v4142 = vpack.c.b16 %v4098, %v4096
        %v4143 = vpack.c.b16 %v4099, %v4097
        %v4144 = vpack.c.b16 %v4102, %v4100
        %v4145 = vpack.c.b16 %v4103, %v4101
        %v4146 = vpack.c.b16 %v4106, %v4104
        %v4147 = vpack.c.b16 %v4107, %v4105
        %v4148 = vpack.c.b16 %v4110, %v4108
        %v4149 = vpack.c.b16 %v4111, %v4109
        %v4150 = vpack.c.b16 %v4114, %v4112
        %v4151 = vpack.c.b16 %v4115, %v4113
        %v4152 = vpack.c.b16 %v4118, %v4116
        %v4153 = vpack.c.b16 %v4119, %v4117
        %v4154 = vpack.c.b16 %v4122, %v4120
        %v4155 = vpack.c.b16 %v4123, %v4121
        %4188 = vmatpush.bf16.msra.mxu0 %v4138
        %4189 = vmatpush.bf16.msra.mxu0 %v4136
        %4190 = vmatpush.bf16.msra.mxu0 %v4134
        %4191 = vmatpush.bf16.msra.mxu0 %v4132
        %4192 = vmatpush.bf16.msra.mxu0 %v4130
        %4193 = vmatpush.bf16.msra.mxu0 %v4128
        %4194 = vmatpush.bf16.msra.mxu0 %v4126
        %4195 = vmatpush.bf16.msra.mxu0 %v4124
        %4196 = vmatmul.bf16.gmra.mxu0 %v4024
        %v4197 = vpop.f32.mrf.mxu0
        %v4198 = vadd.f32 0.0, %v4197
        %v4199 = vpop.f32.mrf.mxu0
        %4200 = vdwg.mxu0
        %4201 = vmatpush.bf16.msra.mxu0 %v4154
        %4202 = vmatpush.bf16.msra.mxu0 %v4152
        %4203 = vmatpush.bf16.msra.mxu0 %v4150
        %4204 = vmatpush.bf16.msra.mxu0 %v4148
        %4205 = vmatpush.bf16.msra.mxu0 %v4146
        %4206 = vmatpush.bf16.msra.mxu0 %v4144
        %4207 = vmatpush.bf16.msra.mxu0 %v4142
        %4208 = vmatpush.bf16.msra.mxu0 %v4140
        %4209 = vmatmul.bf16.gmra.mxu0 %v4025
        %v4210 = vpop.f32.mrf.mxu0
        %v4211 = vadd.f32 %v4198, %v4210
        %v4212 = vpop.f32.mrf.mxu0
        %4213 = vdwg.mxu0
        %4214 = vmatpush.bf16.msra.mxu0 %v4139
        %4215 = vmatpush.bf16.msra.mxu0 %v4137
        %4216 = vmatpush.bf16.msra.mxu0 %v4135
        %4217 = vmatpush.bf16.msra.mxu0 %v4133
        %4218 = vmatpush.bf16.msra.mxu0 %v4131
        %4219 = vmatpush.bf16.msra.mxu0 %v4129
        %4220 = vmatpush.bf16.msra.mxu0 %v4127
        %4221 = vmatpush.bf16.msra.mxu0 %v4125
        %4222 = vmatmul.bf16.gmra.mxu0 %v4024
        %v4223 = vpop.f32.mrf.mxu0
        %v4224 = vadd.f32 0.0, %v4223
        %v4225 = vpop.f32.mrf.mxu0
        %4226 = vdwg.mxu0
        %4227 = vmatpush.bf16.msra.mxu0 %v4155
        %4228 = vmatpush.bf16.msra.mxu0 %v4153
        %4229 = vmatpush.bf16.msra.mxu0 %v4151
        %4230 = vmatpush.bf16.msra.mxu0 %v4149
        %4231 = vmatpush.bf16.msra.mxu0 %v4147
        %4232 = vmatpush.bf16.msra.mxu0 %v4145
        %4233 = vmatpush.bf16.msra.mxu0 %v4143
        %4234 = vmatpush.bf16.msra.mxu0 %v4141
        %4235 = vmatmul.bf16.gmra.mxu0 %v4025
        %v4236 = vpop.f32.mrf.mxu0
        %v4237 = vadd.f32 %v4224, %v4236
        %v4238 = vpop.f32.mrf.mxu0
        %4239 = vdwg.mxu0
        %v4240 = vadd.f32 %v3956, %v4211
        %v4241 = vadd.f32 %v3982, %v4237
        %v4242 = vld [vmem:[%s8] sm:$0x3]
        %v4244 = vperm.slane %v4242, 0
        %v4245 = vperm.slane %v4242, 1
        %v4248 = vadd.f32 %v4240, %v4244
        %v4249 = vadd.f32 %v4241, %v4245
        %v4250 = vadd.f32 %v4248, %v2674
        %v4251 = vadd.f32 %v4249, %v2675
        %v4252 = vld [vmem:[%s10] sm:$0x1]
        %v4253 = vpack.c.bf16 %v4250, %v4250
        %v4254 = vpack.c.bf16 %v4251, %v4251
        %v4255 = vld [vmem:[%s9] sm:$0xf]
        %v4256 = vld [vmem:[%s9 + $0x4] sm:$0xf]
        %v4257 = vld [vmem:[%s9 + $0x8] sm:$0xf]
        %v4258 = vld [vmem:[%s9 + $0xc] sm:$0xf]
        %v4259 = vld [vmem:[%s9 + $0x10] sm:$0xf]
        %v4260 = vld [vmem:[%s9 + $0x14] sm:$0xf]
        %v4261 = vld [vmem:[%s9 + $0x18] sm:$0xf]
        %v4262 = vld [vmem:[%s9 + $0x1c] sm:$0xf]
        %v4263 = vld [vmem:[%s9 + $0x20] sm:$0xf]
        %v4264 = vld [vmem:[%s9 + $0x24] sm:$0xf]
        %v4265 = vld [vmem:[%s9 + $0x28] sm:$0xf]
        %v4266 = vld [vmem:[%s9 + $0x2c] sm:$0xf]
        %v4267 = vld [vmem:[%s9 + $0x30] sm:$0xf]
        %v4268 = vld [vmem:[%s9 + $0x34] sm:$0xf]
        %v4269 = vld [vmem:[%s9 + $0x38] sm:$0xf]
        %v4270 = vld [vmem:[%s9 + $0x3c] sm:$0xf]
        %v4271 = vld [vmem:[%s9 + $0x40] sm:$0xf]
        %v4272 = vld [vmem:[%s9 + $0x44] sm:$0xf]
        %v4273 = vld [vmem:[%s9 + $0x48] sm:$0xf]
        %v4274 = vld [vmem:[%s9 + $0x4c] sm:$0xf]
        %v4275 = vld [vmem:[%s9 + $0x50] sm:$0xf]
        %v4276 = vld [vmem:[%s9 + $0x54] sm:$0xf]
        %v4277 = vld [vmem:[%s9 + $0x58] sm:$0xf]
        %v4278 = vld [vmem:[%s9 + $0x5c] sm:$0xf]
        %v4279 = vld [vmem:[%s9 + $0x60] sm:$0xf]
        %v4280 = vld [vmem:[%s9 + $0x64] sm:$0xf]
        %v4281 = vld [vmem:[%s9 + $0x68] sm:$0xf]
        %v4282 = vld [vmem:[%s9 + $0x6c] sm:$0xf]
        %v4283 = vld [vmem:[%s9 + $0x70] sm:$0xf]
        %v4284 = vld [vmem:[%s9 + $0x74] sm:$0xf]
        %v4285 = vld [vmem:[%s9 + $0x78] sm:$0xf]
        %v4286 = vld [vmem:[%s9 + $0x7c] sm:$0xf]
        %v4319 = vunpack.c.l.b16 %v4255
        %v4320 = vunpack.c.l.b16 %v4256
        %v4321 = vunpack.c.l.b16 %v4257
        %v4322 = vunpack.c.l.b16 %v4258
        %v4323 = vunpack.c.l.b16 %v4259
        %v4324 = vunpack.c.l.b16 %v4260
        %v4325 = vunpack.c.l.b16 %v4261
        %v4326 = vunpack.c.l.b16 %v4262
        %v4327 = vunpack.c.l.b16 %v4263
        %v4328 = vunpack.c.l.b16 %v4264
        %v4329 = vunpack.c.l.b16 %v4265
        %v4330 = vunpack.c.l.b16 %v4266
        %v4331 = vunpack.c.l.b16 %v4267
        %v4332 = vunpack.c.l.b16 %v4268
        %v4333 = vunpack.c.l.b16 %v4269
        %v4334 = vunpack.c.l.b16 %v4270
        %v4335 = vunpack.c.l.b16 %v4271
        %v4336 = vunpack.c.l.b16 %v4272
        %v4337 = vunpack.c.l.b16 %v4273
        %v4338 = vunpack.c.l.b16 %v4274
        %v4339 = vunpack.c.l.b16 %v4275
        %v4340 = vunpack.c.l.b16 %v4276
        %v4341 = vunpack.c.l.b16 %v4277
        %v4342 = vunpack.c.l.b16 %v4278
        %v4343 = vunpack.c.l.b16 %v4279
        %v4344 = vunpack.c.l.b16 %v4280
        %v4345 = vunpack.c.l.b16 %v4281
        %v4346 = vunpack.c.l.b16 %v4282
        %v4347 = vunpack.c.l.b16 %v4283
        %v4348 = vunpack.c.l.b16 %v4284
        %v4349 = vunpack.c.l.b16 %v4285
        %v4350 = vunpack.c.l.b16 %v4286
        %v4351 = vpack.c.b16 %v4320, %v4319
        %v4352 = vpack.c.b16 %v4322, %v4321
        %v4353 = vpack.c.b16 %v4324, %v4323
        %v4354 = vpack.c.b16 %v4326, %v4325
        %v4355 = vpack.c.b16 %v4328, %v4327
        %v4356 = vpack.c.b16 %v4330, %v4329
        %v4357 = vpack.c.b16 %v4332, %v4331
        %v4358 = vpack.c.b16 %v4334, %v4333
        %v4359 = vpack.c.b16 %v4336, %v4335
        %v4360 = vpack.c.b16 %v4338, %v4337
        %v4361 = vpack.c.b16 %v4340, %v4339
        %v4362 = vpack.c.b16 %v4342, %v4341
        %v4363 = vpack.c.b16 %v4344, %v4343
        %v4364 = vpack.c.b16 %v4346, %v4345
        %v4365 = vpack.c.b16 %v4348, %v4347
        %v4366 = vpack.c.b16 %v4350, %v4349
        %4383 = vmatpush.bf16.msra.mxu0 %v4358
        %4384 = vmatpush.bf16.msra.mxu0 %v4357
        %4385 = vmatpush.bf16.msra.mxu0 %v4356
        %4386 = vmatpush.bf16.msra.mxu0 %v4355
        %4387 = vmatpush.bf16.msra.mxu0 %v4354
        %4388 = vmatpush.bf16.msra.mxu0 %v4353
        %4389 = vmatpush.bf16.msra.mxu0 %v4352
        %4390 = vmatpush.bf16.msra.mxu0 %v4351
        %4391 = vmatmul.bf16.gmra.mxu0 %v4253
        %v4392 = vpop.f32.mrf.mxu0
        %v4393 = vadd.f32 0.0, %v4392
        %v4394 = vpop.f32.mrf.mxu0
        %4395 = vdwg.mxu0
        %4396 = vmatpush.bf16.msra.mxu0 %v4366
        %4397 = vmatpush.bf16.msra.mxu0 %v4365
        %4398 = vmatpush.bf16.msra.mxu0 %v4364
        %4399 = vmatpush.bf16.msra.mxu0 %v4363
        %4400 = vmatpush.bf16.msra.mxu0 %v4362
        %4401 = vmatpush.bf16.msra.mxu0 %v4361
        %4402 = vmatpush.bf16.msra.mxu0 %v4360
        %4403 = vmatpush.bf16.msra.mxu0 %v4359
        %4404 = vmatmul.bf16.gmra.mxu0 %v4254
        %v4405 = vpop.f32.mrf.mxu0
        %v4406 = vadd.f32 %v4393, %v4405
        %v4407 = vpop.f32.mrf.mxu0
        %4408 = vdwg.mxu0
        %v4409 = vadd.f32 %v4252, %v4406
        %s4410 = scalar_lea.vmem %s9, 128
        %v4411 = vld [vmem:[%s4410] sm:$0xf]
        %v4412 = vld [vmem:[%s4410 + $0x4] sm:$0xf]
        %v4413 = vld [vmem:[%s4410 + $0x8] sm:$0xf]
        %v4414 = vld [vmem:[%s4410 + $0xc] sm:$0xf]
        %v4415 = vld [vmem:[%s4410 + $0x10] sm:$0xf]
        %v4416 = vld [vmem:[%s4410 + $0x14] sm:$0xf]
        %v4417 = vld [vmem:[%s4410 + $0x18] sm:$0xf]
        %v4418 = vld [vmem:[%s4410 + $0x1c] sm:$0xf]
        %v4419 = vld [vmem:[%s4410 + $0x20] sm:$0xf]
        %v4420 = vld [vmem:[%s4410 + $0x24] sm:$0xf]
        %v4421 = vld [vmem:[%s4410 + $0x28] sm:$0xf]
        %v4422 = vld [vmem:[%s4410 + $0x2c] sm:$0xf]
        %v4423 = vld [vmem:[%s4410 + $0x30] sm:$0xf]
        %v4424 = vld [vmem:[%s4410 + $0x34] sm:$0xf]
        %v4425 = vld [vmem:[%s4410 + $0x38] sm:$0xf]
        %v4426 = vld [vmem:[%s4410 + $0x3c] sm:$0xf]
        %v4427 = vld [vmem:[%s4410 + $0x40] sm:$0xf]
        %v4428 = vld [vmem:[%s4410 + $0x44] sm:$0xf]
        %v4429 = vld [vmem:[%s4410 + $0x48] sm:$0xf]
        %v4430 = vld [vmem:[%s4410 + $0x4c] sm:$0xf]
        %v4431 = vld [vmem:[%s4410 + $0x50] sm:$0xf]
        %v4432 = vld [vmem:[%s4410 + $0x54] sm:$0xf]
        %v4433 = vld [vmem:[%s4410 + $0x58] sm:$0xf]
        %v4434 = vld [vmem:[%s4410 + $0x5c] sm:$0xf]
        %v4435 = vld [vmem:[%s4410 + $0x60] sm:$0xf]
        %v4436 = vld [vmem:[%s4410 + $0x64] sm:$0xf]
        %v4437 = vld [vmem:[%s4410 + $0x68] sm:$0xf]
        %v4438 = vld [vmem:[%s4410 + $0x6c] sm:$0xf]
        %v4439 = vld [vmem:[%s4410 + $0x70] sm:$0xf]
        %v4440 = vld [vmem:[%s4410 + $0x74] sm:$0xf]
        %v4441 = vld [vmem:[%s4410 + $0x78] sm:$0xf]
        %v4442 = vld [vmem:[%s4410 + $0x7c] sm:$0xf]
        %v4444 = vshrl.u32 %v4253, 16
        %v4447 = vshrl.u32 %v4254, 16
        %v4483 = vunpack.c.l.b16 %v4411
        %v4484 = vunpack.c.l.b16 %v4412
        %v4485 = vunpack.c.l.b16 %v4413
        %v4486 = vunpack.c.l.b16 %v4414
        %v4487 = vunpack.c.l.b16 %v4415
        %v4488 = vunpack.c.l.b16 %v4416
        %v4489 = vunpack.c.l.b16 %v4417
        %v4490 = vunpack.c.l.b16 %v4418
        %v4491 = vunpack.c.l.b16 %v4419
        %v4492 = vunpack.c.l.b16 %v4420
        %v4493 = vunpack.c.l.b16 %v4421
        %v4494 = vunpack.c.l.b16 %v4422
        %v4495 = vunpack.c.l.b16 %v4423
        %v4496 = vunpack.c.l.b16 %v4424
        %v4497 = vunpack.c.l.b16 %v4425
        %v4498 = vunpack.c.l.b16 %v4426
        %v4499 = vunpack.c.l.b16 %v4427
        %v4500 = vunpack.c.l.b16 %v4428
        %v4501 = vunpack.c.l.b16 %v4429
        %v4502 = vunpack.c.l.b16 %v4430
        %v4503 = vunpack.c.l.b16 %v4431
        %v4504 = vunpack.c.l.b16 %v4432
        %v4505 = vunpack.c.l.b16 %v4433
        %v4506 = vunpack.c.l.b16 %v4434
        %v4507 = vunpack.c.l.b16 %v4435
        %v4508 = vunpack.c.l.b16 %v4436
        %v4509 = vunpack.c.l.b16 %v4437
        %v4510 = vunpack.c.l.b16 %v4438
        %v4511 = vunpack.c.l.b16 %v4439
        %v4512 = vunpack.c.l.b16 %v4440
        %v4513 = vunpack.c.l.b16 %v4441
        %v4514 = vunpack.c.l.b16 %v4442
        %v4515 = vpack.c.b16 %v4484, %v4483
        %v4516 = vpack.c.b16 %v4486, %v4485
        %v4517 = vpack.c.b16 %v4488, %v4487
        %v4518 = vpack.c.b16 %v4490, %v4489
        %v4519 = vpack.c.b16 %v4492, %v4491
        %v4520 = vpack.c.b16 %v4494, %v4493
        %v4521 = vpack.c.b16 %v4496, %v4495
        %v4522 = vpack.c.b16 %v4498, %v4497
        %v4523 = vpack.c.b16 %v4500, %v4499
        %v4524 = vpack.c.b16 %v4502, %v4501
        %v4525 = vpack.c.b16 %v4504, %v4503
        %v4526 = vpack.c.b16 %v4506, %v4505
        %v4527 = vpack.c.b16 %v4508, %v4507
        %v4528 = vpack.c.b16 %v4510, %v4509
        %v4529 = vpack.c.b16 %v4512, %v4511
        %v4530 = vpack.c.b16 %v4514, %v4513
        %4547 = vmatpush.bf16.msra.mxu0 %v4522
        %4548 = vmatpush.bf16.msra.mxu0 %v4521
        %4549 = vmatpush.bf16.msra.mxu0 %v4520
        %4550 = vmatpush.bf16.msra.mxu0 %v4519
        %4551 = vmatpush.bf16.msra.mxu0 %v4518
        %4552 = vmatpush.bf16.msra.mxu0 %v4517
        %4553 = vmatpush.bf16.msra.mxu0 %v4516
        %4554 = vmatpush.bf16.msra.mxu0 %v4515
        %4555 = vmatmul.bf16.gmra.mxu0 %v4444
        %v4556 = vpop.f32.mrf.mxu0
        %v4557 = vadd.f32 0.0, %v4556
        %v4558 = vpop.f32.mrf.mxu0
        %4559 = vdwg.mxu0
        %4560 = vmatpush.bf16.msra.mxu0 %v4530
        %4561 = vmatpush.bf16.msra.mxu0 %v4529
        %4562 = vmatpush.bf16.msra.mxu0 %v4528
        %4563 = vmatpush.bf16.msra.mxu0 %v4527
        %4564 = vmatpush.bf16.msra.mxu0 %v4526
        %4565 = vmatpush.bf16.msra.mxu0 %v4525
        %4566 = vmatpush.bf16.msra.mxu0 %v4524
        %4567 = vmatpush.bf16.msra.mxu0 %v4523
        %4568 = vmatmul.bf16.gmra.mxu0 %v4447
        %v4569 = vpop.f32.mrf.mxu0
        %v4570 = vadd.f32 %v4557, %v4569
        %v4571 = vpop.f32.mrf.mxu0
        %4572 = vdwg.mxu0
        %v4573 = vadd.f32 %v4409, %v4570
        %s4574 = scalar_lea.vmem %s9, 256
        %v4575 = vld [vmem:[%s4574] sm:$0xf]
        %v4576 = vld [vmem:[%s4574 + $0x4] sm:$0xf]
        %v4577 = vld [vmem:[%s4574 + $0x8] sm:$0xf]
        %v4578 = vld [vmem:[%s4574 + $0xc] sm:$0xf]
        %v4579 = vld [vmem:[%s4574 + $0x10] sm:$0xf]
        %v4580 = vld [vmem:[%s4574 + $0x14] sm:$0xf]
        %v4581 = vld [vmem:[%s4574 + $0x18] sm:$0xf]
        %v4582 = vld [vmem:[%s4574 + $0x1c] sm:$0xf]
        %v4583 = vld [vmem:[%s4574 + $0x20] sm:$0xf]
        %v4584 = vld [vmem:[%s4574 + $0x24] sm:$0xf]
        %v4585 = vld [vmem:[%s4574 + $0x28] sm:$0xf]
        %v4586 = vld [vmem:[%s4574 + $0x2c] sm:$0xf]
        %v4587 = vld [vmem:[%s4574 + $0x30] sm:$0xf]
        %v4588 = vld [vmem:[%s4574 + $0x34] sm:$0xf]
        %v4589 = vld [vmem:[%s4574 + $0x38] sm:$0xf]
        %v4590 = vld [vmem:[%s4574 + $0x3c] sm:$0xf]
        %v4591 = vld [vmem:[%s4574 + $0x40] sm:$0xf]
        %v4592 = vld [vmem:[%s4574 + $0x44] sm:$0xf]
        %v4593 = vld [vmem:[%s4574 + $0x48] sm:$0xf]
        %v4594 = vld [vmem:[%s4574 + $0x4c] sm:$0xf]
        %v4595 = vld [vmem:[%s4574 + $0x50] sm:$0xf]
        %v4596 = vld [vmem:[%s4574 + $0x54] sm:$0xf]
        %v4597 = vld [vmem:[%s4574 + $0x58] sm:$0xf]
        %v4598 = vld [vmem:[%s4574 + $0x5c] sm:$0xf]
        %v4599 = vld [vmem:[%s4574 + $0x60] sm:$0xf]
        %v4600 = vld [vmem:[%s4574 + $0x64] sm:$0xf]
        %v4601 = vld [vmem:[%s4574 + $0x68] sm:$0xf]
        %v4602 = vld [vmem:[%s4574 + $0x6c] sm:$0xf]
        %v4603 = vld [vmem:[%s4574 + $0x70] sm:$0xf]
        %v4604 = vld [vmem:[%s4574 + $0x74] sm:$0xf]
        %v4605 = vld [vmem:[%s4574 + $0x78] sm:$0xf]
        %v4606 = vld [vmem:[%s4574 + $0x7c] sm:$0xf]
        %v4609 = vrot.slane %v4253, 1
        %v4610 = vrot.slane %v4254, 1
        %v4645 = vunpack.c.l.b16 %v4575
        %v4646 = vunpack.c.l.b16 %v4576
        %v4647 = vunpack.c.l.b16 %v4577
        %v4648 = vunpack.c.l.b16 %v4578
        %v4649 = vunpack.c.l.b16 %v4579
        %v4650 = vunpack.c.l.b16 %v4580
        %v4651 = vunpack.c.l.b16 %v4581
        %v4652 = vunpack.c.l.b16 %v4582
        %v4653 = vunpack.c.l.b16 %v4583
        %v4654 = vunpack.c.l.b16 %v4584
        %v4655 = vunpack.c.l.b16 %v4585
        %v4656 = vunpack.c.l.b16 %v4586
        %v4657 = vunpack.c.l.b16 %v4587
        %v4658 = vunpack.c.l.b16 %v4588
        %v4659 = vunpack.c.l.b16 %v4589
        %v4660 = vunpack.c.l.b16 %v4590
        %v4661 = vunpack.c.l.b16 %v4591
        %v4662 = vunpack.c.l.b16 %v4592
        %v4663 = vunpack.c.l.b16 %v4593
        %v4664 = vunpack.c.l.b16 %v4594
        %v4665 = vunpack.c.l.b16 %v4595
        %v4666 = vunpack.c.l.b16 %v4596
        %v4667 = vunpack.c.l.b16 %v4597
        %v4668 = vunpack.c.l.b16 %v4598
        %v4669 = vunpack.c.l.b16 %v4599
        %v4670 = vunpack.c.l.b16 %v4600
        %v4671 = vunpack.c.l.b16 %v4601
        %v4672 = vunpack.c.l.b16 %v4602
        %v4673 = vunpack.c.l.b16 %v4603
        %v4674 = vunpack.c.l.b16 %v4604
        %v4675 = vunpack.c.l.b16 %v4605
        %v4676 = vunpack.c.l.b16 %v4606
        %v4677 = vpack.c.b16 %v4646, %v4645
        %v4678 = vpack.c.b16 %v4648, %v4647
        %v4679 = vpack.c.b16 %v4650, %v4649
        %v4680 = vpack.c.b16 %v4652, %v4651
        %v4681 = vpack.c.b16 %v4654, %v4653
        %v4682 = vpack.c.b16 %v4656, %v4655
        %v4683 = vpack.c.b16 %v4658, %v4657
        %v4684 = vpack.c.b16 %v4660, %v4659
        %v4685 = vpack.c.b16 %v4662, %v4661
        %v4686 = vpack.c.b16 %v4664, %v4663
        %v4687 = vpack.c.b16 %v4666, %v4665
        %v4688 = vpack.c.b16 %v4668, %v4667
        %v4689 = vpack.c.b16 %v4670, %v4669
        %v4690 = vpack.c.b16 %v4672, %v4671
        %v4691 = vpack.c.b16 %v4674, %v4673
        %v4692 = vpack.c.b16 %v4676, %v4675
        %4709 = vmatpush.bf16.msra.mxu0 %v4684
        %4710 = vmatpush.bf16.msra.mxu0 %v4683
        %4711 = vmatpush.bf16.msra.mxu0 %v4682
        %4712 = vmatpush.bf16.msra.mxu0 %v4681
        %4713 = vmatpush.bf16.msra.mxu0 %v4680
        %4714 = vmatpush.bf16.msra.mxu0 %v4679
        %4715 = vmatpush.bf16.msra.mxu0 %v4678
        %4716 = vmatpush.bf16.msra.mxu0 %v4677
        %4717 = vmatmul.bf16.gmra.mxu0 %v4609
        %v4718 = vpop.f32.mrf.mxu0
        %v4719 = vadd.f32 0.0, %v4718
        %v4720 = vpop.f32.mrf.mxu0
        %4721 = vdwg.mxu0
        %4722 = vmatpush.bf16.msra.mxu0 %v4692
        %4723 = vmatpush.bf16.msra.mxu0 %v4691
        %4724 = vmatpush.bf16.msra.mxu0 %v4690
        %4725 = vmatpush.bf16.msra.mxu0 %v4689
        %4726 = vmatpush.bf16.msra.mxu0 %v4688
        %4727 = vmatpush.bf16.msra.mxu0 %v4687
        %4728 = vmatpush.bf16.msra.mxu0 %v4686
        %4729 = vmatpush.bf16.msra.mxu0 %v4685
        %4730 = vmatmul.bf16.gmra.mxu0 %v4610
        %v4731 = vpop.f32.mrf.mxu0
        %v4732 = vadd.f32 %v4719, %v4731
        %v4733 = vpop.f32.mrf.mxu0
        %4734 = vdwg.mxu0
        %v4735 = vadd.f32 %v4573, %v4732
        %s4736 = scalar_lea.vmem %s9, 384
        %v4737 = vld [vmem:[%s4736] sm:$0xf]
        %v4738 = vld [vmem:[%s4736 + $0x4] sm:$0xf]
        %v4739 = vld [vmem:[%s4736 + $0x8] sm:$0xf]
        %v4740 = vld [vmem:[%s4736 + $0xc] sm:$0xf]
        %v4741 = vld [vmem:[%s4736 + $0x10] sm:$0xf]
        %v4742 = vld [vmem:[%s4736 + $0x14] sm:$0xf]
        %v4743 = vld [vmem:[%s4736 + $0x18] sm:$0xf]
        %v4744 = vld [vmem:[%s4736 + $0x1c] sm:$0xf]
        %v4745 = vld [vmem:[%s4736 + $0x20] sm:$0xf]
        %v4746 = vld [vmem:[%s4736 + $0x24] sm:$0xf]
        %v4747 = vld [vmem:[%s4736 + $0x28] sm:$0xf]
        %v4748 = vld [vmem:[%s4736 + $0x2c] sm:$0xf]
        %v4749 = vld [vmem:[%s4736 + $0x30] sm:$0xf]
        %v4750 = vld [vmem:[%s4736 + $0x34] sm:$0xf]
        %v4751 = vld [vmem:[%s4736 + $0x38] sm:$0xf]
        %v4752 = vld [vmem:[%s4736 + $0x3c] sm:$0xf]
        %v4753 = vld [vmem:[%s4736 + $0x40] sm:$0xf]
        %v4754 = vld [vmem:[%s4736 + $0x44] sm:$0xf]
        %v4755 = vld [vmem:[%s4736 + $0x48] sm:$0xf]
        %v4756 = vld [vmem:[%s4736 + $0x4c] sm:$0xf]
        %v4757 = vld [vmem:[%s4736 + $0x50] sm:$0xf]
        %v4758 = vld [vmem:[%s4736 + $0x54] sm:$0xf]
        %v4759 = vld [vmem:[%s4736 + $0x58] sm:$0xf]
        %v4760 = vld [vmem:[%s4736 + $0x5c] sm:$0xf]
        %v4761 = vld [vmem:[%s4736 + $0x60] sm:$0xf]
        %v4762 = vld [vmem:[%s4736 + $0x64] sm:$0xf]
        %v4763 = vld [vmem:[%s4736 + $0x68] sm:$0xf]
        %v4764 = vld [vmem:[%s4736 + $0x6c] sm:$0xf]
        %v4765 = vld [vmem:[%s4736 + $0x70] sm:$0xf]
        %v4766 = vld [vmem:[%s4736 + $0x74] sm:$0xf]
        %v4767 = vld [vmem:[%s4736 + $0x78] sm:$0xf]
        %v4768 = vld [vmem:[%s4736 + $0x7c] sm:$0xf]
        %v4769 = vrot.slane %v4444, 1
        %v4770 = vrot.slane %v4447, 1
        %v4805 = vunpack.c.l.b16 %v4737
        %v4806 = vunpack.c.l.b16 %v4738
        %v4807 = vunpack.c.l.b16 %v4739
        %v4808 = vunpack.c.l.b16 %v4740
        %v4809 = vunpack.c.l.b16 %v4741
        %v4810 = vunpack.c.l.b16 %v4742
        %v4811 = vunpack.c.l.b16 %v4743
        %v4812 = vunpack.c.l.b16 %v4744
        %v4813 = vunpack.c.l.b16 %v4745
        %v4814 = vunpack.c.l.b16 %v4746
        %v4815 = vunpack.c.l.b16 %v4747
        %v4816 = vunpack.c.l.b16 %v4748
        %v4817 = vunpack.c.l.b16 %v4749
        %v4818 = vunpack.c.l.b16 %v4750
        %v4819 = vunpack.c.l.b16 %v4751
        %v4820 = vunpack.c.l.b16 %v4752
        %v4821 = vunpack.c.l.b16 %v4753
        %v4822 = vunpack.c.l.b16 %v4754
        %v4823 = vunpack.c.l.b16 %v4755
        %v4824 = vunpack.c.l.b16 %v4756
        %v4825 = vunpack.c.l.b16 %v4757
        %v4826 = vunpack.c.l.b16 %v4758
        %v4827 = vunpack.c.l.b16 %v4759
        %v4828 = vunpack.c.l.b16 %v4760
        %v4829 = vunpack.c.l.b16 %v4761
        %v4830 = vunpack.c.l.b16 %v4762
        %v4831 = vunpack.c.l.b16 %v4763
        %v4832 = vunpack.c.l.b16 %v4764
        %v4833 = vunpack.c.l.b16 %v4765
        %v4834 = vunpack.c.l.b16 %v4766
        %v4835 = vunpack.c.l.b16 %v4767
        %v4836 = vunpack.c.l.b16 %v4768
        %v4837 = vpack.c.b16 %v4806, %v4805
        %v4838 = vpack.c.b16 %v4808, %v4807
        %v4839 = vpack.c.b16 %v4810, %v4809
        %v4840 = vpack.c.b16 %v4812, %v4811
        %v4841 = vpack.c.b16 %v4814, %v4813
        %v4842 = vpack.c.b16 %v4816, %v4815
        %v4843 = vpack.c.b16 %v4818, %v4817
        %v4844 = vpack.c.b16 %v4820, %v4819
        %v4845 = vpack.c.b16 %v4822, %v4821
        %v4846 = vpack.c.b16 %v4824, %v4823
        %v4847 = vpack.c.b16 %v4826, %v4825
        %v4848 = vpack.c.b16 %v4828, %v4827
        %v4849 = vpack.c.b16 %v4830, %v4829
        %v4850 = vpack.c.b16 %v4832, %v4831
        %v4851 = vpack.c.b16 %v4834, %v4833
        %v4852 = vpack.c.b16 %v4836, %v4835
        %4869 = vmatpush.bf16.msra.mxu0 %v4844
        %4870 = vmatpush.bf16.msra.mxu0 %v4843
        %4871 = vmatpush.bf16.msra.mxu0 %v4842
        %4872 = vmatpush.bf16.msra.mxu0 %v4841
        %4873 = vmatpush.bf16.msra.mxu0 %v4840
        %4874 = vmatpush.bf16.msra.mxu0 %v4839
        %4875 = vmatpush.bf16.msra.mxu0 %v4838
        %4876 = vmatpush.bf16.msra.mxu0 %v4837
        %4877 = vmatmul.bf16.gmra.mxu0 %v4769
        %v4878 = vpop.f32.mrf.mxu0
        %v4879 = vadd.f32 0.0, %v4878
        %v4880 = vpop.f32.mrf.mxu0
        %4881 = vdwg.mxu0
        %4882 = vmatpush.bf16.msra.mxu0 %v4852
        %4883 = vmatpush.bf16.msra.mxu0 %v4851
        %4884 = vmatpush.bf16.msra.mxu0 %v4850
        %4885 = vmatpush.bf16.msra.mxu0 %v4849
        %4886 = vmatpush.bf16.msra.mxu0 %v4848
        %4887 = vmatpush.bf16.msra.mxu0 %v4847
        %4888 = vmatpush.bf16.msra.mxu0 %v4846
        %4889 = vmatpush.bf16.msra.mxu0 %v4845
        %4890 = vmatmul.bf16.gmra.mxu0 %v4770
        %v4891 = vpop.f32.mrf.mxu0
        %v4892 = vadd.f32 %v4879, %v4891
        %v4893 = vpop.f32.mrf.mxu0
        %4894 = vdwg.mxu0
        %v4895 = vadd.f32 %v4735, %v4892
        %v4896 = vmax.f32 %v4895, 0.0
        %v4897 = vpack.c.bf16 %v4896, %v4896
        %v4898 = vld [vmem:[%s11] sm:$0xf]
        %v4899 = vld [vmem:[%s11 + $0x4] sm:$0xf]
        %v4900 = vld [vmem:[%s11 + $0x8] sm:$0xf]
        %v4901 = vld [vmem:[%s11 + $0xc] sm:$0xf]
        %v4902 = vld [vmem:[%s11 + $0x10] sm:$0xf]
        %v4903 = vld [vmem:[%s11 + $0x14] sm:$0xf]
        %v4904 = vld [vmem:[%s11 + $0x18] sm:$0xf]
        %v4905 = vld [vmem:[%s11 + $0x1c] sm:$0xf]
        %v4906 = vld [vmem:[%s11 + $0x20] sm:$0xf]
        %v4907 = vld [vmem:[%s11 + $0x24] sm:$0xf]
        %v4908 = vld [vmem:[%s11 + $0x28] sm:$0xf]
        %v4909 = vld [vmem:[%s11 + $0x2c] sm:$0xf]
        %v4910 = vld [vmem:[%s11 + $0x30] sm:$0xf]
        %v4911 = vld [vmem:[%s11 + $0x34] sm:$0xf]
        %v4912 = vld [vmem:[%s11 + $0x38] sm:$0xf]
        %v4913 = vld [vmem:[%s11 + $0x3c] sm:$0xf]
        %v4914 = vld [vmem:[%s12] sm:$0x1]
        %v4931 = vunpack.c.l.b16 %v4898
        %v4932 = vunpack.c.l.b16 %v4899
        %v4933 = vunpack.c.l.b16 %v4900
        %v4934 = vunpack.c.l.b16 %v4901
        %v4935 = vunpack.c.l.b16 %v4902
        %v4936 = vunpack.c.l.b16 %v4903
        %v4937 = vunpack.c.l.b16 %v4904
        %v4938 = vunpack.c.l.b16 %v4905
        %v4939 = vunpack.c.l.b16 %v4906
        %v4940 = vunpack.c.l.b16 %v4907
        %v4941 = vunpack.c.l.b16 %v4908
        %v4942 = vunpack.c.l.b16 %v4909
        %v4943 = vunpack.c.l.b16 %v4910
        %v4944 = vunpack.c.l.b16 %v4911
        %v4945 = vunpack.c.l.b16 %v4912
        %v4946 = vunpack.c.l.b16 %v4913
        %v4947 = vpack.c.b16 %v4932, %v4931
        %v4948 = vpack.c.b16 %v4934, %v4933
        %v4949 = vpack.c.b16 %v4936, %v4935
        %v4950 = vpack.c.b16 %v4938, %v4937
        %v4951 = vpack.c.b16 %v4940, %v4939
        %v4952 = vpack.c.b16 %v4942, %v4941
        %v4953 = vpack.c.b16 %v4944, %v4943
        %v4954 = vpack.c.b16 %v4946, %v4945
        %4963 = vmatpush.bf16.msra.mxu0 %v4954
        %4964 = vmatpush.bf16.msra.mxu0 %v4953
        %4965 = vmatpush.bf16.msra.mxu0 %v4952
        %4966 = vmatpush.bf16.msra.mxu0 %v4951
        %4967 = vmatpush.bf16.msra.mxu0 %v4950
        %4968 = vmatpush.bf16.msra.mxu0 %v4949
        %4969 = vmatpush.bf16.msra.mxu0 %v4948
        %4970 = vmatpush.bf16.msra.mxu0 %v4947
        %4971 = vmatmul.bf16.gmra.mxu0 %v4897
        %v4972 = vpop.f32.mrf.mxu0
        %v4973 = vadd.f32 %v4914, %v4972
        %v4974 = vpop.f32.mrf.mxu0
        %4975 = vdwg.mxu0
        %vm4976 = vcmask 122880
        %4977 = vst.msk [vmem:[%s432] sm:$0x1] %vm4976, %v4973
        %s4978 = sand.u32 %s313, 1
        %s4979 = scalar_lea.sflag [#allocation4], %s4978
        %s4980 = sand.u32 %s313, 1
        %s4981 = scalar_lea.vmem [#allocation3], %s4980
        // Predicated region
        $region73: #{qnet_forward.1} parent=71 // pred_check
          %p4982 = pneg %p323
        $region74: #{qnet_forward.1} parent=71 // pred_check_branch
          %4984 = sbr.rel (%p4982) target = $region76
        $region75: #{qnet_forward.1} parent=71 // pred_region
          %4986 = vsyncadd %s4979, 0
          %s4987 = scalar_lea.hbm %s13, %s27
          %s4989 = sshll.u32 %s4981, 4
          %s4990 = int_to_ptr.vmem [resolvable:$true] %s4989
          %s4991 = sshll.u32 %s4987, 4
          %s4992 = int_to_ptr.hbm [resolvable:$true] %s4991
          %4994 = dma.vmem_to_hbm [thread:$0]  %s4990, 16, %s4992, %s4979
        $region76: #{qnet_forward.1} parent=71 // pred_fallthru
          _
      $region72: #{qnet_forward.1} parent=5 // pred_fallthru
        _
      %p4995 = scmp.le.s32.totalorder 2, %s22
      // Predicated region
      $region77: #{qnet_forward.1} parent=5 // pred_check
        %p4996 = pneg %p4995
      $region78: #{qnet_forward.1} parent=5 // pred_check_branch
        %4998 = sbr.rel (%p4996) target = $region80
      $region79: #{qnet_forward.1} parent=5 // pred_region
        %s4999 = ssub.s32 %s22, 2
        // Predicated region
        $region81: #{qnet_forward.1} parent=79 // pred_check
          %p5000 = pneg %p329
        $region82: #{qnet_forward.1} parent=79 // pred_check_branch
          %5002 = sbr.rel (%p5000) target = $region84
        $region83: #{qnet_forward.1} parent=79 // pred_region
          %s5003 = sand.u32 %s314, 1
          %s5004 = scalar_lea.sflag [#allocation4], %s5003
          %s5005 = sand.u32 %s314, 1
          %s5006 = scalar_lea.vmem [#allocation3], %s5005
          %5008 = dma.done %s5004, 16
        $region84: #{qnet_forward.1} parent=79 // pred_fallthru
          _
      $region80: #{qnet_forward.1} parent=5 // pred_fallthru
        _
    $region6: #{qnet_forward.1} parent=1 // loop_footer
      %s26 = sadd.s32 1, %s22
    $region7: #{qnet_forward.1} parent=1 // loop_footer_branch
      %21 = sbr.rel target = $region3
    $region8: #{qnet_forward.1} parent=1 // loop_exit
      _
    %5009 = vsyncpa [#allocation4], 1
    %s5010 = scalar_lea.sflag [#allocation4], 1
    %5011 = vsyncpa %s5010, 1

</llo_original>
